<compile_context>
chip_gen: v6e
topology: v6e:2x2x1
jax: 0.10.0
libtpu: 0.0.40
codegen_flags: <defaults>
</compile_context>

<pallas_src>
import jax
import jax.numpy as jnp
from jax.experimental import pallas as pl
from jax.experimental.pallas import tpu as pltpu

OUT_PAD = 128                      # lane-dense padded output width (true out_dim is 2)
VMEM_BUDGET = 28 * 1024 * 1024     # per-step footprint cap, safe on v5e/v6e/v7x
VMEM_LIMIT = 32 * 1024 * 1024      # explicit scoped-VMEM limit (< 64 MiB v7x physical)


def two_eyes_kernel(x_ref, w1_ref, scale_ref, shift_ref, w2_ref, b2_ref, o_ref):
    # fc1: [TB, Din] @ [Din, H]; cast x to bf16 in-kernel (halves its HBM traffic),
    # f32 MXU accumulation.
    x = x_ref[...].astype(jnp.bfloat16)
    h = jnp.dot(x, w1_ref[...], preferred_element_type=jnp.float32)
    # BatchNorm (running stats) + fc1 bias folded to per-feature scale/shift, applied in
    # f32 on the VPU (free slot; avoids amplifying bf16 quantization of w1).
    h = h * scale_ref[...] + shift_ref[...]
    h = jnp.maximum(h, 0.0)                      # ReLU; Dropout = identity at inference
    # fc2: [TB, H] @ [H, 128] (zero-padded lanes), bf16 inputs, f32 accumulate.
    o_ref[...] = (jnp.dot(h.astype(jnp.bfloat16), w2_ref[...],
                          preferred_element_type=jnp.float32) + b2_ref[...])


def _vmem_bytes(tb, d_in, h):
    """Approximate VMEM footprint of one pipelined step (double-buffered tiles)."""
    return (2 * tb * d_in * 4            # x tile (f32)
            + 2 * d_in * h * 2           # w1 (bf16)
            + 2 * h * OUT_PAD * 2        # w2 padded (bf16)
            + 4 * h * 4 + 2 * OUT_PAD * 4
            + 2 * tb * OUT_PAD * 4)      # out tile (f32)


def two_eyes_forward(x, w1, b1, gamma, beta, running_mean, running_var,
                     w2, b2, eps=1e-5, block_b=512):
    """x: [B, D_in] f32; w1: [D_in, H]; w2: [H, out_dim]. Returns [B, out_dim] f32."""
    B, D_in = x.shape
    H = w1.shape[1]
    out_dim = w2.shape[1]

    # ---- Fold BatchNorm running stats + fc1 bias into per-feature scale/shift (f32). ----
    inv_std = jax.lax.rsqrt(running_var.astype(jnp.float32) + eps)
    scale = (gamma.astype(jnp.float32) * inv_std).reshape(1, H)
    shift = ((b1.astype(jnp.float32) - running_mean.astype(jnp.float32)) * scale[0]
             + beta.astype(jnp.float32)).reshape(1, H)

    # ---- Weights: bf16 MXU operands; fc2 padded to a lane-dense 128-wide output. ----
    w1_bf = w1.astype(jnp.bfloat16)
    w2_pad = jnp.zeros((H, OUT_PAD), jnp.float32).at[:, :out_dim].set(
        w2.astype(jnp.float32)).astype(jnp.bfloat16)
    b2_pad = jnp.zeros((1, OUT_PAD), jnp.float32).at[0, :out_dim].set(
        b2.astype(jnp.float32))

    cost = pl.CostEstimate(
        flops=2 * B * D_in * H + 2 * B * H * OUT_PAD,
        transcendentals=0,
        bytes_accessed=(B * D_in * 4 + D_in * H * 2 + H * OUT_PAD * 2
                        + 2 * H * 4 + OUT_PAD * 4 + B * OUT_PAD * 4))

    # ---- Small-batch path: single step, no grid (no pipeline overhead). ----
    if B <= block_b:
        out_padded = pl.pallas_call(
            two_eyes_kernel,
            out_shape=jax.ShapeDtypeStruct((B, OUT_PAD), jnp.float32),
            cost_estimate=cost,
        )(x, w1_bf, scale, shift, w2_pad, b2_pad)
        return out_padded[:, :out_dim]

    # ---- Large-batch path: batch-tiled grid, weights resident across steps. ----
    TB = max(8, (min(block_b, B) // 8) * 8)
    while TB > 8 and _vmem_bytes(TB, D_in, H) > VMEM_BUDGET:
        TB = max(8, TB // 2)
    num_tiles = pl.cdiv(B, TB)          # ragged last tile handled by Pallas masking

    out_padded = pl.pallas_call(
        two_eyes_kernel,
        out_shape=jax.ShapeDtypeStruct((B, OUT_PAD), jnp.float32),
        grid=(num_tiles,),
        in_specs=[
            pl.BlockSpec((TB, D_in), lambda i: (i, 0)),     # x: streamed over batch
            pl.BlockSpec((D_in, H), lambda i: (0, 0)),      # w1: resident
            pl.BlockSpec((1, H), lambda i: (0, 0)),         # BN scale: resident
            pl.BlockSpec((1, H), lambda i: (0, 0)),         # BN/bias shift: resident
            pl.BlockSpec((H, OUT_PAD), lambda i: (0, 0)),   # w2 (padded): resident
            pl.BlockSpec((1, OUT_PAD), lambda i: (0, 0)),   # b2 (padded): resident
        ],
        out_specs=pl.BlockSpec((TB, OUT_PAD), lambda i: (i, 0)),
        compiler_params=pltpu.CompilerParams(
            dimension_semantics=(("parallel",) if num_tiles >= 2 else ("arbitrary",)),
            vmem_limit_bytes=VMEM_LIMIT),
        cost_estimate=cost,
    )(x, w1_bf, scale, shift, w2_pad, b2_pad)
    return out_padded[:, :out_dim]


def reference_forward(x, w1, b1, gamma, beta, running_mean, running_var,
                      w2, b2, eps=1e-5):
    """Pure-f32 reference matching the PyTorch eval-mode forward."""
    h = x @ w1 + b1
    h = (h - running_mean) / jnp.sqrt(running_var + eps) * gamma + beta
    h = jnp.maximum(h, 0.0)
    return h @ w2 + b2


def reference_forward_bf16(x, w1, b1, gamma, beta, running_mean, running_var,
                           w2, b2, eps=1e-5):
    """Reference applying the same bf16 operand quantization as the kernel (f32 accumulate)."""
    scale = gamma / jnp.sqrt(running_var + eps)
    shift = (b1 - running_mean) * scale + beta
    x_q = x.astype(jnp.bfloat16).astype(jnp.float32)
    w1_q = w1.astype(jnp.bfloat16).astype(jnp.float32)
    h = (x_q @ w1_q) * scale + shift
    h = jnp.maximum(h, 0.0)
    h_q = h.astype(jnp.bfloat16).astype(jnp.float32)
    w2_q = w2.astype(jnp.bfloat16).astype(jnp.float32)
    return h_q @ w2_q + b2


if __name__ == "__main__":
    # Shapes matching the module defaults (input_dim=3072, hidden=256, out=2).
    B, D_IN, HIDDEN, D_OUT = 64, 3072, 256, 2

    key = jax.random.PRNGKey(0)
    kx, kw1, kb1, kg, kbt, km, kv, kw2, kb2, kx2 = jax.random.split(key, 10)

    x = jax.random.normal(kx, (B, D_IN), dtype=jnp.float32)

    # Deterministic synthetic parameters (not a checkpoint load).
    w1 = jax.random.normal(kw1, (D_IN, HIDDEN), dtype=jnp.float32) * 0.02
    b1 = jax.random.normal(kb1, (HIDDEN,), dtype=jnp.float32) * 0.01
    gamma = 1.0 + 0.1 * jax.random.normal(kg, (HIDDEN,), dtype=jnp.float32)
    beta = 0.1 * jax.random.normal(kbt, (HIDDEN,), dtype=jnp.float32)
    running_mean = 0.05 * jax.random.normal(km, (HIDDEN,), dtype=jnp.float32)
    running_var = 1.0 + 0.2 * jax.random.uniform(kv, (HIDDEN,), dtype=jnp.float32)
    w2 = jax.random.normal(kw2, (HIDDEN, D_OUT), dtype=jnp.float32) * 0.05
    b2 = jax.random.normal(kb2, (D_OUT,), dtype=jnp.float32) * 0.01

    params = (w1, b1, gamma, beta, running_mean, running_var, w2, b2)

    # --- Small-batch path (gridless, single step). ---
    out = jax.block_until_ready(two_eyes_forward(x, *params))
    assert out.shape == (B, D_OUT)
    ref_bf = reference_forward_bf16(x, *params)
    assert jnp.allclose(out, ref_bf, atol=1e-3, rtol=1e-3), \
        "small-B mismatch vs bf16-quantized reference"
    ref = reference_forward(x, *params)
    assert jnp.allclose(out, ref, atol=5e-2, rtol=5e-2), \
        "small-B mismatch vs f32 reference"

    # --- Large-batch path (batch-tiled grid, resident weights, even tile count). ---
    B2 = 256
    x2 = jax.random.normal(kx2, (B2, D_IN), dtype=jnp.float32)
    out2 = jax.block_until_ready(two_eyes_forward(x2, *params, block_b=64))
    assert out2.shape == (B2, D_OUT)
    ref2_bf = reference_forward_bf16(x2, *params)
    assert jnp.allclose(out2, ref2_bf, atol=1e-3, rtol=1e-3), \
        "tiled-path mismatch vs bf16-quantized reference"

    print("KERNEL_OK")
</pallas_src>

<mosaic_0001>
module attributes {stable_mosaic.version = 11 : i64} {
  func.func @two_eyes_kernel(%arg0: memref<64x3072xf32, #tpu.memory_space<vmem>>, %arg1: memref<3072x256xbf16, #tpu.memory_space<vmem>>, %arg2: memref<1x256xf32, #tpu.memory_space<vmem>>, %arg3: memref<1x256xf32, #tpu.memory_space<vmem>>, %arg4: memref<256x128xbf16, #tpu.memory_space<vmem>>, %arg5: memref<1x128xf32, #tpu.memory_space<vmem>>, %arg6: memref<64x128xf32, #tpu.memory_space<vmem>>) attributes {dimension_semantics = [], scalar_prefetch = 0 : i64, scratch_operands = 0 : i64, tpu.core_type = #tpu.core_type<tc>} {
    %c0 = arith.constant 0 : index
    %c0_0 = arith.constant 0 : index
    %0 = vector.load %arg0[%c0, %c0_0] : memref<64x3072xf32, #tpu.memory_space<vmem>>, vector<64x3072xf32>
    %1 = arith.truncf %0 : vector<64x3072xf32> to vector<64x3072xbf16>
    %c0_1 = arith.constant 0 : index
    %c0_2 = arith.constant 0 : index
    %2 = vector.load %arg1[%c0_1, %c0_2] : memref<3072x256xbf16, #tpu.memory_space<vmem>>, vector<3072x256xbf16>
    %cst = arith.constant dense<0.000000e+00> : vector<64x256xf32>
    %3 = tpu.matmul %1, %2, %cst {dimension_numbers = #tpu.dot_dimension_numbers<[1], [0], [0], [1], [0, 0, 1, 1], [], []>} : vector<64x3072xbf16>, vector<3072x256xbf16>, vector<64x256xf32> -> vector<64x256xf32>
    %c0_3 = arith.constant 0 : index
    %c0_4 = arith.constant 0 : index
    %4 = vector.load %arg2[%c0_3, %c0_4] : memref<1x256xf32, #tpu.memory_space<vmem>>, vector<1x256xf32>
    %5 = vector.broadcast %4 : vector<1x256xf32> to vector<64x256xf32>
    %6 = arith.mulf %3, %5 : vector<64x256xf32>
    %c0_5 = arith.constant 0 : index
    %c0_6 = arith.constant 0 : index
    %7 = vector.load %arg3[%c0_5, %c0_6] : memref<1x256xf32, #tpu.memory_space<vmem>>, vector<1x256xf32>
    %8 = vector.broadcast %7 : vector<1x256xf32> to vector<64x256xf32>
    %9 = arith.addf %6, %8 : vector<64x256xf32>
    %cst_7 = arith.constant 0.000000e+00 : f32
    %10 = vector.broadcast %cst_7 : f32 to vector<64x256xf32>
    %11 = arith.maximumf %9, %10 : vector<64x256xf32>
    %12 = arith.truncf %11 : vector<64x256xf32> to vector<64x256xbf16>
    %c0_8 = arith.constant 0 : index
    %c0_9 = arith.constant 0 : index
    %13 = vector.load %arg4[%c0_8, %c0_9] : memref<256x128xbf16, #tpu.memory_space<vmem>>, vector<256x128xbf16>
    %cst_10 = arith.constant dense<0.000000e+00> : vector<64x128xf32>
    %14 = tpu.matmul %12, %13, %cst_10 {dimension_numbers = #tpu.dot_dimension_numbers<[1], [0], [0], [1], [0, 0, 1, 1], [], []>} : vector<64x256xbf16>, vector<256x128xbf16>, vector<64x128xf32> -> vector<64x128xf32>
    %c0_11 = arith.constant 0 : index
    %c0_12 = arith.constant 0 : index
    %15 = vector.load %arg5[%c0_11, %c0_12] : memref<1x128xf32, #tpu.memory_space<vmem>>, vector<1x128xf32>
    %16 = vector.broadcast %15 : vector<1x128xf32> to vector<64x128xf32>
    %17 = arith.addf %14, %16 : vector<64x128xf32>
    %c0_13 = arith.constant 0 : index
    %c0_14 = arith.constant 0 : index
    %18 = vector.load %arg6[%c0_13, %c0_14] : memref<64x128xf32, #tpu.memory_space<vmem>>, vector<64x128xf32>
    tpu.vector_store %arg6[%c0_13, %c0_14], %17 {strides = array<i32>} : memref<64x128xf32, #tpu.memory_space<vmem>>, vector<64x128xf32>,
    return
  }
}

</mosaic_0001>

<llo_original>
// kernel: tpu_custom_call.1
$region0: #{tpu_custom_call.1}
  #allocation0 [shape = 'u32[]', space=smem, size = 0x4, offset = 0x4, fixed_abs, tag = 'smem constant byte address 0x4 - core index']
  #allocation1 [shape = 'u32[144,128]{1,0:T(1,128)}', space=vmem, size = 0x12000, scoped, tag = 'internal scratch']
  %s0 = inlined_call_operand.hbm [shape: f32[64,3072], index: 0, kind: input, shape index: {}]
  %s1 = inlined_call_operand.hbm [shape: bf16[3072,256], index: 1, kind: input, shape index: {}]
  %s2 = inlined_call_operand.hbm [shape: f32[1,256], index: 2, kind: input, shape index: {}]
  %s3 = inlined_call_operand.hbm [shape: f32[1,256], index: 3, kind: input, shape index: {}]
  %s4 = inlined_call_operand.hbm [shape: bf16[256,128], index: 4, kind: input, shape index: {}]
  %s5 = inlined_call_operand.hbm [shape: f32[1,128], index: 5, kind: input, shape index: {}]
  %s6 = inlined_call_operand.hbm [shape: f32[64,128], index: 6, kind: output, shape index: {}]
  %s7 = sld [smem:[#allocation0]]
  $region58: #{tpu_custom_call.1} parent=0
    _
  %s9 = ssub.s32 1, %s7
  %s10 = scalar_select 0, %s9, %s7
  $region1: #{tpu_custom_call.1} parent=0
    #allocation2 [shape = 'u8[786432]{0}', space=vmem, size = 0xc0000, scoped, tag = 'input window, operand 0, single buffered']
    #allocation3 [shape = 's32[1]{0}', space=sflag, size = 0x4, scoped, tag = 'scoped memory for tpu_custom_call.1']
    #allocation4 [shape = 's32[1]{0}', space=sflag, size = 0x4, scoped, tag = 'scoped memory for tpu_custom_call.1']
    #allocation5 [shape = 'u8[1572864]{0}', space=vmem, size = 0x180000, scoped, tag = 'input window, operand 1, single buffered']
    #allocation6 [shape = 's32[1]{0}', space=sflag, size = 0x4, scoped, tag = 'scoped memory for tpu_custom_call.1']
    #allocation7 [shape = 'u8[1024]{0}', space=vmem, size = 0x400, scoped, tag = 'input window, operand 2, single buffered']
    #allocation8 [shape = 'u8[1024]{0}', space=vmem, size = 0x400, scoped, tag = 'input window, operand 3, single buffered']
    #allocation9 [shape = 's32[1]{0}', space=sflag, size = 0x4, scoped, tag = 'scoped memory for tpu_custom_call.1']
    #allocation10 [shape = 'u8[65536]{0}', space=vmem, size = 0x10000, scoped, tag = 'input window, operand 4, single buffered']
    #allocation11 [shape = 'u8[512]{0}', space=vmem, size = 0x400, scoped, tag = 'input window, operand 5, single buffered']
    #allocation12 [shape = 's32[1]{0}', space=sflag, size = 0x4, scoped, tag = 'scoped memory for tpu_custom_call.1']
    #allocation13 [shape = 'u8[32768]{0}', space=vmem, size = 0x8000, scoped, tag = 'output window, operand 0, single buffered']
    %11 = vsyncpa [#allocation3], 0
    %12 = vsyncpa [#allocation6], 0
    %13 = vsyncpa [#allocation9], 0
    %14 = vsyncpa [#allocation12], 0
    %15 = vsyncpa [#allocation4], 0
    // Predicated region
    $region2: #{tpu_custom_call.1} parent=1 // pred_check
      _
    $region3: #{tpu_custom_call.1} parent=1 // pred_check_branch
      %17 = sbr.rel (0) target = $region5
    $region4: #{tpu_custom_call.1} parent=1 // pred_region
      %s19 = ssub.s32 24576, 24576
      %20 = vsyncadd [#allocation3], %s19
      %s21 = sshll.u32 [#allocation2], 4
      %s22 = int_to_ptr.vmem [resolvable:$true] %s21
      %27 = dma.hbm_to_vmem [thread:$0]  %s0, 24576, %s22, [#allocation3], 3072, 3072, 192
    $region5: #{tpu_custom_call.1} parent=1 // pred_fallthru
      _
    // Predicated region
    $region6: #{tpu_custom_call.1} parent=1 // pred_check
      _
    $region7: #{tpu_custom_call.1} parent=1 // pred_check_branch
      %29 = sbr.rel (0) target = $region9
    $region8: #{tpu_custom_call.1} parent=1 // pred_region
      %s31 = ssub.s32 49152, 49152
      %32 = vsyncadd [#allocation6], %s31
      %s33 = sshll.u32 [#allocation5], 4
      %s34 = int_to_ptr.vmem [resolvable:$true] %s33
      %39 = dma.hbm_to_vmem [thread:$0]  %s1, 49152, %s34, [#allocation6], 128, 128, 8
    $region9: #{tpu_custom_call.1} parent=1 // pred_fallthru
      _
    // Predicated region
    $region10: #{tpu_custom_call.1} parent=1 // pred_check
      _
    $region11: #{tpu_custom_call.1} parent=1 // pred_check_branch
      %41 = sbr.rel (0) target = $region13
    $region12: #{tpu_custom_call.1} parent=1 // pred_region
      %s43 = ssub.s32 32, 32
      %44 = vsyncadd [#allocation6], %s43
      %s46 = sshll.u32 [#allocation7], 4
      %s47 = int_to_ptr.vmem [resolvable:$true] %s46
      %49 = dma.hbm_to_vmem [thread:$0]  %s2, 32, %s47, [#allocation6]
    $region13: #{tpu_custom_call.1} parent=1 // pred_fallthru
      _
    // Predicated region
    $region14: #{tpu_custom_call.1} parent=1 // pred_check
      _
    $region15: #{tpu_custom_call.1} parent=1 // pred_check_branch
      %51 = sbr.rel (0) target = $region17
    $region16: #{tpu_custom_call.1} parent=1 // pred_region
      %s53 = ssub.s32 32, 32
      %54 = vsyncadd [#allocation9], %s53
      %s56 = sshll.u32 [#allocation8], 4
      %s57 = int_to_ptr.vmem [resolvable:$true] %s56
      %59 = dma.hbm_to_vmem [thread:$0]  %s3, 32, %s57, [#allocation9]
    $region17: #{tpu_custom_call.1} parent=1 // pred_fallthru
      _
    // Predicated region
    $region18: #{tpu_custom_call.1} parent=1 // pred_check
      _
    $region19: #{tpu_custom_call.1} parent=1 // pred_check_branch
      %61 = sbr.rel (0) target = $region21
    $region20: #{tpu_custom_call.1} parent=1 // pred_region
      %s63 = ssub.s32 2048, 2048
      %64 = vsyncadd [#allocation9], %s63
      %s65 = sshll.u32 [#allocation10], 4
      %s66 = int_to_ptr.vmem [resolvable:$true] %s65
      %71 = dma.hbm_to_vmem [thread:$0]  %s4, 2048, %s66, [#allocation9], 64, 64, 4
    $region21: #{tpu_custom_call.1} parent=1 // pred_fallthru
      _
    // Predicated region
    $region22: #{tpu_custom_call.1} parent=1 // pred_check
      _
    $region23: #{tpu_custom_call.1} parent=1 // pred_check_branch
      %73 = sbr.rel (0) target = $region25
    $region24: #{tpu_custom_call.1} parent=1 // pred_region
      %s75 = ssub.s32 16, 16
      %76 = vsyncadd [#allocation12], %s75
      %s78 = sshll.u32 [#allocation11], 4
      %s79 = int_to_ptr.vmem [resolvable:$true] %s78
      %81 = dma.hbm_to_vmem [thread:$0]  %s5, 16, %s79, [#allocation12]
    $region25: #{tpu_custom_call.1} parent=1 // pred_fallthru
      _
    // Predicated region
    $region26: #{tpu_custom_call.1} parent=1 // pred_check
      _
    $region27: #{tpu_custom_call.1} parent=1 // pred_check_branch
      %83 = sbr.rel (0) target = $region29
    $region28: #{tpu_custom_call.1} parent=1 // pred_region
      %84 = dma.done [#allocation3], 24576
    $region29: #{tpu_custom_call.1} parent=1 // pred_fallthru
      _
    // Predicated region
    $region30: #{tpu_custom_call.1} parent=1 // pred_check
      _
    $region31: #{tpu_custom_call.1} parent=1 // pred_check_branch
      %86 = sbr.rel (0) target = $region33
    $region32: #{tpu_custom_call.1} parent=1 // pred_region
      %87 = dma.done [#allocation6], 49152
    $region33: #{tpu_custom_call.1} parent=1 // pred_fallthru
      _
    // Predicated region
    $region34: #{tpu_custom_call.1} parent=1 // pred_check
      _
    $region35: #{tpu_custom_call.1} parent=1 // pred_check_branch
      %89 = sbr.rel (0) target = $region37
    $region36: #{tpu_custom_call.1} parent=1 // pred_region
      %90 = dma.done [#allocation6], 32
    $region37: #{tpu_custom_call.1} parent=1 // pred_fallthru
      _
    // Predicated region
    $region38: #{tpu_custom_call.1} parent=1 // pred_check
      _
    $region39: #{tpu_custom_call.1} parent=1 // pred_check_branch
      %92 = sbr.rel (0) target = $region41
    $region40: #{tpu_custom_call.1} parent=1 // pred_region
      %93 = dma.done [#allocation9], 32
    $region41: #{tpu_custom_call.1} parent=1 // pred_fallthru
      _
    // Predicated region
    $region42: #{tpu_custom_call.1} parent=1 // pred_check
      _
    $region43: #{tpu_custom_call.1} parent=1 // pred_check_branch
      %95 = sbr.rel (0) target = $region45
    $region44: #{tpu_custom_call.1} parent=1 // pred_region
      %96 = dma.done [#allocation9], 2048
    $region45: #{tpu_custom_call.1} parent=1 // pred_fallthru
      _
    // Predicated region
    $region46: #{tpu_custom_call.1} parent=1 // pred_check
      _
    $region47: #{tpu_custom_call.1} parent=1 // pred_check_branch
      %98 = sbr.rel (0) target = $region49
    $region48: #{tpu_custom_call.1} parent=1 // pred_region
      %99 = dma.done [#allocation12], 16
    $region49: #{tpu_custom_call.1} parent=1 // pred_fallthru
      _
    %v101 = vld [vmem:[#allocation2] sm:$0xff]
    %v102 = vld [vmem:[#allocation2 + $0x8] sm:$0xff]
    %v103 = vld [vmem:[#allocation2 + $0x10] sm:$0xff]
    %v104 = vld [vmem:[#allocation2 + $0x18] sm:$0xff]
    %v105 = vld [vmem:[#allocation2 + $0x20] sm:$0xff]
    %v106 = vld [vmem:[#allocation2 + $0x28] sm:$0xff]
    %v107 = vld [vmem:[#allocation2 + $0x30] sm:$0xff]
    %v108 = vld [vmem:[#allocation2 + $0x38] sm:$0xff]
    %v109 = vld [vmem:[#allocation2 + $0x40] sm:$0xff]
    %v110 = vld [vmem:[#allocation2 + $0x48] sm:$0xff]
    %v111 = vld [vmem:[#allocation2 + $0x50] sm:$0xff]
    %v112 = vld [vmem:[#allocation2 + $0x58] sm:$0xff]
    %v113 = vld [vmem:[#allocation2 + $0x60] sm:$0xff]
    %v114 = vld [vmem:[#allocation2 + $0x68] sm:$0xff]
    %v115 = vld [vmem:[#allocation2 + $0x70] sm:$0xff]
    %v116 = vld [vmem:[#allocation2 + $0x78] sm:$0xff]
    %v117 = vld [vmem:[#allocation2 + $0x80] sm:$0xff]
    %v118 = vld [vmem:[#allocation2 + $0x88] sm:$0xff]
    %v119 = vld [vmem:[#allocation2 + $0x90] sm:$0xff]
    %v120 = vld [vmem:[#allocation2 + $0x98] sm:$0xff]
    %v121 = vld [vmem:[#allocation2 + $0xa0] sm:$0xff]
    %v122 = vld [vmem:[#allocation2 + $0xa8] sm:$0xff]
    %v123 = vld [vmem:[#allocation2 + $0xb0] sm:$0xff]
    %v124 = vld [vmem:[#allocation2 + $0xb8] sm:$0xff]
    %v125 = vld [vmem:[#allocation2 + $0xc0] sm:$0xff]
    %v126 = vld [vmem:[#allocation2 + $0xc8] sm:$0xff]
    %v127 = vld [vmem:[#allocation2 + $0xd0] sm:$0xff]
    %v128 = vld [vmem:[#allocation2 + $0xd8] sm:$0xff]
    %v129 = vld [vmem:[#allocation2 + $0xe0] sm:$0xff]
    %v130 = vld [vmem:[#allocation2 + $0xe8] sm:$0xff]
    %v131 = vld [vmem:[#allocation2 + $0xf0] sm:$0xff]
    %v132 = vld [vmem:[#allocation2 + $0xf8] sm:$0xff]
    %v133 = vld [vmem:[#allocation2 + $0x100] sm:$0xff]
    %v134 = vld [vmem:[#allocation2 + $0x108] sm:$0xff]
    %v135 = vld [vmem:[#allocation2 + $0x110] sm:$0xff]
    %v136 = vld [vmem:[#allocation2 + $0x118] sm:$0xff]
    %v137 = vld [vmem:[#allocation2 + $0x120] sm:$0xff]
    %v138 = vld [vmem:[#allocation2 + $0x128] sm:$0xff]
    %v139 = vld [vmem:[#allocation2 + $0x130] sm:$0xff]
    %v140 = vld [vmem:[#allocation2 + $0x138] sm:$0xff]
    %v141 = vld [vmem:[#allocation2 + $0x140] sm:$0xff]
    %v142 = vld [vmem:[#allocation2 + $0x148] sm:$0xff]
    %v143 = vld [vmem:[#allocation2 + $0x150] sm:$0xff]
    %v144 = vld [vmem:[#allocation2 + $0x158] sm:$0xff]
    %v145 = vld [vmem:[#allocation2 + $0x160] sm:$0xff]
    %v146 = vld [vmem:[#allocation2 + $0x168] sm:$0xff]
    %v147 = vld [vmem:[#allocation2 + $0x170] sm:$0xff]
    %v148 = vld [vmem:[#allocation2 + $0x178] sm:$0xff]
    %v149 = vld [vmem:[#allocation2 + $0x180] sm:$0xff]
    %v150 = vld [vmem:[#allocation2 + $0x188] sm:$0xff]
    %v151 = vld [vmem:[#allocation2 + $0x190] sm:$0xff]
    %v152 = vld [vmem:[#allocation2 + $0x198] sm:$0xff]
    %v153 = vld [vmem:[#allocation2 + $0x1a0] sm:$0xff]
    %v154 = vld [vmem:[#allocation2 + $0x1a8] sm:$0xff]
    %v155 = vld [vmem:[#allocation2 + $0x1b0] sm:$0xff]
    %v156 = vld [vmem:[#allocation2 + $0x1b8] sm:$0xff]
    %v157 = vld [vmem:[#allocation2 + $0x1c0] sm:$0xff]
    %v158 = vld [vmem:[#allocation2 + $0x1c8] sm:$0xff]
    %v159 = vld [vmem:[#allocation2 + $0x1d0] sm:$0xff]
    %v160 = vld [vmem:[#allocation2 + $0x1d8] sm:$0xff]
    %v161 = vld [vmem:[#allocation2 + $0x1e0] sm:$0xff]
    %v162 = vld [vmem:[#allocation2 + $0x1e8] sm:$0xff]
    %v163 = vld [vmem:[#allocation2 + $0x1f0] sm:$0xff]
    %v164 = vld [vmem:[#allocation2 + $0x1f8] sm:$0xff]
    %v165 = vld [vmem:[#allocation2 + $0x200] sm:$0xff]
    %v166 = vld [vmem:[#allocation2 + $0x208] sm:$0xff]
    %v167 = vld [vmem:[#allocation2 + $0x210] sm:$0xff]
    %v168 = vld [vmem:[#allocation2 + $0x218] sm:$0xff]
    %v169 = vld [vmem:[#allocation2 + $0x220] sm:$0xff]
    %v170 = vld [vmem:[#allocation2 + $0x228] sm:$0xff]
    %v171 = vld [vmem:[#allocation2 + $0x230] sm:$0xff]
    %v172 = vld [vmem:[#allocation2 + $0x238] sm:$0xff]
    %v173 = vld [vmem:[#allocation2 + $0x240] sm:$0xff]
    %v174 = vld [vmem:[#allocation2 + $0x248] sm:$0xff]
    %v175 = vld [vmem:[#allocation2 + $0x250] sm:$0xff]
    %v176 = vld [vmem:[#allocation2 + $0x258] sm:$0xff]
    %v177 = vld [vmem:[#allocation2 + $0x260] sm:$0xff]
    %v178 = vld [vmem:[#allocation2 + $0x268] sm:$0xff]
    %v179 = vld [vmem:[#allocation2 + $0x270] sm:$0xff]
    %v180 = vld [vmem:[#allocation2 + $0x278] sm:$0xff]
    %v181 = vld [vmem:[#allocation2 + $0x280] sm:$0xff]
    %v182 = vld [vmem:[#allocation2 + $0x288] sm:$0xff]
    %v183 = vld [vmem:[#allocation2 + $0x290] sm:$0xff]
    %v184 = vld [vmem:[#allocation2 + $0x298] sm:$0xff]
    %v185 = vld [vmem:[#allocation2 + $0x2a0] sm:$0xff]
    %v186 = vld [vmem:[#allocation2 + $0x2a8] sm:$0xff]
    %v187 = vld [vmem:[#allocation2 + $0x2b0] sm:$0xff]
    %v188 = vld [vmem:[#allocation2 + $0x2b8] sm:$0xff]
    %v189 = vld [vmem:[#allocation2 + $0x2c0] sm:$0xff]
    %v190 = vld [vmem:[#allocation2 + $0x2c8] sm:$0xff]
    %v191 = vld [vmem:[#allocation2 + $0x2d0] sm:$0xff]
    %v192 = vld [vmem:[#allocation2 + $0x2d8] sm:$0xff]
    %v193 = vld [vmem:[#allocation2 + $0x2e0] sm:$0xff]
    %v194 = vld [vmem:[#allocation2 + $0x2e8] sm:$0xff]
    %v195 = vld [vmem:[#allocation2 + $0x2f0] sm:$0xff]
    %v196 = vld [vmem:[#allocation2 + $0x2f8] sm:$0xff]
    %v197 = vld [vmem:[#allocation2 + $0x300] sm:$0xff]
    %v198 = vld [vmem:[#allocation2 + $0x308] sm:$0xff]
    %v199 = vld [vmem:[#allocation2 + $0x310] sm:$0xff]
    %v200 = vld [vmem:[#allocation2 + $0x318] sm:$0xff]
    %v201 = vld [vmem:[#allocation2 + $0x320] sm:$0xff]
    %v202 = vld [vmem:[#allocation2 + $0x328] sm:$0xff]
    %v203 = vld [vmem:[#allocation2 + $0x330] sm:$0xff]
    %v204 = vld [vmem:[#allocation2 + $0x338] sm:$0xff]
    %v205 = vld [vmem:[#allocation2 + $0x340] sm:$0xff]
    %v206 = vld [vmem:[#allocation2 + $0x348] sm:$0xff]
    %v207 = vld [vmem:[#allocation2 + $0x350] sm:$0xff]
    %v208 = vld [vmem:[#allocation2 + $0x358] sm:$0xff]
    %v209 = vld [vmem:[#allocation2 + $0x360] sm:$0xff]
    %v210 = vld [vmem:[#allocation2 + $0x368] sm:$0xff]
    %v211 = vld [vmem:[#allocation2 + $0x370] sm:$0xff]
    %v212 = vld [vmem:[#allocation2 + $0x378] sm:$0xff]
    %v213 = vld [vmem:[#allocation2 + $0x380] sm:$0xff]
    %v214 = vld [vmem:[#allocation2 + $0x388] sm:$0xff]
    %v215 = vld [vmem:[#allocation2 + $0x390] sm:$0xff]
    %v216 = vld [vmem:[#allocation2 + $0x398] sm:$0xff]
    %v217 = vld [vmem:[#allocation2 + $0x3a0] sm:$0xff]
    %v218 = vld [vmem:[#allocation2 + $0x3a8] sm:$0xff]
    %v219 = vld [vmem:[#allocation2 + $0x3b0] sm:$0xff]
    %v220 = vld [vmem:[#allocation2 + $0x3b8] sm:$0xff]
    %v221 = vld [vmem:[#allocation2 + $0x3c0] sm:$0xff]
    %v222 = vld [vmem:[#allocation2 + $0x3c8] sm:$0xff]
    %v223 = vld [vmem:[#allocation2 + $0x3d0] sm:$0xff]
    %v224 = vld [vmem:[#allocation2 + $0x3d8] sm:$0xff]
    %v225 = vld [vmem:[#allocation2 + $0x3e0] sm:$0xff]
    %v226 = vld [vmem:[#allocation2 + $0x3e8] sm:$0xff]
    %v227 = vld [vmem:[#allocation2 + $0x3f0] sm:$0xff]
    %v228 = vld [vmem:[#allocation2 + $0x3f8] sm:$0xff]
    %v229 = vld [vmem:[#allocation2 + $0x400] sm:$0xff]
    %v230 = vld [vmem:[#allocation2 + $0x408] sm:$0xff]
    %v231 = vld [vmem:[#allocation2 + $0x410] sm:$0xff]
    %v232 = vld [vmem:[#allocation2 + $0x418] sm:$0xff]
    %v233 = vld [vmem:[#allocation2 + $0x420] sm:$0xff]
    %v234 = vld [vmem:[#allocation2 + $0x428] sm:$0xff]
    %v235 = vld [vmem:[#allocation2 + $0x430] sm:$0xff]
    %v236 = vld [vmem:[#allocation2 + $0x438] sm:$0xff]
    %v237 = vld [vmem:[#allocation2 + $0x440] sm:$0xff]
    %v238 = vld [vmem:[#allocation2 + $0x448] sm:$0xff]
    %v239 = vld [vmem:[#allocation2 + $0x450] sm:$0xff]
    %v240 = vld [vmem:[#allocation2 + $0x458] sm:$0xff]
    %v241 = vld [vmem:[#allocation2 + $0x460] sm:$0xff]
    %v242 = vld [vmem:[#allocation2 + $0x468] sm:$0xff]
    %v243 = vld [vmem:[#allocation2 + $0x470] sm:$0xff]
    %v244 = vld [vmem:[#allocation2 + $0x478] sm:$0xff]
    %v245 = vld [vmem:[#allocation2 + $0x480] sm:$0xff]
    %v246 = vld [vmem:[#allocation2 + $0x488] sm:$0xff]
    %v247 = vld [vmem:[#allocation2 + $0x490] sm:$0xff]
    %v248 = vld [vmem:[#allocation2 + $0x498] sm:$0xff]
    %v249 = vld [vmem:[#allocation2 + $0x4a0] sm:$0xff]
    %v250 = vld [vmem:[#allocation2 + $0x4a8] sm:$0xff]
    %v251 = vld [vmem:[#allocation2 + $0x4b0] sm:$0xff]
    %v252 = vld [vmem:[#allocation2 + $0x4b8] sm:$0xff]
    %v253 = vld [vmem:[#allocation2 + $0x4c0] sm:$0xff]
    %v254 = vld [vmem:[#allocation2 + $0x4c8] sm:$0xff]
    %v255 = vld [vmem:[#allocation2 + $0x4d0] sm:$0xff]
    %v256 = vld [vmem:[#allocation2 + $0x4d8] sm:$0xff]
    %v257 = vld [vmem:[#allocation2 + $0x4e0] sm:$0xff]
    %v258 = vld [vmem:[#allocation2 + $0x4e8] sm:$0xff]
    %v259 = vld [vmem:[#allocation2 + $0x4f0] sm:$0xff]
    %v260 = vld [vmem:[#allocation2 + $0x4f8] sm:$0xff]
    %v261 = vld [vmem:[#allocation2 + $0x500] sm:$0xff]
    %v262 = vld [vmem:[#allocation2 + $0x508] sm:$0xff]
    %v263 = vld [vmem:[#allocation2 + $0x510] sm:$0xff]
    %v264 = vld [vmem:[#allocation2 + $0x518] sm:$0xff]
    %v265 = vld [vmem:[#allocation2 + $0x520] sm:$0xff]
    %v266 = vld [vmem:[#allocation2 + $0x528] sm:$0xff]
    %v267 = vld [vmem:[#allocation2 + $0x530] sm:$0xff]
    %v268 = vld [vmem:[#allocation2 + $0x538] sm:$0xff]
    %v269 = vld [vmem:[#allocation2 + $0x540] sm:$0xff]
    %v270 = vld [vmem:[#allocation2 + $0x548] sm:$0xff]
    %v271 = vld [vmem:[#allocation2 + $0x550] sm:$0xff]
    %v272 = vld [vmem:[#allocation2 + $0x558] sm:$0xff]
    %v273 = vld [vmem:[#allocation2 + $0x560] sm:$0xff]
    %v274 = vld [vmem:[#allocation2 + $0x568] sm:$0xff]
    %v275 = vld [vmem:[#allocation2 + $0x570] sm:$0xff]
    %v276 = vld [vmem:[#allocation2 + $0x578] sm:$0xff]
    %v277 = vld [vmem:[#allocation2 + $0x580] sm:$0xff]
    %v278 = vld [vmem:[#allocation2 + $0x588] sm:$0xff]
    %v279 = vld [vmem:[#allocation2 + $0x590] sm:$0xff]
    %v280 = vld [vmem:[#allocation2 + $0x598] sm:$0xff]
    %v281 = vld [vmem:[#allocation2 + $0x5a0] sm:$0xff]
    %v282 = vld [vmem:[#allocation2 + $0x5a8] sm:$0xff]
    %v283 = vld [vmem:[#allocation2 + $0x5b0] sm:$0xff]
    %v284 = vld [vmem:[#allocation2 + $0x5b8] sm:$0xff]
    %v285 = vld [vmem:[#allocation2 + $0x5c0] sm:$0xff]
    %v286 = vld [vmem:[#allocation2 + $0x5c8] sm:$0xff]
    %v287 = vld [vmem:[#allocation2 + $0x5d0] sm:$0xff]
    %v288 = vld [vmem:[#allocation2 + $0x5d8] sm:$0xff]
    %v289 = vld [vmem:[#allocation2 + $0x5e0] sm:$0xff]
    %v290 = vld [vmem:[#allocation2 + $0x5e8] sm:$0xff]
    %v291 = vld [vmem:[#allocation2 + $0x5f0] sm:$0xff]
    %v292 = vld [vmem:[#allocation2 + $0x5f8] sm:$0xff]
    %v293 = vpack.c.bf16 %v125, %v101
    %v294 = vpack.c.bf16 %v126, %v102
    %v295 = vpack.c.bf16 %v127, %v103
    %v296 = vpack.c.bf16 %v128, %v104
    %v297 = vpack.c.bf16 %v129, %v105
    %v298 = vpack.c.bf16 %v130, %v106
    %v299 = vpack.c.bf16 %v131, %v107
    %v300 = vpack.c.bf16 %v132, %v108
    %v301 = vpack.c.bf16 %v133, %v109
    %v302 = vpack.c.bf16 %v134, %v110
    %v303 = vpack.c.bf16 %v135, %v111
    %v304 = vpack.c.bf16 %v136, %v112
    %v305 = vpack.c.bf16 %v137, %v113
    %v306 = vpack.c.bf16 %v138, %v114
    %v307 = vpack.c.bf16 %v139, %v115
    %v308 = vpack.c.bf16 %v140, %v116
    %v309 = vpack.c.bf16 %v141, %v117
    %v310 = vpack.c.bf16 %v142, %v118
    %v311 = vpack.c.bf16 %v143, %v119
    %v312 = vpack.c.bf16 %v144, %v120
    %v313 = vpack.c.bf16 %v145, %v121
    %v314 = vpack.c.bf16 %v146, %v122
    %v315 = vpack.c.bf16 %v147, %v123
    %v316 = vpack.c.bf16 %v148, %v124
    %v317 = vpack.c.bf16 %v173, %v149
    %v318 = vpack.c.bf16 %v174, %v150
    %v319 = vpack.c.bf16 %v175, %v151
    %v320 = vpack.c.bf16 %v176, %v152
    %v321 = vpack.c.bf16 %v177, %v153
    %v322 = vpack.c.bf16 %v178, %v154
    %v323 = vpack.c.bf16 %v179, %v155
    %v324 = vpack.c.bf16 %v180, %v156
    %v325 = vpack.c.bf16 %v181, %v157
    %v326 = vpack.c.bf16 %v182, %v158
    %v327 = vpack.c.bf16 %v183, %v159
    %v328 = vpack.c.bf16 %v184, %v160
    %v329 = vpack.c.bf16 %v185, %v161
    %v330 = vpack.c.bf16 %v186, %v162
    %v331 = vpack.c.bf16 %v187, %v163
    %v332 = vpack.c.bf16 %v188, %v164
    %v333 = vpack.c.bf16 %v189, %v165
    %v334 = vpack.c.bf16 %v190, %v166
    %v335 = vpack.c.bf16 %v191, %v167
    %v336 = vpack.c.bf16 %v192, %v168
    %v337 = vpack.c.bf16 %v193, %v169
    %v338 = vpack.c.bf16 %v194, %v170
    %v339 = vpack.c.bf16 %v195, %v171
    %v340 = vpack.c.bf16 %v196, %v172
    %v341 = vpack.c.bf16 %v221, %v197
    %v342 = vpack.c.bf16 %v222, %v198
    %v343 = vpack.c.bf16 %v223, %v199
    %v344 = vpack.c.bf16 %v224, %v200
    %v345 = vpack.c.bf16 %v225, %v201
    %v346 = vpack.c.bf16 %v226, %v202
    %v347 = vpack.c.bf16 %v227, %v203
    %v348 = vpack.c.bf16 %v228, %v204
    %v349 = vpack.c.bf16 %v229, %v205
    %v350 = vpack.c.bf16 %v230, %v206
    %v351 = vpack.c.bf16 %v231, %v207
    %v352 = vpack.c.bf16 %v232, %v208
    %v353 = vpack.c.bf16 %v233, %v209
    %v354 = vpack.c.bf16 %v234, %v210
    %v355 = vpack.c.bf16 %v235, %v211
    %v356 = vpack.c.bf16 %v236, %v212
    %v357 = vpack.c.bf16 %v237, %v213
    %v358 = vpack.c.bf16 %v238, %v214
    %v359 = vpack.c.bf16 %v239, %v215
    %v360 = vpack.c.bf16 %v240, %v216
    %v361 = vpack.c.bf16 %v241, %v217
    %v362 = vpack.c.bf16 %v242, %v218
    %v363 = vpack.c.bf16 %v243, %v219
    %v364 = vpack.c.bf16 %v244, %v220
    %v365 = vpack.c.bf16 %v269, %v245
    %v366 = vpack.c.bf16 %v270, %v246
    %v367 = vpack.c.bf16 %v271, %v247
    %v368 = vpack.c.bf16 %v272, %v248
    %v369 = vpack.c.bf16 %v273, %v249
    %v370 = vpack.c.bf16 %v274, %v250
    %v371 = vpack.c.bf16 %v275, %v251
    %v372 = vpack.c.bf16 %v276, %v252
    %v373 = vpack.c.bf16 %v277, %v253
    %v374 = vpack.c.bf16 %v278, %v254
    %v375 = vpack.c.bf16 %v279, %v255
    %v376 = vpack.c.bf16 %v280, %v256
    %v377 = vpack.c.bf16 %v281, %v257
    %v378 = vpack.c.bf16 %v282, %v258
    %v379 = vpack.c.bf16 %v283, %v259
    %v380 = vpack.c.bf16 %v284, %v260
    %v381 = vpack.c.bf16 %v285, %v261
    %v382 = vpack.c.bf16 %v286, %v262
    %v383 = vpack.c.bf16 %v287, %v263
    %v384 = vpack.c.bf16 %v288, %v264
    %v385 = vpack.c.bf16 %v289, %v265
    %v386 = vpack.c.bf16 %v290, %v266
    %v387 = vpack.c.bf16 %v291, %v267
    %v388 = vpack.c.bf16 %v292, %v268
    %v389 = vld [vmem:[#allocation5] sm:$0xff]
    %v390 = vld [vmem:[#allocation5 + $0x8] sm:$0xff]
    %v391 = vld [vmem:[#allocation5 + $0x10] sm:$0xff]
    %v392 = vld [vmem:[#allocation5 + $0x18] sm:$0xff]
    %v393 = vld [vmem:[#allocation5 + $0x20] sm:$0xff]
    %v394 = vld [vmem:[#allocation5 + $0x28] sm:$0xff]
    %v395 = vld [vmem:[#allocation5 + $0x30] sm:$0xff]
    %v396 = vld [vmem:[#allocation5 + $0x38] sm:$0xff]
    %v397 = vld [vmem:[#allocation5 + $0x40] sm:$0xff]
    %v398 = vld [vmem:[#allocation5 + $0x48] sm:$0xff]
    %v399 = vld [vmem:[#allocation5 + $0x50] sm:$0xff]
    %v400 = vld [vmem:[#allocation5 + $0x58] sm:$0xff]
    %v401 = vld [vmem:[#allocation5 + $0x60] sm:$0xff]
    %v402 = vld [vmem:[#allocation5 + $0x68] sm:$0xff]
    %v403 = vld [vmem:[#allocation5 + $0x70] sm:$0xff]
    %v404 = vld [vmem:[#allocation5 + $0x78] sm:$0xff]
    %v405 = vld [vmem:[#allocation5 + $0x80] sm:$0xff]
    %v406 = vld [vmem:[#allocation5 + $0x88] sm:$0xff]
    %v407 = vld [vmem:[#allocation5 + $0x90] sm:$0xff]
    %v408 = vld [vmem:[#allocation5 + $0x98] sm:$0xff]
    %v409 = vld [vmem:[#allocation5 + $0xa0] sm:$0xff]
    %v410 = vld [vmem:[#allocation5 + $0xa8] sm:$0xff]
    %v411 = vld [vmem:[#allocation5 + $0xb0] sm:$0xff]
    %v412 = vld [vmem:[#allocation5 + $0xb8] sm:$0xff]
    %v413 = vld [vmem:[#allocation5 + $0xc0] sm:$0xff]
    %v414 = vld [vmem:[#allocation5 + $0xc8] sm:$0xff]
    %v415 = vld [vmem:[#allocation5 + $0xd0] sm:$0xff]
    %v416 = vld [vmem:[#allocation5 + $0xd8] sm:$0xff]
    %v417 = vld [vmem:[#allocation5 + $0xe0] sm:$0xff]
    %v418 = vld [vmem:[#allocation5 + $0xe8] sm:$0xff]
    %v419 = vld [vmem:[#allocation5 + $0xf0] sm:$0xff]
    %v420 = vld [vmem:[#allocation5 + $0xf8] sm:$0xff]
    %v421 = vld [vmem:[#allocation5 + $0x100] sm:$0xff]
    %v422 = vld [vmem:[#allocation5 + $0x108] sm:$0xff]
    %v423 = vld [vmem:[#allocation5 + $0x110] sm:$0xff]
    %v424 = vld [vmem:[#allocation5 + $0x118] sm:$0xff]
    %v425 = vld [vmem:[#allocation5 + $0x120] sm:$0xff]
    %v426 = vld [vmem:[#allocation5 + $0x128] sm:$0xff]
    %v427 = vld [vmem:[#allocation5 + $0x130] sm:$0xff]
    %v428 = vld [vmem:[#allocation5 + $0x138] sm:$0xff]
    %v429 = vld [vmem:[#allocation5 + $0x140] sm:$0xff]
    %v430 = vld [vmem:[#allocation5 + $0x148] sm:$0xff]
    %v431 = vld [vmem:[#allocation5 + $0x150] sm:$0xff]
    %v432 = vld [vmem:[#allocation5 + $0x158] sm:$0xff]
    %v433 = vld [vmem:[#allocation5 + $0x160] sm:$0xff]
    %v434 = vld [vmem:[#allocation5 + $0x168] sm:$0xff]
    %v435 = vld [vmem:[#allocation5 + $0x170] sm:$0xff]
    %v436 = vld [vmem:[#allocation5 + $0x178] sm:$0xff]
    %v437 = vld [vmem:[#allocation5 + $0x180] sm:$0xff]
    %v438 = vld [vmem:[#allocation5 + $0x188] sm:$0xff]
    %v439 = vld [vmem:[#allocation5 + $0x190] sm:$0xff]
    %v440 = vld [vmem:[#allocation5 + $0x198] sm:$0xff]
    %v441 = vld [vmem:[#allocation5 + $0x1a0] sm:$0xff]
    %v442 = vld [vmem:[#allocation5 + $0x1a8] sm:$0xff]
    %v443 = vld [vmem:[#allocation5 + $0x1b0] sm:$0xff]
    %v444 = vld [vmem:[#allocation5 + $0x1b8] sm:$0xff]
    %v445 = vld [vmem:[#allocation5 + $0x1c0] sm:$0xff]
    %v446 = vld [vmem:[#allocation5 + $0x1c8] sm:$0xff]
    %v447 = vld [vmem:[#allocation5 + $0x1d0] sm:$0xff]
    %v448 = vld [vmem:[#allocation5 + $0x1d8] sm:$0xff]
    %v449 = vld [vmem:[#allocation5 + $0x1e0] sm:$0xff]
    %v450 = vld [vmem:[#allocation5 + $0x1e8] sm:$0xff]
    %v451 = vld [vmem:[#allocation5 + $0x1f0] sm:$0xff]
    %v452 = vld [vmem:[#allocation5 + $0x1f8] sm:$0xff]
    %v453 = vld [vmem:[#allocation5 + $0x200] sm:$0xff]
    %v454 = vld [vmem:[#allocation5 + $0x208] sm:$0xff]
    %v455 = vld [vmem:[#allocation5 + $0x210] sm:$0xff]
    %v456 = vld [vmem:[#allocation5 + $0x218] sm:$0xff]
    %v457 = vld [vmem:[#allocation5 + $0x220] sm:$0xff]
    %v458 = vld [vmem:[#allocation5 + $0x228] sm:$0xff]
    %v459 = vld [vmem:[#allocation5 + $0x230] sm:$0xff]
    %v460 = vld [vmem:[#allocation5 + $0x238] sm:$0xff]
    %v461 = vld [vmem:[#allocation5 + $0x240] sm:$0xff]
    %v462 = vld [vmem:[#allocation5 + $0x248] sm:$0xff]
    %v463 = vld [vmem:[#allocation5 + $0x250] sm:$0xff]
    %v464 = vld [vmem:[#allocation5 + $0x258] sm:$0xff]
    %v465 = vld [vmem:[#allocation5 + $0x260] sm:$0xff]
    %v466 = vld [vmem:[#allocation5 + $0x268] sm:$0xff]
    %v467 = vld [vmem:[#allocation5 + $0x270] sm:$0xff]
    %v468 = vld [vmem:[#allocation5 + $0x278] sm:$0xff]
    %v469 = vld [vmem:[#allocation5 + $0x280] sm:$0xff]
    %v470 = vld [vmem:[#allocation5 + $0x288] sm:$0xff]
    %v471 = vld [vmem:[#allocation5 + $0x290] sm:$0xff]
    %v472 = vld [vmem:[#allocation5 + $0x298] sm:$0xff]
    %v473 = vld [vmem:[#allocation5 + $0x2a0] sm:$0xff]
    %v474 = vld [vmem:[#allocation5 + $0x2a8] sm:$0xff]
    %v475 = vld [vmem:[#allocation5 + $0x2b0] sm:$0xff]
    %v476 = vld [vmem:[#allocation5 + $0x2b8] sm:$0xff]
    %v477 = vld [vmem:[#allocation5 + $0x2c0] sm:$0xff]
    %v478 = vld [vmem:[#allocation5 + $0x2c8] sm:$0xff]
    %v479 = vld [vmem:[#allocation5 + $0x2d0] sm:$0xff]
    %v480 = vld [vmem:[#allocation5 + $0x2d8] sm:$0xff]
    %v481 = vld [vmem:[#allocation5 + $0x2e0] sm:$0xff]
    %v482 = vld [vmem:[#allocation5 + $0x2e8] sm:$0xff]
    %v483 = vld [vmem:[#allocation5 + $0x2f0] sm:$0xff]
    %v484 = vld [vmem:[#allocation5 + $0x2f8] sm:$0xff]
    %v485 = vld [vmem:[#allocation5 + $0x300] sm:$0xff]
    %v486 = vld [vmem:[#allocation5 + $0x308] sm:$0xff]
    %v487 = vld [vmem:[#allocation5 + $0x310] sm:$0xff]
    %v488 = vld [vmem:[#allocation5 + $0x318] sm:$0xff]
    %v489 = vld [vmem:[#allocation5 + $0x320] sm:$0xff]
    %v490 = vld [vmem:[#allocation5 + $0x328] sm:$0xff]
    %v491 = vld [vmem:[#allocation5 + $0x330] sm:$0xff]
    %v492 = vld [vmem:[#allocation5 + $0x338] sm:$0xff]
    %v493 = vld [vmem:[#allocation5 + $0x340] sm:$0xff]
    %v494 = vld [vmem:[#allocation5 + $0x348] sm:$0xff]
    %v495 = vld [vmem:[#allocation5 + $0x350] sm:$0xff]
    %v496 = vld [vmem:[#allocation5 + $0x358] sm:$0xff]
    %v497 = vld [vmem:[#allocation5 + $0x360] sm:$0xff]
    %v498 = vld [vmem:[#allocation5 + $0x368] sm:$0xff]
    %v499 = vld [vmem:[#allocation5 + $0x370] sm:$0xff]
    %v500 = vld [vmem:[#allocation5 + $0x378] sm:$0xff]
    %v501 = vld [vmem:[#allocation5 + $0x380] sm:$0xff]
    %v502 = vld [vmem:[#allocation5 + $0x388] sm:$0xff]
    %v503 = vld [vmem:[#allocation5 + $0x390] sm:$0xff]
    %v504 = vld [vmem:[#allocation5 + $0x398] sm:$0xff]
    %v505 = vld [vmem:[#allocation5 + $0x3a0] sm:$0xff]
    %v506 = vld [vmem:[#allocation5 + $0x3a8] sm:$0xff]
    %v507 = vld [vmem:[#allocation5 + $0x3b0] sm:$0xff]
    %v508 = vld [vmem:[#allocation5 + $0x3b8] sm:$0xff]
    %v509 = vld [vmem:[#allocation5 + $0x3c0] sm:$0xff]
    %v510 = vld [vmem:[#allocation5 + $0x3c8] sm:$0xff]
    %v511 = vld [vmem:[#allocation5 + $0x3d0] sm:$0xff]
    %v512 = vld [vmem:[#allocation5 + $0x3d8] sm:$0xff]
    %v513 = vld [vmem:[#allocation5 + $0x3e0] sm:$0xff]
    %v514 = vld [vmem:[#allocation5 + $0x3e8] sm:$0xff]
    %v515 = vld [vmem:[#allocation5 + $0x3f0] sm:$0xff]
    %v516 = vld [vmem:[#allocation5 + $0x3f8] sm:$0xff]
    %v517 = vld [vmem:[#allocation5 + $0x400] sm:$0xff]
    %v518 = vld [vmem:[#allocation5 + $0x408] sm:$0xff]
    %v519 = vld [vmem:[#allocation5 + $0x410] sm:$0xff]
    %v520 = vld [vmem:[#allocation5 + $0x418] sm:$0xff]
    %v521 = vld [vmem:[#allocation5 + $0x420] sm:$0xff]
    %v522 = vld [vmem:[#allocation5 + $0x428] sm:$0xff]
    %v523 = vld [vmem:[#allocation5 + $0x430] sm:$0xff]
    %v524 = vld [vmem:[#allocation5 + $0x438] sm:$0xff]
    %v525 = vld [vmem:[#allocation5 + $0x440] sm:$0xff]
    %v526 = vld [vmem:[#allocation5 + $0x448] sm:$0xff]
    %v527 = vld [vmem:[#allocation5 + $0x450] sm:$0xff]
    %v528 = vld [vmem:[#allocation5 + $0x458] sm:$0xff]
    %v529 = vld [vmem:[#allocation5 + $0x460] sm:$0xff]
    %v530 = vld [vmem:[#allocation5 + $0x468] sm:$0xff]
    %v531 = vld [vmem:[#allocation5 + $0x470] sm:$0xff]
    %v532 = vld [vmem:[#allocation5 + $0x478] sm:$0xff]
    %v533 = vld [vmem:[#allocation5 + $0x480] sm:$0xff]
    %v534 = vld [vmem:[#allocation5 + $0x488] sm:$0xff]
    %v535 = vld [vmem:[#allocation5 + $0x490] sm:$0xff]
    %v536 = vld [vmem:[#allocation5 + $0x498] sm:$0xff]
    %v537 = vld [vmem:[#allocation5 + $0x4a0] sm:$0xff]
    %v538 = vld [vmem:[#allocation5 + $0x4a8] sm:$0xff]
    %v539 = vld [vmem:[#allocation5 + $0x4b0] sm:$0xff]
    %v540 = vld [vmem:[#allocation5 + $0x4b8] sm:$0xff]
    %v541 = vld [vmem:[#allocation5 + $0x4c0] sm:$0xff]
    %v542 = vld [vmem:[#allocation5 + $0x4c8] sm:$0xff]
    %v543 = vld [vmem:[#allocation5 + $0x4d0] sm:$0xff]
    %v544 = vld [vmem:[#allocation5 + $0x4d8] sm:$0xff]
    %v545 = vld [vmem:[#allocation5 + $0x4e0] sm:$0xff]
    %v546 = vld [vmem:[#allocation5 + $0x4e8] sm:$0xff]
    %v547 = vld [vmem:[#allocation5 + $0x4f0] sm:$0xff]
    %v548 = vld [vmem:[#allocation5 + $0x4f8] sm:$0xff]
    %v549 = vld [vmem:[#allocation5 + $0x500] sm:$0xff]
    %v550 = vld [vmem:[#allocation5 + $0x508] sm:$0xff]
    %v551 = vld [vmem:[#allocation5 + $0x510] sm:$0xff]
    %v552 = vld [vmem:[#allocation5 + $0x518] sm:$0xff]
    %v553 = vld [vmem:[#allocation5 + $0x520] sm:$0xff]
    %v554 = vld [vmem:[#allocation5 + $0x528] sm:$0xff]
    %v555 = vld [vmem:[#allocation5 + $0x530] sm:$0xff]
    %v556 = vld [vmem:[#allocation5 + $0x538] sm:$0xff]
    %v557 = vld [vmem:[#allocation5 + $0x540] sm:$0xff]
    %v558 = vld [vmem:[#allocation5 + $0x548] sm:$0xff]
    %v559 = vld [vmem:[#allocation5 + $0x550] sm:$0xff]
    %v560 = vld [vmem:[#allocation5 + $0x558] sm:$0xff]
    %v561 = vld [vmem:[#allocation5 + $0x560] sm:$0xff]
    %v562 = vld [vmem:[#allocation5 + $0x568] sm:$0xff]
    %v563 = vld [vmem:[#allocation5 + $0x570] sm:$0xff]
    %v564 = vld [vmem:[#allocation5 + $0x578] sm:$0xff]
    %v565 = vld [vmem:[#allocation5 + $0x580] sm:$0xff]
    %v566 = vld [vmem:[#allocation5 + $0x588] sm:$0xff]
    %v567 = vld [vmem:[#allocation5 + $0x590] sm:$0xff]
    %v568 = vld [vmem:[#allocation5 + $0x598] sm:$0xff]
    %v569 = vld [vmem:[#allocation5 + $0x5a0] sm:$0xff]
    %v570 = vld [vmem:[#allocation5 + $0x5a8] sm:$0xff]
    %v571 = vld [vmem:[#allocation5 + $0x5b0] sm:$0xff]
    %v572 = vld [vmem:[#allocation5 + $0x5b8] sm:$0xff]
    %v573 = vld [vmem:[#allocation5 + $0x5c0] sm:$0xff]
    %v574 = vld [vmem:[#allocation5 + $0x5c8] sm:$0xff]
    %v575 = vld [vmem:[#allocation5 + $0x5d0] sm:$0xff]
    %v576 = vld [vmem:[#allocation5 + $0x5d8] sm:$0xff]
    %v577 = vld [vmem:[#allocation5 + $0x5e0] sm:$0xff]
    %v578 = vld [vmem:[#allocation5 + $0x5e8] sm:$0xff]
    %v579 = vld [vmem:[#allocation5 + $0x5f0] sm:$0xff]
    %v580 = vld [vmem:[#allocation5 + $0x5f8] sm:$0xff]
    %v581 = vld [vmem:[#allocation5 + $0x600] sm:$0xff]
    %v582 = vld [vmem:[#allocation5 + $0x608] sm:$0xff]
    %v583 = vld [vmem:[#allocation5 + $0x610] sm:$0xff]
    %v584 = vld [vmem:[#allocation5 + $0x618] sm:$0xff]
    %v585 = vld [vmem:[#allocation5 + $0x620] sm:$0xff]
    %v586 = vld [vmem:[#allocation5 + $0x628] sm:$0xff]
    %v587 = vld [vmem:[#allocation5 + $0x630] sm:$0xff]
    %v588 = vld [vmem:[#allocation5 + $0x638] sm:$0xff]
    %v589 = vld [vmem:[#allocation5 + $0x640] sm:$0xff]
    %v590 = vld [vmem:[#allocation5 + $0x648] sm:$0xff]
    %v591 = vld [vmem:[#allocation5 + $0x650] sm:$0xff]
    %v592 = vld [vmem:[#allocation5 + $0x658] sm:$0xff]
    %v593 = vld [vmem:[#allocation5 + $0x660] sm:$0xff]
    %v594 = vld [vmem:[#allocation5 + $0x668] sm:$0xff]
    %v595 = vld [vmem:[#allocation5 + $0x670] sm:$0xff]
    %v596 = vld [vmem:[#allocation5 + $0x678] sm:$0xff]
    %v597 = vld [vmem:[#allocation5 + $0x680] sm:$0xff]
    %v598 = vld [vmem:[#allocation5 + $0x688] sm:$0xff]
    %v599 = vld [vmem:[#allocation5 + $0x690] sm:$0xff]
    %v600 = vld [vmem:[#allocation5 + $0x698] sm:$0xff]
    %v601 = vld [vmem:[#allocation5 + $0x6a0] sm:$0xff]
    %v602 = vld [vmem:[#allocation5 + $0x6a8] sm:$0xff]
    %v603 = vld [vmem:[#allocation5 + $0x6b0] sm:$0xff]
    %v604 = vld [vmem:[#allocation5 + $0x6b8] sm:$0xff]
    %v605 = vld [vmem:[#allocation5 + $0x6c0] sm:$0xff]
    %v606 = vld [vmem:[#allocation5 + $0x6c8] sm:$0xff]
    %v607 = vld [vmem:[#allocation5 + $0x6d0] sm:$0xff]
    %v608 = vld [vmem:[#allocation5 + $0x6d8] sm:$0xff]
    %v609 = vld [vmem:[#allocation5 + $0x6e0] sm:$0xff]
    %v610 = vld [vmem:[#allocation5 + $0x6e8] sm:$0xff]
    %v611 = vld [vmem:[#allocation5 + $0x6f0] sm:$0xff]
    %v612 = vld [vmem:[#allocation5 + $0x6f8] sm:$0xff]
    %v613 = vld [vmem:[#allocation5 + $0x700] sm:$0xff]
    %v614 = vld [vmem:[#allocation5 + $0x708] sm:$0xff]
    %v615 = vld [vmem:[#allocation5 + $0x710] sm:$0xff]
    %v616 = vld [vmem:[#allocation5 + $0x718] sm:$0xff]
    %v617 = vld [vmem:[#allocation5 + $0x720] sm:$0xff]
    %v618 = vld [vmem:[#allocation5 + $0x728] sm:$0xff]
    %v619 = vld [vmem:[#allocation5 + $0x730] sm:$0xff]
    %v620 = vld [vmem:[#allocation5 + $0x738] sm:$0xff]
    %v621 = vld [vmem:[#allocation5 + $0x740] sm:$0xff]
    %v622 = vld [vmem:[#allocation5 + $0x748] sm:$0xff]
    %v623 = vld [vmem:[#allocation5 + $0x750] sm:$0xff]
    %v624 = vld [vmem:[#allocation5 + $0x758] sm:$0xff]
    %v625 = vld [vmem:[#allocation5 + $0x760] sm:$0xff]
    %v626 = vld [vmem:[#allocation5 + $0x768] sm:$0xff]
    %v627 = vld [vmem:[#allocation5 + $0x770] sm:$0xff]
    %v628 = vld [vmem:[#allocation5 + $0x778] sm:$0xff]
    %v629 = vld [vmem:[#allocation5 + $0x780] sm:$0xff]
    %v630 = vld [vmem:[#allocation5 + $0x788] sm:$0xff]
    %v631 = vld [vmem:[#allocation5 + $0x790] sm:$0xff]
    %v632 = vld [vmem:[#allocation5 + $0x798] sm:$0xff]
    %v633 = vld [vmem:[#allocation5 + $0x7a0] sm:$0xff]
    %v634 = vld [vmem:[#allocation5 + $0x7a8] sm:$0xff]
    %v635 = vld [vmem:[#allocation5 + $0x7b0] sm:$0xff]
    %v636 = vld [vmem:[#allocation5 + $0x7b8] sm:$0xff]
    %v637 = vld [vmem:[#allocation5 + $0x7c0] sm:$0xff]
    %v638 = vld [vmem:[#allocation5 + $0x7c8] sm:$0xff]
    %v639 = vld [vmem:[#allocation5 + $0x7d0] sm:$0xff]
    %v640 = vld [vmem:[#allocation5 + $0x7d8] sm:$0xff]
    %v641 = vld [vmem:[#allocation5 + $0x7e0] sm:$0xff]
    %v642 = vld [vmem:[#allocation5 + $0x7e8] sm:$0xff]
    %v643 = vld [vmem:[#allocation5 + $0x7f0] sm:$0xff]
    %v644 = vld [vmem:[#allocation5 + $0x7f8] sm:$0xff]
    %v645 = vld [vmem:[#allocation5 + $0x800] sm:$0xff]
    %v646 = vld [vmem:[#allocation5 + $0x808] sm:$0xff]
    %v647 = vld [vmem:[#allocation5 + $0x810] sm:$0xff]
    %v648 = vld [vmem:[#allocation5 + $0x818] sm:$0xff]
    %v649 = vld [vmem:[#allocation5 + $0x820] sm:$0xff]
    %v650 = vld [vmem:[#allocation5 + $0x828] sm:$0xff]
    %v651 = vld [vmem:[#allocation5 + $0x830] sm:$0xff]
    %v652 = vld [vmem:[#allocation5 + $0x838] sm:$0xff]
    %v653 = vld [vmem:[#allocation5 + $0x840] sm:$0xff]
    %v654 = vld [vmem:[#allocation5 + $0x848] sm:$0xff]
    %v655 = vld [vmem:[#allocation5 + $0x850] sm:$0xff]
    %v656 = vld [vmem:[#allocation5 + $0x858] sm:$0xff]
    %v657 = vld [vmem:[#allocation5 + $0x860] sm:$0xff]
    %v658 = vld [vmem:[#allocation5 + $0x868] sm:$0xff]
    %v659 = vld [vmem:[#allocation5 + $0x870] sm:$0xff]
    %v660 = vld [vmem:[#allocation5 + $0x878] sm:$0xff]
    %v661 = vld [vmem:[#allocation5 + $0x880] sm:$0xff]
    %v662 = vld [vmem:[#allocation5 + $0x888] sm:$0xff]
    %v663 = vld [vmem:[#allocation5 + $0x890] sm:$0xff]
    %v664 = vld [vmem:[#allocation5 + $0x898] sm:$0xff]
    %v665 = vld [vmem:[#allocation5 + $0x8a0] sm:$0xff]
    %v666 = vld [vmem:[#allocation5 + $0x8a8] sm:$0xff]
    %v667 = vld [vmem:[#allocation5 + $0x8b0] sm:$0xff]
    %v668 = vld [vmem:[#allocation5 + $0x8b8] sm:$0xff]
    %v669 = vld [vmem:[#allocation5 + $0x8c0] sm:$0xff]
    %v670 = vld [vmem:[#allocation5 + $0x8c8] sm:$0xff]
    %v671 = vld [vmem:[#allocation5 + $0x8d0] sm:$0xff]
    %v672 = vld [vmem:[#allocation5 + $0x8d8] sm:$0xff]
    %v673 = vld [vmem:[#allocation5 + $0x8e0] sm:$0xff]
    %v674 = vld [vmem:[#allocation5 + $0x8e8] sm:$0xff]
    %v675 = vld [vmem:[#allocation5 + $0x8f0] sm:$0xff]
    %v676 = vld [vmem:[#allocation5 + $0x8f8] sm:$0xff]
    %v677 = vld [vmem:[#allocation5 + $0x900] sm:$0xff]
    %v678 = vld [vmem:[#allocation5 + $0x908] sm:$0xff]
    %v679 = vld [vmem:[#allocation5 + $0x910] sm:$0xff]
    %v680 = vld [vmem:[#allocation5 + $0x918] sm:$0xff]
    %v681 = vld [vmem:[#allocation5 + $0x920] sm:$0xff]
    %v682 = vld [vmem:[#allocation5 + $0x928] sm:$0xff]
    %v683 = vld [vmem:[#allocation5 + $0x930] sm:$0xff]
    %v684 = vld [vmem:[#allocation5 + $0x938] sm:$0xff]
    %v685 = vld [vmem:[#allocation5 + $0x940] sm:$0xff]
    %v686 = vld [vmem:[#allocation5 + $0x948] sm:$0xff]
    %v687 = vld [vmem:[#allocation5 + $0x950] sm:$0xff]
    %v688 = vld [vmem:[#allocation5 + $0x958] sm:$0xff]
    %v689 = vld [vmem:[#allocation5 + $0x960] sm:$0xff]
    %v690 = vld [vmem:[#allocation5 + $0x968] sm:$0xff]
    %v691 = vld [vmem:[#allocation5 + $0x970] sm:$0xff]
    %v692 = vld [vmem:[#allocation5 + $0x978] sm:$0xff]
    %v693 = vld [vmem:[#allocation5 + $0x980] sm:$0xff]
    %v694 = vld [vmem:[#allocation5 + $0x988] sm:$0xff]
    %v695 = vld [vmem:[#allocation5 + $0x990] sm:$0xff]
    %v696 = vld [vmem:[#allocation5 + $0x998] sm:$0xff]
    %v697 = vld [vmem:[#allocation5 + $0x9a0] sm:$0xff]
    %v698 = vld [vmem:[#allocation5 + $0x9a8] sm:$0xff]
    %v699 = vld [vmem:[#allocation5 + $0x9b0] sm:$0xff]
    %v700 = vld [vmem:[#allocation5 + $0x9b8] sm:$0xff]
    %v701 = vld [vmem:[#allocation5 + $0x9c0] sm:$0xff]
    %v702 = vld [vmem:[#allocation5 + $0x9c8] sm:$0xff]
    %v703 = vld [vmem:[#allocation5 + $0x9d0] sm:$0xff]
    %v704 = vld [vmem:[#allocation5 + $0x9d8] sm:$0xff]
    %v705 = vld [vmem:[#allocation5 + $0x9e0] sm:$0xff]
    %v706 = vld [vmem:[#allocation5 + $0x9e8] sm:$0xff]
    %v707 = vld [vmem:[#allocation5 + $0x9f0] sm:$0xff]
    %v708 = vld [vmem:[#allocation5 + $0x9f8] sm:$0xff]
    %v709 = vld [vmem:[#allocation5 + $0xa00] sm:$0xff]
    %v710 = vld [vmem:[#allocation5 + $0xa08] sm:$0xff]
    %v711 = vld [vmem:[#allocation5 + $0xa10] sm:$0xff]
    %v712 = vld [vmem:[#allocation5 + $0xa18] sm:$0xff]
    %v713 = vld [vmem:[#allocation5 + $0xa20] sm:$0xff]
    %v714 = vld [vmem:[#allocation5 + $0xa28] sm:$0xff]
    %v715 = vld [vmem:[#allocation5 + $0xa30] sm:$0xff]
    %v716 = vld [vmem:[#allocation5 + $0xa38] sm:$0xff]
    %v717 = vld [vmem:[#allocation5 + $0xa40] sm:$0xff]
    %v718 = vld [vmem:[#allocation5 + $0xa48] sm:$0xff]
    %v719 = vld [vmem:[#allocation5 + $0xa50] sm:$0xff]
    %v720 = vld [vmem:[#allocation5 + $0xa58] sm:$0xff]
    %v721 = vld [vmem:[#allocation5 + $0xa60] sm:$0xff]
    %v722 = vld [vmem:[#allocation5 + $0xa68] sm:$0xff]
    %v723 = vld [vmem:[#allocation5 + $0xa70] sm:$0xff]
    %v724 = vld [vmem:[#allocation5 + $0xa78] sm:$0xff]
    %v725 = vld [vmem:[#allocation5 + $0xa80] sm:$0xff]
    %v726 = vld [vmem:[#allocation5 + $0xa88] sm:$0xff]
    %v727 = vld [vmem:[#allocation5 + $0xa90] sm:$0xff]
    %v728 = vld [vmem:[#allocation5 + $0xa98] sm:$0xff]
    %v729 = vld [vmem:[#allocation5 + $0xaa0] sm:$0xff]
    %v730 = vld [vmem:[#allocation5 + $0xaa8] sm:$0xff]
    %v731 = vld [vmem:[#allocation5 + $0xab0] sm:$0xff]
    %v732 = vld [vmem:[#allocation5 + $0xab8] sm:$0xff]
    %v733 = vld [vmem:[#allocation5 + $0xac0] sm:$0xff]
    %v734 = vld [vmem:[#allocation5 + $0xac8] sm:$0xff]
    %v735 = vld [vmem:[#allocation5 + $0xad0] sm:$0xff]
    %v736 = vld [vmem:[#allocation5 + $0xad8] sm:$0xff]
    %v737 = vld [vmem:[#allocation5 + $0xae0] sm:$0xff]
    %v738 = vld [vmem:[#allocation5 + $0xae8] sm:$0xff]
    %v739 = vld [vmem:[#allocation5 + $0xaf0] sm:$0xff]
    %v740 = vld [vmem:[#allocation5 + $0xaf8] sm:$0xff]
    %v741 = vld [vmem:[#allocation5 + $0xb00] sm:$0xff]
    %v742 = vld [vmem:[#allocation5 + $0xb08] sm:$0xff]
    %v743 = vld [vmem:[#allocation5 + $0xb10] sm:$0xff]
    %v744 = vld [vmem:[#allocation5 + $0xb18] sm:$0xff]
    %v745 = vld [vmem:[#allocation5 + $0xb20] sm:$0xff]
    %v746 = vld [vmem:[#allocation5 + $0xb28] sm:$0xff]
    %v747 = vld [vmem:[#allocation5 + $0xb30] sm:$0xff]
    %v748 = vld [vmem:[#allocation5 + $0xb38] sm:$0xff]
    %v749 = vld [vmem:[#allocation5 + $0xb40] sm:$0xff]
    %v750 = vld [vmem:[#allocation5 + $0xb48] sm:$0xff]
    %v751 = vld [vmem:[#allocation5 + $0xb50] sm:$0xff]
    %v752 = vld [vmem:[#allocation5 + $0xb58] sm:$0xff]
    %v753 = vld [vmem:[#allocation5 + $0xb60] sm:$0xff]
    %v754 = vld [vmem:[#allocation5 + $0xb68] sm:$0xff]
    %v755 = vld [vmem:[#allocation5 + $0xb70] sm:$0xff]
    %v756 = vld [vmem:[#allocation5 + $0xb78] sm:$0xff]
    %v757 = vld [vmem:[#allocation5 + $0xb80] sm:$0xff]
    %v758 = vld [vmem:[#allocation5 + $0xb88] sm:$0xff]
    %v759 = vld [vmem:[#allocation5 + $0xb90] sm:$0xff]
    %v760 = vld [vmem:[#allocation5 + $0xb98] sm:$0xff]
    %v761 = vld [vmem:[#allocation5 + $0xba0] sm:$0xff]
    %v762 = vld [vmem:[#allocation5 + $0xba8] sm:$0xff]
    %v763 = vld [vmem:[#allocation5 + $0xbb0] sm:$0xff]
    %v764 = vld [vmem:[#allocation5 + $0xbb8] sm:$0xff]
    %v765 = vld [vmem:[#allocation5 + $0xbc0] sm:$0xff]
    %v766 = vld [vmem:[#allocation5 + $0xbc8] sm:$0xff]
    %v767 = vld [vmem:[#allocation5 + $0xbd0] sm:$0xff]
    %v768 = vld [vmem:[#allocation5 + $0xbd8] sm:$0xff]
    %v769 = vld [vmem:[#allocation5 + $0xbe0] sm:$0xff]
    %v770 = vld [vmem:[#allocation5 + $0xbe8] sm:$0xff]
    %v771 = vld [vmem:[#allocation5 + $0xbf0] sm:$0xff]
    %v772 = vld [vmem:[#allocation5 + $0xbf8] sm:$0xff]
    %v1157 = vunpack.c.l.b16 %v389
    %v1158 = vunpack.c.h.b16 %v389
    %v1159 = vunpack.c.l.b16 %v390
    %v1160 = vunpack.c.h.b16 %v390
    %v1161 = vunpack.c.l.b16 %v391
    %v1162 = vunpack.c.h.b16 %v391
    %v1163 = vunpack.c.l.b16 %v392
    %v1164 = vunpack.c.h.b16 %v392
    %v1165 = vunpack.c.l.b16 %v393
    %v1166 = vunpack.c.h.b16 %v393
    %v1167 = vunpack.c.l.b16 %v394
    %v1168 = vunpack.c.h.b16 %v394
    %v1169 = vunpack.c.l.b16 %v395
    %v1170 = vunpack.c.h.b16 %v395
    %v1171 = vunpack.c.l.b16 %v396
    %v1172 = vunpack.c.h.b16 %v396
    %v1173 = vunpack.c.l.b16 %v397
    %v1174 = vunpack.c.h.b16 %v397
    %v1175 = vunpack.c.l.b16 %v398
    %v1176 = vunpack.c.h.b16 %v398
    %v1177 = vunpack.c.l.b16 %v399
    %v1178 = vunpack.c.h.b16 %v399
    %v1179 = vunpack.c.l.b16 %v400
    %v1180 = vunpack.c.h.b16 %v400
    %v1181 = vunpack.c.l.b16 %v401
    %v1182 = vunpack.c.h.b16 %v401
    %v1183 = vunpack.c.l.b16 %v402
    %v1184 = vunpack.c.h.b16 %v402
    %v1185 = vunpack.c.l.b16 %v403
    %v1186 = vunpack.c.h.b16 %v403
    %v1187 = vunpack.c.l.b16 %v404
    %v1188 = vunpack.c.h.b16 %v404
    %v1189 = vunpack.c.l.b16 %v405
    %v1190 = vunpack.c.h.b16 %v405
    %v1191 = vunpack.c.l.b16 %v406
    %v1192 = vunpack.c.h.b16 %v406
    %v1193 = vunpack.c.l.b16 %v407
    %v1194 = vunpack.c.h.b16 %v407
    %v1195 = vunpack.c.l.b16 %v408
    %v1196 = vunpack.c.h.b16 %v408
    %v1197 = vunpack.c.l.b16 %v409
    %v1198 = vunpack.c.h.b16 %v409
    %v1199 = vunpack.c.l.b16 %v410
    %v1200 = vunpack.c.h.b16 %v410
    %v1201 = vunpack.c.l.b16 %v411
    %v1202 = vunpack.c.h.b16 %v411
    %v1203 = vunpack.c.l.b16 %v412
    %v1204 = vunpack.c.h.b16 %v412
    %v1205 = vunpack.c.l.b16 %v413
    %v1206 = vunpack.c.h.b16 %v413
    %v1207 = vunpack.c.l.b16 %v414
    %v1208 = vunpack.c.h.b16 %v414
    %v1209 = vunpack.c.l.b16 %v415
    %v1210 = vunpack.c.h.b16 %v415
    %v1211 = vunpack.c.l.b16 %v416
    %v1212 = vunpack.c.h.b16 %v416
    %v1213 = vunpack.c.l.b16 %v417
    %v1214 = vunpack.c.h.b16 %v417
    %v1215 = vunpack.c.l.b16 %v418
    %v1216 = vunpack.c.h.b16 %v418
    %v1217 = vunpack.c.l.b16 %v419
    %v1218 = vunpack.c.h.b16 %v419
    %v1219 = vunpack.c.l.b16 %v420
    %v1220 = vunpack.c.h.b16 %v420
    %v1221 = vunpack.c.l.b16 %v421
    %v1222 = vunpack.c.h.b16 %v421
    %v1223 = vunpack.c.l.b16 %v422
    %v1224 = vunpack.c.h.b16 %v422
    %v1225 = vunpack.c.l.b16 %v423
    %v1226 = vunpack.c.h.b16 %v423
    %v1227 = vunpack.c.l.b16 %v424
    %v1228 = vunpack.c.h.b16 %v424
    %v1229 = vunpack.c.l.b16 %v425
    %v1230 = vunpack.c.h.b16 %v425
    %v1231 = vunpack.c.l.b16 %v426
    %v1232 = vunpack.c.h.b16 %v426
    %v1233 = vunpack.c.l.b16 %v427
    %v1234 = vunpack.c.h.b16 %v427
    %v1235 = vunpack.c.l.b16 %v428
    %v1236 = vunpack.c.h.b16 %v428
    %v1237 = vunpack.c.l.b16 %v429
    %v1238 = vunpack.c.h.b16 %v429
    %v1239 = vunpack.c.l.b16 %v430
    %v1240 = vunpack.c.h.b16 %v430
    %v1241 = vunpack.c.l.b16 %v431
    %v1242 = vunpack.c.h.b16 %v431
    %v1243 = vunpack.c.l.b16 %v432
    %v1244 = vunpack.c.h.b16 %v432
    %v1245 = vunpack.c.l.b16 %v433
    %v1246 = vunpack.c.h.b16 %v433
    %v1247 = vunpack.c.l.b16 %v434
    %v1248 = vunpack.c.h.b16 %v434
    %v1249 = vunpack.c.l.b16 %v435
    %v1250 = vunpack.c.h.b16 %v435
    %v1251 = vunpack.c.l.b16 %v436
    %v1252 = vunpack.c.h.b16 %v436
    %v1253 = vunpack.c.l.b16 %v437
    %v1254 = vunpack.c.h.b16 %v437
    %v1255 = vunpack.c.l.b16 %v438
    %v1256 = vunpack.c.h.b16 %v438
    %v1257 = vunpack.c.l.b16 %v439
    %v1258 = vunpack.c.h.b16 %v439
    %v1259 = vunpack.c.l.b16 %v440
    %v1260 = vunpack.c.h.b16 %v440
    %v1261 = vunpack.c.l.b16 %v441
    %v1262 = vunpack.c.h.b16 %v441
    %v1263 = vunpack.c.l.b16 %v442
    %v1264 = vunpack.c.h.b16 %v442
    %v1265 = vunpack.c.l.b16 %v443
    %v1266 = vunpack.c.h.b16 %v443
    %v1267 = vunpack.c.l.b16 %v444
    %v1268 = vunpack.c.h.b16 %v444
    %v1269 = vunpack.c.l.b16 %v445
    %v1270 = vunpack.c.h.b16 %v445
    %v1271 = vunpack.c.l.b16 %v446
    %v1272 = vunpack.c.h.b16 %v446
    %v1273 = vunpack.c.l.b16 %v447
    %v1274 = vunpack.c.h.b16 %v447
    %v1275 = vunpack.c.l.b16 %v448
    %v1276 = vunpack.c.h.b16 %v448
    %v1277 = vunpack.c.l.b16 %v449
    %v1278 = vunpack.c.h.b16 %v449
    %v1279 = vunpack.c.l.b16 %v450
    %v1280 = vunpack.c.h.b16 %v450
    %v1281 = vunpack.c.l.b16 %v451
    %v1282 = vunpack.c.h.b16 %v451
    %v1283 = vunpack.c.l.b16 %v452
    %v1284 = vunpack.c.h.b16 %v452
    %v1285 = vunpack.c.l.b16 %v453
    %v1286 = vunpack.c.h.b16 %v453
    %v1287 = vunpack.c.l.b16 %v454
    %v1288 = vunpack.c.h.b16 %v454
    %v1289 = vunpack.c.l.b16 %v455
    %v1290 = vunpack.c.h.b16 %v455
    %v1291 = vunpack.c.l.b16 %v456
    %v1292 = vunpack.c.h.b16 %v456
    %v1293 = vunpack.c.l.b16 %v457
    %v1294 = vunpack.c.h.b16 %v457
    %v1295 = vunpack.c.l.b16 %v458
    %v1296 = vunpack.c.h.b16 %v458
    %v1297 = vunpack.c.l.b16 %v459
    %v1298 = vunpack.c.h.b16 %v459
    %v1299 = vunpack.c.l.b16 %v460
    %v1300 = vunpack.c.h.b16 %v460
    %v1301 = vunpack.c.l.b16 %v461
    %v1302 = vunpack.c.h.b16 %v461
    %v1303 = vunpack.c.l.b16 %v462
    %v1304 = vunpack.c.h.b16 %v462
    %v1305 = vunpack.c.l.b16 %v463
    %v1306 = vunpack.c.h.b16 %v463
    %v1307 = vunpack.c.l.b16 %v464
    %v1308 = vunpack.c.h.b16 %v464
    %v1309 = vunpack.c.l.b16 %v465
    %v1310 = vunpack.c.h.b16 %v465
    %v1311 = vunpack.c.l.b16 %v466
    %v1312 = vunpack.c.h.b16 %v466
    %v1313 = vunpack.c.l.b16 %v467
    %v1314 = vunpack.c.h.b16 %v467
    %v1315 = vunpack.c.l.b16 %v468
    %v1316 = vunpack.c.h.b16 %v468
    %v1317 = vunpack.c.l.b16 %v469
    %v1318 = vunpack.c.h.b16 %v469
    %v1319 = vunpack.c.l.b16 %v470
    %v1320 = vunpack.c.h.b16 %v470
    %v1321 = vunpack.c.l.b16 %v471
    %v1322 = vunpack.c.h.b16 %v471
    %v1323 = vunpack.c.l.b16 %v472
    %v1324 = vunpack.c.h.b16 %v472
    %v1325 = vunpack.c.l.b16 %v473
    %v1326 = vunpack.c.h.b16 %v473
    %v1327 = vunpack.c.l.b16 %v474
    %v1328 = vunpack.c.h.b16 %v474
    %v1329 = vunpack.c.l.b16 %v475
    %v1330 = vunpack.c.h.b16 %v475
    %v1331 = vunpack.c.l.b16 %v476
    %v1332 = vunpack.c.h.b16 %v476
    %v1333 = vunpack.c.l.b16 %v477
    %v1334 = vunpack.c.h.b16 %v477
    %v1335 = vunpack.c.l.b16 %v478
    %v1336 = vunpack.c.h.b16 %v478
    %v1337 = vunpack.c.l.b16 %v479
    %v1338 = vunpack.c.h.b16 %v479
    %v1339 = vunpack.c.l.b16 %v480
    %v1340 = vunpack.c.h.b16 %v480
    %v1341 = vunpack.c.l.b16 %v481
    %v1342 = vunpack.c.h.b16 %v481
    %v1343 = vunpack.c.l.b16 %v482
    %v1344 = vunpack.c.h.b16 %v482
    %v1345 = vunpack.c.l.b16 %v483
    %v1346 = vunpack.c.h.b16 %v483
    %v1347 = vunpack.c.l.b16 %v484
    %v1348 = vunpack.c.h.b16 %v484
    %v1349 = vunpack.c.l.b16 %v485
    %v1350 = vunpack.c.h.b16 %v485
    %v1351 = vunpack.c.l.b16 %v486
    %v1352 = vunpack.c.h.b16 %v486
    %v1353 = vunpack.c.l.b16 %v487
    %v1354 = vunpack.c.h.b16 %v487
    %v1355 = vunpack.c.l.b16 %v488
    %v1356 = vunpack.c.h.b16 %v488
    %v1357 = vunpack.c.l.b16 %v489
    %v1358 = vunpack.c.h.b16 %v489
    %v1359 = vunpack.c.l.b16 %v490
    %v1360 = vunpack.c.h.b16 %v490
    %v1361 = vunpack.c.l.b16 %v491
    %v1362 = vunpack.c.h.b16 %v491
    %v1363 = vunpack.c.l.b16 %v492
    %v1364 = vunpack.c.h.b16 %v492
    %v1365 = vunpack.c.l.b16 %v493
    %v1366 = vunpack.c.h.b16 %v493
    %v1367 = vunpack.c.l.b16 %v494
    %v1368 = vunpack.c.h.b16 %v494
    %v1369 = vunpack.c.l.b16 %v495
    %v1370 = vunpack.c.h.b16 %v495
    %v1371 = vunpack.c.l.b16 %v496
    %v1372 = vunpack.c.h.b16 %v496
    %v1373 = vunpack.c.l.b16 %v497
    %v1374 = vunpack.c.h.b16 %v497
    %v1375 = vunpack.c.l.b16 %v498
    %v1376 = vunpack.c.h.b16 %v498
    %v1377 = vunpack.c.l.b16 %v499
    %v1378 = vunpack.c.h.b16 %v499
    %v1379 = vunpack.c.l.b16 %v500
    %v1380 = vunpack.c.h.b16 %v500
    %v1381 = vunpack.c.l.b16 %v501
    %v1382 = vunpack.c.h.b16 %v501
    %v1383 = vunpack.c.l.b16 %v502
    %v1384 = vunpack.c.h.b16 %v502
    %v1385 = vunpack.c.l.b16 %v503
    %v1386 = vunpack.c.h.b16 %v503
    %v1387 = vunpack.c.l.b16 %v504
    %v1388 = vunpack.c.h.b16 %v504
    %v1389 = vunpack.c.l.b16 %v505
    %v1390 = vunpack.c.h.b16 %v505
    %v1391 = vunpack.c.l.b16 %v506
    %v1392 = vunpack.c.h.b16 %v506
    %v1393 = vunpack.c.l.b16 %v507
    %v1394 = vunpack.c.h.b16 %v507
    %v1395 = vunpack.c.l.b16 %v508
    %v1396 = vunpack.c.h.b16 %v508
    %v1397 = vunpack.c.l.b16 %v509
    %v1398 = vunpack.c.h.b16 %v509
    %v1399 = vunpack.c.l.b16 %v510
    %v1400 = vunpack.c.h.b16 %v510
    %v1401 = vunpack.c.l.b16 %v511
    %v1402 = vunpack.c.h.b16 %v511
    %v1403 = vunpack.c.l.b16 %v512
    %v1404 = vunpack.c.h.b16 %v512
    %v1405 = vunpack.c.l.b16 %v513
    %v1406 = vunpack.c.h.b16 %v513
    %v1407 = vunpack.c.l.b16 %v514
    %v1408 = vunpack.c.h.b16 %v514
    %v1409 = vunpack.c.l.b16 %v515
    %v1410 = vunpack.c.h.b16 %v515
    %v1411 = vunpack.c.l.b16 %v516
    %v1412 = vunpack.c.h.b16 %v516
    %v1413 = vunpack.c.l.b16 %v517
    %v1414 = vunpack.c.h.b16 %v517
    %v1415 = vunpack.c.l.b16 %v518
    %v1416 = vunpack.c.h.b16 %v518
    %v1417 = vunpack.c.l.b16 %v519
    %v1418 = vunpack.c.h.b16 %v519
    %v1419 = vunpack.c.l.b16 %v520
    %v1420 = vunpack.c.h.b16 %v520
    %v1421 = vunpack.c.l.b16 %v521
    %v1422 = vunpack.c.h.b16 %v521
    %v1423 = vunpack.c.l.b16 %v522
    %v1424 = vunpack.c.h.b16 %v522
    %v1425 = vunpack.c.l.b16 %v523
    %v1426 = vunpack.c.h.b16 %v523
    %v1427 = vunpack.c.l.b16 %v524
    %v1428 = vunpack.c.h.b16 %v524
    %v1429 = vunpack.c.l.b16 %v525
    %v1430 = vunpack.c.h.b16 %v525
    %v1431 = vunpack.c.l.b16 %v526
    %v1432 = vunpack.c.h.b16 %v526
    %v1433 = vunpack.c.l.b16 %v527
    %v1434 = vunpack.c.h.b16 %v527
    %v1435 = vunpack.c.l.b16 %v528
    %v1436 = vunpack.c.h.b16 %v528
    %v1437 = vunpack.c.l.b16 %v529
    %v1438 = vunpack.c.h.b16 %v529
    %v1439 = vunpack.c.l.b16 %v530
    %v1440 = vunpack.c.h.b16 %v530
    %v1441 = vunpack.c.l.b16 %v531
    %v1442 = vunpack.c.h.b16 %v531
    %v1443 = vunpack.c.l.b16 %v532
    %v1444 = vunpack.c.h.b16 %v532
    %v1445 = vunpack.c.l.b16 %v533
    %v1446 = vunpack.c.h.b16 %v533
    %v1447 = vunpack.c.l.b16 %v534
    %v1448 = vunpack.c.h.b16 %v534
    %v1449 = vunpack.c.l.b16 %v535
    %v1450 = vunpack.c.h.b16 %v535
    %v1451 = vunpack.c.l.b16 %v536
    %v1452 = vunpack.c.h.b16 %v536
    %v1453 = vunpack.c.l.b16 %v537
    %v1454 = vunpack.c.h.b16 %v537
    %v1455 = vunpack.c.l.b16 %v538
    %v1456 = vunpack.c.h.b16 %v538
    %v1457 = vunpack.c.l.b16 %v539
    %v1458 = vunpack.c.h.b16 %v539
    %v1459 = vunpack.c.l.b16 %v540
    %v1460 = vunpack.c.h.b16 %v540
    %v1461 = vunpack.c.l.b16 %v541
    %v1462 = vunpack.c.h.b16 %v541
    %v1463 = vunpack.c.l.b16 %v542
    %v1464 = vunpack.c.h.b16 %v542
    %v1465 = vunpack.c.l.b16 %v543
    %v1466 = vunpack.c.h.b16 %v543
    %v1467 = vunpack.c.l.b16 %v544
    %v1468 = vunpack.c.h.b16 %v544
    %v1469 = vunpack.c.l.b16 %v545
    %v1470 = vunpack.c.h.b16 %v545
    %v1471 = vunpack.c.l.b16 %v546
    %v1472 = vunpack.c.h.b16 %v546
    %v1473 = vunpack.c.l.b16 %v547
    %v1474 = vunpack.c.h.b16 %v547
    %v1475 = vunpack.c.l.b16 %v548
    %v1476 = vunpack.c.h.b16 %v548
    %v1477 = vunpack.c.l.b16 %v549
    %v1478 = vunpack.c.h.b16 %v549
    %v1479 = vunpack.c.l.b16 %v550
    %v1480 = vunpack.c.h.b16 %v550
    %v1481 = vunpack.c.l.b16 %v551
    %v1482 = vunpack.c.h.b16 %v551
    %v1483 = vunpack.c.l.b16 %v552
    %v1484 = vunpack.c.h.b16 %v552
    %v1485 = vunpack.c.l.b16 %v553
    %v1486 = vunpack.c.h.b16 %v553
    %v1487 = vunpack.c.l.b16 %v554
    %v1488 = vunpack.c.h.b16 %v554
    %v1489 = vunpack.c.l.b16 %v555
    %v1490 = vunpack.c.h.b16 %v555
    %v1491 = vunpack.c.l.b16 %v556
    %v1492 = vunpack.c.h.b16 %v556
    %v1493 = vunpack.c.l.b16 %v557
    %v1494 = vunpack.c.h.b16 %v557
    %v1495 = vunpack.c.l.b16 %v558
    %v1496 = vunpack.c.h.b16 %v558
    %v1497 = vunpack.c.l.b16 %v559
    %v1498 = vunpack.c.h.b16 %v559
    %v1499 = vunpack.c.l.b16 %v560
    %v1500 = vunpack.c.h.b16 %v560
    %v1501 = vunpack.c.l.b16 %v561
    %v1502 = vunpack.c.h.b16 %v561
    %v1503 = vunpack.c.l.b16 %v562
    %v1504 = vunpack.c.h.b16 %v562
    %v1505 = vunpack.c.l.b16 %v563
    %v1506 = vunpack.c.h.b16 %v563
    %v1507 = vunpack.c.l.b16 %v564
    %v1508 = vunpack.c.h.b16 %v564
    %v1509 = vunpack.c.l.b16 %v565
    %v1510 = vunpack.c.h.b16 %v565
    %v1511 = vunpack.c.l.b16 %v566
    %v1512 = vunpack.c.h.b16 %v566
    %v1513 = vunpack.c.l.b16 %v567
    %v1514 = vunpack.c.h.b16 %v567
    %v1515 = vunpack.c.l.b16 %v568
    %v1516 = vunpack.c.h.b16 %v568
    %v1517 = vunpack.c.l.b16 %v569
    %v1518 = vunpack.c.h.b16 %v569
    %v1519 = vunpack.c.l.b16 %v570
    %v1520 = vunpack.c.h.b16 %v570
    %v1521 = vunpack.c.l.b16 %v571
    %v1522 = vunpack.c.h.b16 %v571
    %v1523 = vunpack.c.l.b16 %v572
    %v1524 = vunpack.c.h.b16 %v572
    %v1525 = vunpack.c.l.b16 %v573
    %v1526 = vunpack.c.h.b16 %v573
    %v1527 = vunpack.c.l.b16 %v574
    %v1528 = vunpack.c.h.b16 %v574
    %v1529 = vunpack.c.l.b16 %v575
    %v1530 = vunpack.c.h.b16 %v575
    %v1531 = vunpack.c.l.b16 %v576
    %v1532 = vunpack.c.h.b16 %v576
    %v1533 = vunpack.c.l.b16 %v577
    %v1534 = vunpack.c.h.b16 %v577
    %v1535 = vunpack.c.l.b16 %v578
    %v1536 = vunpack.c.h.b16 %v578
    %v1537 = vunpack.c.l.b16 %v579
    %v1538 = vunpack.c.h.b16 %v579
    %v1539 = vunpack.c.l.b16 %v580
    %v1540 = vunpack.c.h.b16 %v580
    %v1541 = vunpack.c.l.b16 %v581
    %v1542 = vunpack.c.h.b16 %v581
    %v1543 = vunpack.c.l.b16 %v582
    %v1544 = vunpack.c.h.b16 %v582
    %v1545 = vunpack.c.l.b16 %v583
    %v1546 = vunpack.c.h.b16 %v583
    %v1547 = vunpack.c.l.b16 %v584
    %v1548 = vunpack.c.h.b16 %v584
    %v1549 = vunpack.c.l.b16 %v585
    %v1550 = vunpack.c.h.b16 %v585
    %v1551 = vunpack.c.l.b16 %v586
    %v1552 = vunpack.c.h.b16 %v586
    %v1553 = vunpack.c.l.b16 %v587
    %v1554 = vunpack.c.h.b16 %v587
    %v1555 = vunpack.c.l.b16 %v588
    %v1556 = vunpack.c.h.b16 %v588
    %v1557 = vunpack.c.l.b16 %v589
    %v1558 = vunpack.c.h.b16 %v589
    %v1559 = vunpack.c.l.b16 %v590
    %v1560 = vunpack.c.h.b16 %v590
    %v1561 = vunpack.c.l.b16 %v591
    %v1562 = vunpack.c.h.b16 %v591
    %v1563 = vunpack.c.l.b16 %v592
    %v1564 = vunpack.c.h.b16 %v592
    %v1565 = vunpack.c.l.b16 %v593
    %v1566 = vunpack.c.h.b16 %v593
    %v1567 = vunpack.c.l.b16 %v594
    %v1568 = vunpack.c.h.b16 %v594
    %v1569 = vunpack.c.l.b16 %v595
    %v1570 = vunpack.c.h.b16 %v595
    %v1571 = vunpack.c.l.b16 %v596
    %v1572 = vunpack.c.h.b16 %v596
    %v1573 = vunpack.c.l.b16 %v597
    %v1574 = vunpack.c.h.b16 %v597
    %v1575 = vunpack.c.l.b16 %v598
    %v1576 = vunpack.c.h.b16 %v598
    %v1577 = vunpack.c.l.b16 %v599
    %v1578 = vunpack.c.h.b16 %v599
    %v1579 = vunpack.c.l.b16 %v600
    %v1580 = vunpack.c.h.b16 %v600
    %v1581 = vunpack.c.l.b16 %v601
    %v1582 = vunpack.c.h.b16 %v601
    %v1583 = vunpack.c.l.b16 %v602
    %v1584 = vunpack.c.h.b16 %v602
    %v1585 = vunpack.c.l.b16 %v603
    %v1586 = vunpack.c.h.b16 %v603
    %v1587 = vunpack.c.l.b16 %v604
    %v1588 = vunpack.c.h.b16 %v604
    %v1589 = vunpack.c.l.b16 %v605
    %v1590 = vunpack.c.h.b16 %v605
    %v1591 = vunpack.c.l.b16 %v606
    %v1592 = vunpack.c.h.b16 %v606
    %v1593 = vunpack.c.l.b16 %v607
    %v1594 = vunpack.c.h.b16 %v607
    %v1595 = vunpack.c.l.b16 %v608
    %v1596 = vunpack.c.h.b16 %v608
    %v1597 = vunpack.c.l.b16 %v609
    %v1598 = vunpack.c.h.b16 %v609
    %v1599 = vunpack.c.l.b16 %v610
    %v1600 = vunpack.c.h.b16 %v610
    %v1601 = vunpack.c.l.b16 %v611
    %v1602 = vunpack.c.h.b16 %v611
    %v1603 = vunpack.c.l.b16 %v612
    %v1604 = vunpack.c.h.b16 %v612
    %v1605 = vunpack.c.l.b16 %v613
    %v1606 = vunpack.c.h.b16 %v613
    %v1607 = vunpack.c.l.b16 %v614
    %v1608 = vunpack.c.h.b16 %v614
    %v1609 = vunpack.c.l.b16 %v615
    %v1610 = vunpack.c.h.b16 %v615
    %v1611 = vunpack.c.l.b16 %v616
    %v1612 = vunpack.c.h.b16 %v616
    %v1613 = vunpack.c.l.b16 %v617
    %v1614 = vunpack.c.h.b16 %v617
    %v1615 = vunpack.c.l.b16 %v618
    %v1616 = vunpack.c.h.b16 %v618
    %v1617 = vunpack.c.l.b16 %v619
    %v1618 = vunpack.c.h.b16 %v619
    %v1619 = vunpack.c.l.b16 %v620
    %v1620 = vunpack.c.h.b16 %v620
    %v1621 = vunpack.c.l.b16 %v621
    %v1622 = vunpack.c.h.b16 %v621
    %v1623 = vunpack.c.l.b16 %v622
    %v1624 = vunpack.c.h.b16 %v622
    %v1625 = vunpack.c.l.b16 %v623
    %v1626 = vunpack.c.h.b16 %v623
    %v1627 = vunpack.c.l.b16 %v624
    %v1628 = vunpack.c.h.b16 %v624
    %v1629 = vunpack.c.l.b16 %v625
    %v1630 = vunpack.c.h.b16 %v625
    %v1631 = vunpack.c.l.b16 %v626
    %v1632 = vunpack.c.h.b16 %v626
    %v1633 = vunpack.c.l.b16 %v627
    %v1634 = vunpack.c.h.b16 %v627
    %v1635 = vunpack.c.l.b16 %v628
    %v1636 = vunpack.c.h.b16 %v628
    %v1637 = vunpack.c.l.b16 %v629
    %v1638 = vunpack.c.h.b16 %v629
    %v1639 = vunpack.c.l.b16 %v630
    %v1640 = vunpack.c.h.b16 %v630
    %v1641 = vunpack.c.l.b16 %v631
    %v1642 = vunpack.c.h.b16 %v631
    %v1643 = vunpack.c.l.b16 %v632
    %v1644 = vunpack.c.h.b16 %v632
    %v1645 = vunpack.c.l.b16 %v633
    %v1646 = vunpack.c.h.b16 %v633
    %v1647 = vunpack.c.l.b16 %v634
    %v1648 = vunpack.c.h.b16 %v634
    %v1649 = vunpack.c.l.b16 %v635
    %v1650 = vunpack.c.h.b16 %v635
    %v1651 = vunpack.c.l.b16 %v636
    %v1652 = vunpack.c.h.b16 %v636
    %v1653 = vunpack.c.l.b16 %v637
    %v1654 = vunpack.c.h.b16 %v637
    %v1655 = vunpack.c.l.b16 %v638
    %v1656 = vunpack.c.h.b16 %v638
    %v1657 = vunpack.c.l.b16 %v639
    %v1658 = vunpack.c.h.b16 %v639
    %v1659 = vunpack.c.l.b16 %v640
    %v1660 = vunpack.c.h.b16 %v640
    %v1661 = vunpack.c.l.b16 %v641
    %v1662 = vunpack.c.h.b16 %v641
    %v1663 = vunpack.c.l.b16 %v642
    %v1664 = vunpack.c.h.b16 %v642
    %v1665 = vunpack.c.l.b16 %v643
    %v1666 = vunpack.c.h.b16 %v643
    %v1667 = vunpack.c.l.b16 %v644
    %v1668 = vunpack.c.h.b16 %v644
    %v1669 = vunpack.c.l.b16 %v645
    %v1670 = vunpack.c.h.b16 %v645
    %v1671 = vunpack.c.l.b16 %v646
    %v1672 = vunpack.c.h.b16 %v646
    %v1673 = vunpack.c.l.b16 %v647
    %v1674 = vunpack.c.h.b16 %v647
    %v1675 = vunpack.c.l.b16 %v648
    %v1676 = vunpack.c.h.b16 %v648
    %v1677 = vunpack.c.l.b16 %v649
    %v1678 = vunpack.c.h.b16 %v649
    %v1679 = vunpack.c.l.b16 %v650
    %v1680 = vunpack.c.h.b16 %v650
    %v1681 = vunpack.c.l.b16 %v651
    %v1682 = vunpack.c.h.b16 %v651
    %v1683 = vunpack.c.l.b16 %v652
    %v1684 = vunpack.c.h.b16 %v652
    %v1685 = vunpack.c.l.b16 %v653
    %v1686 = vunpack.c.h.b16 %v653
    %v1687 = vunpack.c.l.b16 %v654
    %v1688 = vunpack.c.h.b16 %v654
    %v1689 = vunpack.c.l.b16 %v655
    %v1690 = vunpack.c.h.b16 %v655
    %v1691 = vunpack.c.l.b16 %v656
    %v1692 = vunpack.c.h.b16 %v656
    %v1693 = vunpack.c.l.b16 %v657
    %v1694 = vunpack.c.h.b16 %v657
    %v1695 = vunpack.c.l.b16 %v658
    %v1696 = vunpack.c.h.b16 %v658
    %v1697 = vunpack.c.l.b16 %v659
    %v1698 = vunpack.c.h.b16 %v659
    %v1699 = vunpack.c.l.b16 %v660
    %v1700 = vunpack.c.h.b16 %v660
    %v1701 = vunpack.c.l.b16 %v661
    %v1702 = vunpack.c.h.b16 %v661
    %v1703 = vunpack.c.l.b16 %v662
    %v1704 = vunpack.c.h.b16 %v662
    %v1705 = vunpack.c.l.b16 %v663
    %v1706 = vunpack.c.h.b16 %v663
    %v1707 = vunpack.c.l.b16 %v664
    %v1708 = vunpack.c.h.b16 %v664
    %v1709 = vunpack.c.l.b16 %v665
    %v1710 = vunpack.c.h.b16 %v665
    %v1711 = vunpack.c.l.b16 %v666
    %v1712 = vunpack.c.h.b16 %v666
    %v1713 = vunpack.c.l.b16 %v667
    %v1714 = vunpack.c.h.b16 %v667
    %v1715 = vunpack.c.l.b16 %v668
    %v1716 = vunpack.c.h.b16 %v668
    %v1717 = vunpack.c.l.b16 %v669
    %v1718 = vunpack.c.h.b16 %v669
    %v1719 = vunpack.c.l.b16 %v670
    %v1720 = vunpack.c.h.b16 %v670
    %v1721 = vunpack.c.l.b16 %v671
    %v1722 = vunpack.c.h.b16 %v671
    %v1723 = vunpack.c.l.b16 %v672
    %v1724 = vunpack.c.h.b16 %v672
    %v1725 = vunpack.c.l.b16 %v673
    %v1726 = vunpack.c.h.b16 %v673
    %v1727 = vunpack.c.l.b16 %v674
    %v1728 = vunpack.c.h.b16 %v674
    %v1729 = vunpack.c.l.b16 %v675
    %v1730 = vunpack.c.h.b16 %v675
    %v1731 = vunpack.c.l.b16 %v676
    %v1732 = vunpack.c.h.b16 %v676
    %v1733 = vunpack.c.l.b16 %v677
    %v1734 = vunpack.c.h.b16 %v677
    %v1735 = vunpack.c.l.b16 %v678
    %v1736 = vunpack.c.h.b16 %v678
    %v1737 = vunpack.c.l.b16 %v679
    %v1738 = vunpack.c.h.b16 %v679
    %v1739 = vunpack.c.l.b16 %v680
    %v1740 = vunpack.c.h.b16 %v680
    %v1741 = vunpack.c.l.b16 %v681
    %v1742 = vunpack.c.h.b16 %v681
    %v1743 = vunpack.c.l.b16 %v682
    %v1744 = vunpack.c.h.b16 %v682
    %v1745 = vunpack.c.l.b16 %v683
    %v1746 = vunpack.c.h.b16 %v683
    %v1747 = vunpack.c.l.b16 %v684
    %v1748 = vunpack.c.h.b16 %v684
    %v1749 = vunpack.c.l.b16 %v685
    %v1750 = vunpack.c.h.b16 %v685
    %v1751 = vunpack.c.l.b16 %v686
    %v1752 = vunpack.c.h.b16 %v686
    %v1753 = vunpack.c.l.b16 %v687
    %v1754 = vunpack.c.h.b16 %v687
    %v1755 = vunpack.c.l.b16 %v688
    %v1756 = vunpack.c.h.b16 %v688
    %v1757 = vunpack.c.l.b16 %v689
    %v1758 = vunpack.c.h.b16 %v689
    %v1759 = vunpack.c.l.b16 %v690
    %v1760 = vunpack.c.h.b16 %v690
    %v1761 = vunpack.c.l.b16 %v691
    %v1762 = vunpack.c.h.b16 %v691
    %v1763 = vunpack.c.l.b16 %v692
    %v1764 = vunpack.c.h.b16 %v692
    %v1765 = vunpack.c.l.b16 %v693
    %v1766 = vunpack.c.h.b16 %v693
    %v1767 = vunpack.c.l.b16 %v694
    %v1768 = vunpack.c.h.b16 %v694
    %v1769 = vunpack.c.l.b16 %v695
    %v1770 = vunpack.c.h.b16 %v695
    %v1771 = vunpack.c.l.b16 %v696
    %v1772 = vunpack.c.h.b16 %v696
    %v1773 = vunpack.c.l.b16 %v697
    %v1774 = vunpack.c.h.b16 %v697
    %v1775 = vunpack.c.l.b16 %v698
    %v1776 = vunpack.c.h.b16 %v698
    %v1777 = vunpack.c.l.b16 %v699
    %v1778 = vunpack.c.h.b16 %v699
    %v1779 = vunpack.c.l.b16 %v700
    %v1780 = vunpack.c.h.b16 %v700
    %v1781 = vunpack.c.l.b16 %v701
    %v1782 = vunpack.c.h.b16 %v701
    %v1783 = vunpack.c.l.b16 %v702
    %v1784 = vunpack.c.h.b16 %v702
    %v1785 = vunpack.c.l.b16 %v703
    %v1786 = vunpack.c.h.b16 %v703
    %v1787 = vunpack.c.l.b16 %v704
    %v1788 = vunpack.c.h.b16 %v704
    %v1789 = vunpack.c.l.b16 %v705
    %v1790 = vunpack.c.h.b16 %v705
    %v1791 = vunpack.c.l.b16 %v706
    %v1792 = vunpack.c.h.b16 %v706
    %v1793 = vunpack.c.l.b16 %v707
    %v1794 = vunpack.c.h.b16 %v707
    %v1795 = vunpack.c.l.b16 %v708
    %v1796 = vunpack.c.h.b16 %v708
    %v1797 = vunpack.c.l.b16 %v709
    %v1798 = vunpack.c.h.b16 %v709
    %v1799 = vunpack.c.l.b16 %v710
    %v1800 = vunpack.c.h.b16 %v710
    %v1801 = vunpack.c.l.b16 %v711
    %v1802 = vunpack.c.h.b16 %v711
    %v1803 = vunpack.c.l.b16 %v712
    %v1804 = vunpack.c.h.b16 %v712
    %v1805 = vunpack.c.l.b16 %v713
    %v1806 = vunpack.c.h.b16 %v713
    %v1807 = vunpack.c.l.b16 %v714
    %v1808 = vunpack.c.h.b16 %v714
    %v1809 = vunpack.c.l.b16 %v715
    %v1810 = vunpack.c.h.b16 %v715
    %v1811 = vunpack.c.l.b16 %v716
    %v1812 = vunpack.c.h.b16 %v716
    %v1813 = vunpack.c.l.b16 %v717
    %v1814 = vunpack.c.h.b16 %v717
    %v1815 = vunpack.c.l.b16 %v718
    %v1816 = vunpack.c.h.b16 %v718
    %v1817 = vunpack.c.l.b16 %v719
    %v1818 = vunpack.c.h.b16 %v719
    %v1819 = vunpack.c.l.b16 %v720
    %v1820 = vunpack.c.h.b16 %v720
    %v1821 = vunpack.c.l.b16 %v721
    %v1822 = vunpack.c.h.b16 %v721
    %v1823 = vunpack.c.l.b16 %v722
    %v1824 = vunpack.c.h.b16 %v722
    %v1825 = vunpack.c.l.b16 %v723
    %v1826 = vunpack.c.h.b16 %v723
    %v1827 = vunpack.c.l.b16 %v724
    %v1828 = vunpack.c.h.b16 %v724
    %v1829 = vunpack.c.l.b16 %v725
    %v1830 = vunpack.c.h.b16 %v725
    %v1831 = vunpack.c.l.b16 %v726
    %v1832 = vunpack.c.h.b16 %v726
    %v1833 = vunpack.c.l.b16 %v727
    %v1834 = vunpack.c.h.b16 %v727
    %v1835 = vunpack.c.l.b16 %v728
    %v1836 = vunpack.c.h.b16 %v728
    %v1837 = vunpack.c.l.b16 %v729
    %v1838 = vunpack.c.h.b16 %v729
    %v1839 = vunpack.c.l.b16 %v730
    %v1840 = vunpack.c.h.b16 %v730
    %v1841 = vunpack.c.l.b16 %v731
    %v1842 = vunpack.c.h.b16 %v731
    %v1843 = vunpack.c.l.b16 %v732
    %v1844 = vunpack.c.h.b16 %v732
    %v1845 = vunpack.c.l.b16 %v733
    %v1846 = vunpack.c.h.b16 %v733
    %v1847 = vunpack.c.l.b16 %v734
    %v1848 = vunpack.c.h.b16 %v734
    %v1849 = vunpack.c.l.b16 %v735
    %v1850 = vunpack.c.h.b16 %v735
    %v1851 = vunpack.c.l.b16 %v736
    %v1852 = vunpack.c.h.b16 %v736
    %v1853 = vunpack.c.l.b16 %v737
    %v1854 = vunpack.c.h.b16 %v737
    %v1855 = vunpack.c.l.b16 %v738
    %v1856 = vunpack.c.h.b16 %v738
    %v1857 = vunpack.c.l.b16 %v739
    %v1858 = vunpack.c.h.b16 %v739
    %v1859 = vunpack.c.l.b16 %v740
    %v1860 = vunpack.c.h.b16 %v740
    %v1861 = vunpack.c.l.b16 %v741
    %v1862 = vunpack.c.h.b16 %v741
    %v1863 = vunpack.c.l.b16 %v742
    %v1864 = vunpack.c.h.b16 %v742
    %v1865 = vunpack.c.l.b16 %v743
    %v1866 = vunpack.c.h.b16 %v743
    %v1867 = vunpack.c.l.b16 %v744
    %v1868 = vunpack.c.h.b16 %v744
    %v1869 = vunpack.c.l.b16 %v745
    %v1870 = vunpack.c.h.b16 %v745
    %v1871 = vunpack.c.l.b16 %v746
    %v1872 = vunpack.c.h.b16 %v746
    %v1873 = vunpack.c.l.b16 %v747
    %v1874 = vunpack.c.h.b16 %v747
    %v1875 = vunpack.c.l.b16 %v748
    %v1876 = vunpack.c.h.b16 %v748
    %v1877 = vunpack.c.l.b16 %v749
    %v1878 = vunpack.c.h.b16 %v749
    %v1879 = vunpack.c.l.b16 %v750
    %v1880 = vunpack.c.h.b16 %v750
    %v1881 = vunpack.c.l.b16 %v751
    %v1882 = vunpack.c.h.b16 %v751
    %v1883 = vunpack.c.l.b16 %v752
    %v1884 = vunpack.c.h.b16 %v752
    %v1885 = vunpack.c.l.b16 %v753
    %v1886 = vunpack.c.h.b16 %v753
    %v1887 = vunpack.c.l.b16 %v754
    %v1888 = vunpack.c.h.b16 %v754
    %v1889 = vunpack.c.l.b16 %v755
    %v1890 = vunpack.c.h.b16 %v755
    %v1891 = vunpack.c.l.b16 %v756
    %v1892 = vunpack.c.h.b16 %v756
    %v1893 = vunpack.c.l.b16 %v757
    %v1894 = vunpack.c.h.b16 %v757
    %v1895 = vunpack.c.l.b16 %v758
    %v1896 = vunpack.c.h.b16 %v758
    %v1897 = vunpack.c.l.b16 %v759
    %v1898 = vunpack.c.h.b16 %v759
    %v1899 = vunpack.c.l.b16 %v760
    %v1900 = vunpack.c.h.b16 %v760
    %v1901 = vunpack.c.l.b16 %v761
    %v1902 = vunpack.c.h.b16 %v761
    %v1903 = vunpack.c.l.b16 %v762
    %v1904 = vunpack.c.h.b16 %v762
    %v1905 = vunpack.c.l.b16 %v763
    %v1906 = vunpack.c.h.b16 %v763
    %v1907 = vunpack.c.l.b16 %v764
    %v1908 = vunpack.c.h.b16 %v764
    %v1909 = vunpack.c.l.b16 %v765
    %v1910 = vunpack.c.h.b16 %v765
    %v1911 = vunpack.c.l.b16 %v766
    %v1912 = vunpack.c.h.b16 %v766
    %v1913 = vunpack.c.l.b16 %v767
    %v1914 = vunpack.c.h.b16 %v767
    %v1915 = vunpack.c.l.b16 %v768
    %v1916 = vunpack.c.h.b16 %v768
    %v1917 = vunpack.c.l.b16 %v769
    %v1918 = vunpack.c.h.b16 %v769
    %v1919 = vunpack.c.l.b16 %v770
    %v1920 = vunpack.c.h.b16 %v770
    %v1921 = vunpack.c.l.b16 %v771
    %v1922 = vunpack.c.h.b16 %v771
    %v1923 = vunpack.c.l.b16 %v772
    %v1924 = vunpack.c.h.b16 %v772
    %v1925 = vpack.c.b16 %v1159, %v1157
    %v1926 = vpack.c.b16 %v1160, %v1158
    %v1927 = vpack.c.b16 %v1163, %v1161
    %v1928 = vpack.c.b16 %v1164, %v1162
    %v1929 = vpack.c.b16 %v1167, %v1165
    %v1930 = vpack.c.b16 %v1168, %v1166
    %v1931 = vpack.c.b16 %v1171, %v1169
    %v1932 = vpack.c.b16 %v1172, %v1170
    %v1933 = vpack.c.b16 %v1175, %v1173
    %v1934 = vpack.c.b16 %v1176, %v1174
    %v1935 = vpack.c.b16 %v1179, %v1177
    %v1936 = vpack.c.b16 %v1180, %v1178
    %v1937 = vpack.c.b16 %v1183, %v1181
    %v1938 = vpack.c.b16 %v1184, %v1182
    %v1939 = vpack.c.b16 %v1187, %v1185
    %v1940 = vpack.c.b16 %v1188, %v1186
    %v1941 = vpack.c.b16 %v1191, %v1189
    %v1942 = vpack.c.b16 %v1192, %v1190
    %v1943 = vpack.c.b16 %v1195, %v1193
    %v1944 = vpack.c.b16 %v1196, %v1194
    %v1945 = vpack.c.b16 %v1199, %v1197
    %v1946 = vpack.c.b16 %v1200, %v1198
    %v1947 = vpack.c.b16 %v1203, %v1201
    %v1948 = vpack.c.b16 %v1204, %v1202
    %v1949 = vpack.c.b16 %v1207, %v1205
    %v1950 = vpack.c.b16 %v1208, %v1206
    %v1951 = vpack.c.b16 %v1211, %v1209
    %v1952 = vpack.c.b16 %v1212, %v1210
    %v1953 = vpack.c.b16 %v1215, %v1213
    %v1954 = vpack.c.b16 %v1216, %v1214
    %v1955 = vpack.c.b16 %v1219, %v1217
    %v1956 = vpack.c.b16 %v1220, %v1218
    %v1957 = vpack.c.b16 %v1223, %v1221
    %v1958 = vpack.c.b16 %v1224, %v1222
    %v1959 = vpack.c.b16 %v1227, %v1225
    %v1960 = vpack.c.b16 %v1228, %v1226
    %v1961 = vpack.c.b16 %v1231, %v1229
    %v1962 = vpack.c.b16 %v1232, %v1230
    %v1963 = vpack.c.b16 %v1235, %v1233
    %v1964 = vpack.c.b16 %v1236, %v1234
    %v1965 = vpack.c.b16 %v1239, %v1237
    %v1966 = vpack.c.b16 %v1240, %v1238
    %v1967 = vpack.c.b16 %v1243, %v1241
    %v1968 = vpack.c.b16 %v1244, %v1242
    %v1969 = vpack.c.b16 %v1247, %v1245
    %v1970 = vpack.c.b16 %v1248, %v1246
    %v1971 = vpack.c.b16 %v1251, %v1249
    %v1972 = vpack.c.b16 %v1252, %v1250
    %v1973 = vpack.c.b16 %v1255, %v1253
    %v1974 = vpack.c.b16 %v1256, %v1254
    %v1975 = vpack.c.b16 %v1259, %v1257
    %v1976 = vpack.c.b16 %v1260, %v1258
    %v1977 = vpack.c.b16 %v1263, %v1261
    %v1978 = vpack.c.b16 %v1264, %v1262
    %v1979 = vpack.c.b16 %v1267, %v1265
    %v1980 = vpack.c.b16 %v1268, %v1266
    %v1981 = vpack.c.b16 %v1271, %v1269
    %v1982 = vpack.c.b16 %v1272, %v1270
    %v1983 = vpack.c.b16 %v1275, %v1273
    %v1984 = vpack.c.b16 %v1276, %v1274
    %v1985 = vpack.c.b16 %v1279, %v1277
    %v1986 = vpack.c.b16 %v1280, %v1278
    %v1987 = vpack.c.b16 %v1283, %v1281
    %v1988 = vpack.c.b16 %v1284, %v1282
    %v1989 = vpack.c.b16 %v1287, %v1285
    %v1990 = vpack.c.b16 %v1288, %v1286
    %v1991 = vpack.c.b16 %v1291, %v1289
    %v1992 = vpack.c.b16 %v1292, %v1290
    %v1993 = vpack.c.b16 %v1295, %v1293
    %v1994 = vpack.c.b16 %v1296, %v1294
    %v1995 = vpack.c.b16 %v1299, %v1297
    %v1996 = vpack.c.b16 %v1300, %v1298
    %v1997 = vpack.c.b16 %v1303, %v1301
    %v1998 = vpack.c.b16 %v1304, %v1302
    %v1999 = vpack.c.b16 %v1307, %v1305
    %v2000 = vpack.c.b16 %v1308, %v1306
    %v2001 = vpack.c.b16 %v1311, %v1309
    %v2002 = vpack.c.b16 %v1312, %v1310
    %v2003 = vpack.c.b16 %v1315, %v1313
    %v2004 = vpack.c.b16 %v1316, %v1314
    %v2005 = vpack.c.b16 %v1319, %v1317
    %v2006 = vpack.c.b16 %v1320, %v1318
    %v2007 = vpack.c.b16 %v1323, %v1321
    %v2008 = vpack.c.b16 %v1324, %v1322
    %v2009 = vpack.c.b16 %v1327, %v1325
    %v2010 = vpack.c.b16 %v1328, %v1326
    %v2011 = vpack.c.b16 %v1331, %v1329
    %v2012 = vpack.c.b16 %v1332, %v1330
    %v2013 = vpack.c.b16 %v1335, %v1333
    %v2014 = vpack.c.b16 %v1336, %v1334
    %v2015 = vpack.c.b16 %v1339, %v1337
    %v2016 = vpack.c.b16 %v1340, %v1338
    %v2017 = vpack.c.b16 %v1343, %v1341
    %v2018 = vpack.c.b16 %v1344, %v1342
    %v2019 = vpack.c.b16 %v1347, %v1345
    %v2020 = vpack.c.b16 %v1348, %v1346
    %v2021 = vpack.c.b16 %v1351, %v1349
    %v2022 = vpack.c.b16 %v1352, %v1350
    %v2023 = vpack.c.b16 %v1355, %v1353
    %v2024 = vpack.c.b16 %v1356, %v1354
    %v2025 = vpack.c.b16 %v1359, %v1357
    %v2026 = vpack.c.b16 %v1360, %v1358
    %v2027 = vpack.c.b16 %v1363, %v1361
    %v2028 = vpack.c.b16 %v1364, %v1362
    %v2029 = vpack.c.b16 %v1367, %v1365
    %v2030 = vpack.c.b16 %v1368, %v1366
    %v2031 = vpack.c.b16 %v1371, %v1369
    %v2032 = vpack.c.b16 %v1372, %v1370
    %v2033 = vpack.c.b16 %v1375, %v1373
    %v2034 = vpack.c.b16 %v1376, %v1374
    %v2035 = vpack.c.b16 %v1379, %v1377
    %v2036 = vpack.c.b16 %v1380, %v1378
    %v2037 = vpack.c.b16 %v1383, %v1381
    %v2038 = vpack.c.b16 %v1384, %v1382
    %v2039 = vpack.c.b16 %v1387, %v1385
    %v2040 = vpack.c.b16 %v1388, %v1386
    %v2041 = vpack.c.b16 %v1391, %v1389
    %v2042 = vpack.c.b16 %v1392, %v1390
    %v2043 = vpack.c.b16 %v1395, %v1393
    %v2044 = vpack.c.b16 %v1396, %v1394
    %v2045 = vpack.c.b16 %v1399, %v1397
    %v2046 = vpack.c.b16 %v1400, %v1398
    %v2047 = vpack.c.b16 %v1403, %v1401
    %v2048 = vpack.c.b16 %v1404, %v1402
    %v2049 = vpack.c.b16 %v1407, %v1405
    %v2050 = vpack.c.b16 %v1408, %v1406
    %v2051 = vpack.c.b16 %v1411, %v1409
    %v2052 = vpack.c.b16 %v1412, %v1410
    %v2053 = vpack.c.b16 %v1415, %v1413
    %v2054 = vpack.c.b16 %v1416, %v1414
    %v2055 = vpack.c.b16 %v1419, %v1417
    %v2056 = vpack.c.b16 %v1420, %v1418
    %v2057 = vpack.c.b16 %v1423, %v1421
    %v2058 = vpack.c.b16 %v1424, %v1422
    %v2059 = vpack.c.b16 %v1427, %v1425
    %v2060 = vpack.c.b16 %v1428, %v1426
    %v2061 = vpack.c.b16 %v1431, %v1429
    %v2062 = vpack.c.b16 %v1432, %v1430
    %v2063 = vpack.c.b16 %v1435, %v1433
    %v2064 = vpack.c.b16 %v1436, %v1434
    %v2065 = vpack.c.b16 %v1439, %v1437
    %v2066 = vpack.c.b16 %v1440, %v1438
    %v2067 = vpack.c.b16 %v1443, %v1441
    %v2068 = vpack.c.b16 %v1444, %v1442
    %v2069 = vpack.c.b16 %v1447, %v1445
    %v2070 = vpack.c.b16 %v1448, %v1446
    %v2071 = vpack.c.b16 %v1451, %v1449
    %v2072 = vpack.c.b16 %v1452, %v1450
    %v2073 = vpack.c.b16 %v1455, %v1453
    %v2074 = vpack.c.b16 %v1456, %v1454
    %v2075 = vpack.c.b16 %v1459, %v1457
    %v2076 = vpack.c.b16 %v1460, %v1458
    %v2077 = vpack.c.b16 %v1463, %v1461
    %v2078 = vpack.c.b16 %v1464, %v1462
    %v2079 = vpack.c.b16 %v1467, %v1465
    %v2080 = vpack.c.b16 %v1468, %v1466
    %v2081 = vpack.c.b16 %v1471, %v1469
    %v2082 = vpack.c.b16 %v1472, %v1470
    %v2083 = vpack.c.b16 %v1475, %v1473
    %v2084 = vpack.c.b16 %v1476, %v1474
    %v2085 = vpack.c.b16 %v1479, %v1477
    %v2086 = vpack.c.b16 %v1480, %v1478
    %v2087 = vpack.c.b16 %v1483, %v1481
    %v2088 = vpack.c.b16 %v1484, %v1482
    %v2089 = vpack.c.b16 %v1487, %v1485
    %v2090 = vpack.c.b16 %v1488, %v1486
    %v2091 = vpack.c.b16 %v1491, %v1489
    %v2092 = vpack.c.b16 %v1492, %v1490
    %v2093 = vpack.c.b16 %v1495, %v1493
    %v2094 = vpack.c.b16 %v1496, %v1494
    %v2095 = vpack.c.b16 %v1499, %v1497
    %v2096 = vpack.c.b16 %v1500, %v1498
    %v2097 = vpack.c.b16 %v1503, %v1501
    %v2098 = vpack.c.b16 %v1504, %v1502
    %v2099 = vpack.c.b16 %v1507, %v1505
    %v2100 = vpack.c.b16 %v1508, %v1506
    %v2101 = vpack.c.b16 %v1511, %v1509
    %v2102 = vpack.c.b16 %v1512, %v1510
    %v2103 = vpack.c.b16 %v1515, %v1513
    %v2104 = vpack.c.b16 %v1516, %v1514
    %v2105 = vpack.c.b16 %v1519, %v1517
    %v2106 = vpack.c.b16 %v1520, %v1518
    %v2107 = vpack.c.b16 %v1523, %v1521
    %v2108 = vpack.c.b16 %v1524, %v1522
    %v2109 = vpack.c.b16 %v1527, %v1525
    %v2110 = vpack.c.b16 %v1528, %v1526
    %v2111 = vpack.c.b16 %v1531, %v1529
    %v2112 = vpack.c.b16 %v1532, %v1530
    %v2113 = vpack.c.b16 %v1535, %v1533
    %v2114 = vpack.c.b16 %v1536, %v1534
    %v2115 = vpack.c.b16 %v1539, %v1537
    %v2116 = vpack.c.b16 %v1540, %v1538
    %v2117 = vpack.c.b16 %v1543, %v1541
    %v2118 = vpack.c.b16 %v1544, %v1542
    %v2119 = vpack.c.b16 %v1547, %v1545
    %v2120 = vpack.c.b16 %v1548, %v1546
    %v2121 = vpack.c.b16 %v1551, %v1549
    %v2122 = vpack.c.b16 %v1552, %v1550
    %v2123 = vpack.c.b16 %v1555, %v1553
    %v2124 = vpack.c.b16 %v1556, %v1554
    %v2125 = vpack.c.b16 %v1559, %v1557
    %v2126 = vpack.c.b16 %v1560, %v1558
    %v2127 = vpack.c.b16 %v1563, %v1561
    %v2128 = vpack.c.b16 %v1564, %v1562
    %v2129 = vpack.c.b16 %v1567, %v1565
    %v2130 = vpack.c.b16 %v1568, %v1566
    %v2131 = vpack.c.b16 %v1571, %v1569
    %v2132 = vpack.c.b16 %v1572, %v1570
    %v2133 = vpack.c.b16 %v1575, %v1573
    %v2134 = vpack.c.b16 %v1576, %v1574
    %v2135 = vpack.c.b16 %v1579, %v1577
    %v2136 = vpack.c.b16 %v1580, %v1578
    %v2137 = vpack.c.b16 %v1583, %v1581
    %v2138 = vpack.c.b16 %v1584, %v1582
    %v2139 = vpack.c.b16 %v1587, %v1585
    %v2140 = vpack.c.b16 %v1588, %v1586
    %v2141 = vpack.c.b16 %v1591, %v1589
    %v2142 = vpack.c.b16 %v1592, %v1590
    %v2143 = vpack.c.b16 %v1595, %v1593
    %v2144 = vpack.c.b16 %v1596, %v1594
    %v2145 = vpack.c.b16 %v1599, %v1597
    %v2146 = vpack.c.b16 %v1600, %v1598
    %v2147 = vpack.c.b16 %v1603, %v1601
    %v2148 = vpack.c.b16 %v1604, %v1602
    %v2149 = vpack.c.b16 %v1607, %v1605
    %v2150 = vpack.c.b16 %v1608, %v1606
    %v2151 = vpack.c.b16 %v1611, %v1609
    %v2152 = vpack.c.b16 %v1612, %v1610
    %v2153 = vpack.c.b16 %v1615, %v1613
    %v2154 = vpack.c.b16 %v1616, %v1614
    %v2155 = vpack.c.b16 %v1619, %v1617
    %v2156 = vpack.c.b16 %v1620, %v1618
    %v2157 = vpack.c.b16 %v1623, %v1621
    %v2158 = vpack.c.b16 %v1624, %v1622
    %v2159 = vpack.c.b16 %v1627, %v1625
    %v2160 = vpack.c.b16 %v1628, %v1626
    %v2161 = vpack.c.b16 %v1631, %v1629
    %v2162 = vpack.c.b16 %v1632, %v1630
    %v2163 = vpack.c.b16 %v1635, %v1633
    %v2164 = vpack.c.b16 %v1636, %v1634
    %v2165 = vpack.c.b16 %v1639, %v1637
    %v2166 = vpack.c.b16 %v1640, %v1638
    %v2167 = vpack.c.b16 %v1643, %v1641
    %v2168 = vpack.c.b16 %v1644, %v1642
    %v2169 = vpack.c.b16 %v1647, %v1645
    %v2170 = vpack.c.b16 %v1648, %v1646
    %v2171 = vpack.c.b16 %v1651, %v1649
    %v2172 = vpack.c.b16 %v1652, %v1650
    %v2173 = vpack.c.b16 %v1655, %v1653
    %v2174 = vpack.c.b16 %v1656, %v1654
    %v2175 = vpack.c.b16 %v1659, %v1657
    %v2176 = vpack.c.b16 %v1660, %v1658
    %v2177 = vpack.c.b16 %v1663, %v1661
    %v2178 = vpack.c.b16 %v1664, %v1662
    %v2179 = vpack.c.b16 %v1667, %v1665
    %v2180 = vpack.c.b16 %v1668, %v1666
    %v2181 = vpack.c.b16 %v1671, %v1669
    %v2182 = vpack.c.b16 %v1672, %v1670
    %v2183 = vpack.c.b16 %v1675, %v1673
    %v2184 = vpack.c.b16 %v1676, %v1674
    %v2185 = vpack.c.b16 %v1679, %v1677
    %v2186 = vpack.c.b16 %v1680, %v1678
    %v2187 = vpack.c.b16 %v1683, %v1681
    %v2188 = vpack.c.b16 %v1684, %v1682
    %v2189 = vpack.c.b16 %v1687, %v1685
    %v2190 = vpack.c.b16 %v1688, %v1686
    %v2191 = vpack.c.b16 %v1691, %v1689
    %v2192 = vpack.c.b16 %v1692, %v1690
    %v2193 = vpack.c.b16 %v1695, %v1693
    %v2194 = vpack.c.b16 %v1696, %v1694
    %v2195 = vpack.c.b16 %v1699, %v1697
    %v2196 = vpack.c.b16 %v1700, %v1698
    %v2197 = vpack.c.b16 %v1703, %v1701
    %v2198 = vpack.c.b16 %v1704, %v1702
    %v2199 = vpack.c.b16 %v1707, %v1705
    %v2200 = vpack.c.b16 %v1708, %v1706
    %v2201 = vpack.c.b16 %v1711, %v1709
    %v2202 = vpack.c.b16 %v1712, %v1710
    %v2203 = vpack.c.b16 %v1715, %v1713
    %v2204 = vpack.c.b16 %v1716, %v1714
    %v2205 = vpack.c.b16 %v1719, %v1717
    %v2206 = vpack.c.b16 %v1720, %v1718
    %v2207 = vpack.c.b16 %v1723, %v1721
    %v2208 = vpack.c.b16 %v1724, %v1722
    %v2209 = vpack.c.b16 %v1727, %v1725
    %v2210 = vpack.c.b16 %v1728, %v1726
    %v2211 = vpack.c.b16 %v1731, %v1729
    %v2212 = vpack.c.b16 %v1732, %v1730
    %v2213 = vpack.c.b16 %v1735, %v1733
    %v2214 = vpack.c.b16 %v1736, %v1734
    %v2215 = vpack.c.b16 %v1739, %v1737
    %v2216 = vpack.c.b16 %v1740, %v1738
    %v2217 = vpack.c.b16 %v1743, %v1741
    %v2218 = vpack.c.b16 %v1744, %v1742
    %v2219 = vpack.c.b16 %v1747, %v1745
    %v2220 = vpack.c.b16 %v1748, %v1746
    %v2221 = vpack.c.b16 %v1751, %v1749
    %v2222 = vpack.c.b16 %v1752, %v1750
    %v2223 = vpack.c.b16 %v1755, %v1753
    %v2224 = vpack.c.b16 %v1756, %v1754
    %v2225 = vpack.c.b16 %v1759, %v1757
    %v2226 = vpack.c.b16 %v1760, %v1758
    %v2227 = vpack.c.b16 %v1763, %v1761
    %v2228 = vpack.c.b16 %v1764, %v1762
    %v2229 = vpack.c.b16 %v1767, %v1765
    %v2230 = vpack.c.b16 %v1768, %v1766
    %v2231 = vpack.c.b16 %v1771, %v1769
    %v2232 = vpack.c.b16 %v1772, %v1770
    %v2233 = vpack.c.b16 %v1775, %v1773
    %v2234 = vpack.c.b16 %v1776, %v1774
    %v2235 = vpack.c.b16 %v1779, %v1777
    %v2236 = vpack.c.b16 %v1780, %v1778
    %v2237 = vpack.c.b16 %v1783, %v1781
    %v2238 = vpack.c.b16 %v1784, %v1782
    %v2239 = vpack.c.b16 %v1787, %v1785
    %v2240 = vpack.c.b16 %v1788, %v1786
    %v2241 = vpack.c.b16 %v1791, %v1789
    %v2242 = vpack.c.b16 %v1792, %v1790
    %v2243 = vpack.c.b16 %v1795, %v1793
    %v2244 = vpack.c.b16 %v1796, %v1794
    %v2245 = vpack.c.b16 %v1799, %v1797
    %v2246 = vpack.c.b16 %v1800, %v1798
    %v2247 = vpack.c.b16 %v1803, %v1801
    %v2248 = vpack.c.b16 %v1804, %v1802
    %v2249 = vpack.c.b16 %v1807, %v1805
    %v2250 = vpack.c.b16 %v1808, %v1806
    %v2251 = vpack.c.b16 %v1811, %v1809
    %v2252 = vpack.c.b16 %v1812, %v1810
    %v2253 = vpack.c.b16 %v1815, %v1813
    %v2254 = vpack.c.b16 %v1816, %v1814
    %v2255 = vpack.c.b16 %v1819, %v1817
    %v2256 = vpack.c.b16 %v1820, %v1818
    %v2257 = vpack.c.b16 %v1823, %v1821
    %v2258 = vpack.c.b16 %v1824, %v1822
    %v2259 = vpack.c.b16 %v1827, %v1825
    %v2260 = vpack.c.b16 %v1828, %v1826
    %v2261 = vpack.c.b16 %v1831, %v1829
    %v2262 = vpack.c.b16 %v1832, %v1830
    %v2263 = vpack.c.b16 %v1835, %v1833
    %v2264 = vpack.c.b16 %v1836, %v1834
    %v2265 = vpack.c.b16 %v1839, %v1837
    %v2266 = vpack.c.b16 %v1840, %v1838
    %v2267 = vpack.c.b16 %v1843, %v1841
    %v2268 = vpack.c.b16 %v1844, %v1842
    %v2269 = vpack.c.b16 %v1847, %v1845
    %v2270 = vpack.c.b16 %v1848, %v1846
    %v2271 = vpack.c.b16 %v1851, %v1849
    %v2272 = vpack.c.b16 %v1852, %v1850
    %v2273 = vpack.c.b16 %v1855, %v1853
    %v2274 = vpack.c.b16 %v1856, %v1854
    %v2275 = vpack.c.b16 %v1859, %v1857
    %v2276 = vpack.c.b16 %v1860, %v1858
    %v2277 = vpack.c.b16 %v1863, %v1861
    %v2278 = vpack.c.b16 %v1864, %v1862
    %v2279 = vpack.c.b16 %v1867, %v1865
    %v2280 = vpack.c.b16 %v1868, %v1866
    %v2281 = vpack.c.b16 %v1871, %v1869
    %v2282 = vpack.c.b16 %v1872, %v1870
    %v2283 = vpack.c.b16 %v1875, %v1873
    %v2284 = vpack.c.b16 %v1876, %v1874
    %v2285 = vpack.c.b16 %v1879, %v1877
    %v2286 = vpack.c.b16 %v1880, %v1878
    %v2287 = vpack.c.b16 %v1883, %v1881
    %v2288 = vpack.c.b16 %v1884, %v1882
    %v2289 = vpack.c.b16 %v1887, %v1885
    %v2290 = vpack.c.b16 %v1888, %v1886
    %v2291 = vpack.c.b16 %v1891, %v1889
    %v2292 = vpack.c.b16 %v1892, %v1890
    %v2293 = vpack.c.b16 %v1895, %v1893
    %v2294 = vpack.c.b16 %v1896, %v1894
    %v2295 = vpack.c.b16 %v1899, %v1897
    %v2296 = vpack.c.b16 %v1900, %v1898
    %v2297 = vpack.c.b16 %v1903, %v1901
    %v2298 = vpack.c.b16 %v1904, %v1902
    %v2299 = vpack.c.b16 %v1907, %v1905
    %v2300 = vpack.c.b16 %v1908, %v1906
    %v2301 = vpack.c.b16 %v1911, %v1909
    %v2302 = vpack.c.b16 %v1912, %v1910
    %v2303 = vpack.c.b16 %v1915, %v1913
    %v2304 = vpack.c.b16 %v1916, %v1914
    %v2305 = vpack.c.b16 %v1919, %v1917
    %v2306 = vpack.c.b16 %v1920, %v1918
    %v2307 = vpack.c.b16 %v1923, %v1921
    %v2308 = vpack.c.b16 %v1924, %v1922
    %2693 = vmatprep.subr.bf16.mxu0 %v1940
    %2694 = vmatpush1.bf16.msra.mxu0 %v1939
    %2695 = vmatprep.subr.bf16.mxu0 %v1938
    %2696 = vmatpush1.bf16.msra.mxu0 %v1937
    %2697 = vmatprep.subr.bf16.mxu0 %v1936
    %2698 = vmatpush1.bf16.msra.mxu0 %v1935
    %2699 = vmatprep.subr.bf16.mxu0 %v1934
    %2700 = vmatpush1.bf16.msra.mxu0 %v1933
    %2701 = vmatprep.subr.bf16.mxu0 %v1932
    %2702 = vmatpush1.bf16.msra.mxu0 %v1931
    %2703 = vmatprep.subr.bf16.mxu0 %v1930
    %2704 = vmatpush1.bf16.msra.mxu0 %v1929
    %2705 = vmatprep.subr.bf16.mxu0 %v1928
    %2706 = vmatpush1.bf16.msra.mxu0 %v1927
    %2707 = vmatprep.subr.bf16.mxu0 %v1926
    %2708 = vmatpush1.bf16.msra.mxu0 %v1925
    %2709 = vmatprep.subr.bf16.mxu0 %v1956
    %2710 = vmatpush2.bf16.msra.mxu0 %v1955
    %2711 = vmatprep.subr.bf16.mxu0 %v1954
    %2712 = vmatpush2.bf16.msra.mxu0 %v1953
    %2713 = vmatprep.subr.bf16.mxu0 %v1952
    %2714 = vmatpush2.bf16.msra.mxu0 %v1951
    %2715 = vmatprep.subr.bf16.mxu0 %v1950
    %2716 = vmatpush2.bf16.msra.mxu0 %v1949
    %2717 = vmatprep.subr.bf16.mxu0 %v1948
    %2718 = vmatpush2.bf16.msra.mxu0 %v1947
    %2719 = vmatprep.subr.bf16.mxu0 %v1946
    %2720 = vmatpush2.bf16.msra.mxu0 %v1945
    %2721 = vmatprep.subr.bf16.mxu0 %v1944
    %2722 = vmatpush2.bf16.msra.mxu0 %v1943
    %2723 = vmatprep.subr.bf16.mxu0 %v1942
    %2724 = vmatpush2.bf16.msra.mxu0 %v1941
    %2725 = vmatprep.mubr.bf16.mxu0 %v294
    %2726 = vmatmul.mubr.bf16.gmra.mxu0 %v293
    %v2727 = vpop.f32.mrf.mxu0
    %v2728 = vadd.f32 0.0, %v2727
    %v2729 = vpop.f32.mrf.mxu0
    %v2730 = vadd.f32 0.0, %v2729
    %v2731 = vpop.f32.mrf.mxu0
    %v2732 = vadd.f32 0.0, %v2731
    %v2733 = vpop.f32.mrf.mxu0
    %v2734 = vadd.f32 0.0, %v2733
    %2735 = vmatprep.mubr.bf16.mxu0 %v318
    %2736 = vmatmul.mubr.bf16.gmra.mxu0 %v317
    %v2737 = vpop.f32.mrf.mxu0
    %v2738 = vadd.f32 0.0, %v2737
    %v2739 = vpop.f32.mrf.mxu0
    %v2740 = vadd.f32 0.0, %v2739
    %v2741 = vpop.f32.mrf.mxu0
    %v2742 = vadd.f32 0.0, %v2741
    %v2743 = vpop.f32.mrf.mxu0
    %v2744 = vadd.f32 0.0, %v2743
    %2745 = vmatprep.mubr.bf16.mxu0 %v342
    %2746 = vmatmul.mubr.bf16.gmra.mxu0 %v341
    %v2747 = vpop.f32.mrf.mxu0
    %v2748 = vadd.f32 0.0, %v2747
    %v2749 = vpop.f32.mrf.mxu0
    %v2750 = vadd.f32 0.0, %v2749
    %v2751 = vpop.f32.mrf.mxu0
    %v2752 = vadd.f32 0.0, %v2751
    %v2753 = vpop.f32.mrf.mxu0
    %v2754 = vadd.f32 0.0, %v2753
    %2755 = vmatprep.mubr.bf16.mxu0 %v366
    %2756 = vmatmul.mubr.bf16.gmra.mxu0 %v365
    %v2757 = vpop.f32.mrf.mxu0
    %v2758 = vadd.f32 0.0, %v2757
    %v2759 = vpop.f32.mrf.mxu0
    %v2760 = vadd.f32 0.0, %v2759
    %v2761 = vpop.f32.mrf.mxu0
    %v2762 = vadd.f32 0.0, %v2761
    %v2763 = vpop.f32.mrf.mxu0
    %v2764 = vadd.f32 0.0, %v2763
    %2765 = vdwg.mxu0
    %2766 = vmatprep.subr.bf16.mxu0 %v1972
    %2767 = vmatpush1.bf16.msra.mxu0 %v1971
    %2768 = vmatprep.subr.bf16.mxu0 %v1970
    %2769 = vmatpush1.bf16.msra.mxu0 %v1969
    %2770 = vmatprep.subr.bf16.mxu0 %v1968
    %2771 = vmatpush1.bf16.msra.mxu0 %v1967
    %2772 = vmatprep.subr.bf16.mxu0 %v1966
    %2773 = vmatpush1.bf16.msra.mxu0 %v1965
    %2774 = vmatprep.subr.bf16.mxu0 %v1964
    %2775 = vmatpush1.bf16.msra.mxu0 %v1963
    %2776 = vmatprep.subr.bf16.mxu0 %v1962
    %2777 = vmatpush1.bf16.msra.mxu0 %v1961
    %2778 = vmatprep.subr.bf16.mxu0 %v1960
    %2779 = vmatpush1.bf16.msra.mxu0 %v1959
    %2780 = vmatprep.subr.bf16.mxu0 %v1958
    %2781 = vmatpush1.bf16.msra.mxu0 %v1957
    %2782 = vmatprep.subr.bf16.mxu0 %v1988
    %2783 = vmatpush2.bf16.msra.mxu0 %v1987
    %2784 = vmatprep.subr.bf16.mxu0 %v1986
    %2785 = vmatpush2.bf16.msra.mxu0 %v1985
    %2786 = vmatprep.subr.bf16.mxu0 %v1984
    %2787 = vmatpush2.bf16.msra.mxu0 %v1983
    %2788 = vmatprep.subr.bf16.mxu0 %v1982
    %2789 = vmatpush2.bf16.msra.mxu0 %v1981
    %2790 = vmatprep.subr.bf16.mxu0 %v1980
    %2791 = vmatpush2.bf16.msra.mxu0 %v1979
    %2792 = vmatprep.subr.bf16.mxu0 %v1978
    %2793 = vmatpush2.bf16.msra.mxu0 %v1977
    %2794 = vmatprep.subr.bf16.mxu0 %v1976
    %2795 = vmatpush2.bf16.msra.mxu0 %v1975
    %2796 = vmatprep.subr.bf16.mxu0 %v1974
    %2797 = vmatpush2.bf16.msra.mxu0 %v1973
    %2798 = vmatprep.mubr.bf16.mxu0 %v296
    %2799 = vmatmul.mubr.bf16.gmra.mxu0 %v295
    %v2800 = vpop.f32.mrf.mxu0
    %v2801 = vadd.f32 %v2728, %v2800
    %v2802 = vpop.f32.mrf.mxu0
    %v2803 = vadd.f32 %v2730, %v2802
    %v2804 = vpop.f32.mrf.mxu0
    %v2805 = vadd.f32 %v2732, %v2804
    %v2806 = vpop.f32.mrf.mxu0
    %v2807 = vadd.f32 %v2734, %v2806
    %2808 = vmatprep.mubr.bf16.mxu0 %v320
    %2809 = vmatmul.mubr.bf16.gmra.mxu0 %v319
    %v2810 = vpop.f32.mrf.mxu0
    %v2811 = vadd.f32 %v2738, %v2810
    %v2812 = vpop.f32.mrf.mxu0
    %v2813 = vadd.f32 %v2740, %v2812
    %v2814 = vpop.f32.mrf.mxu0
    %v2815 = vadd.f32 %v2742, %v2814
    %v2816 = vpop.f32.mrf.mxu0
    %v2817 = vadd.f32 %v2744, %v2816
    %2818 = vmatprep.mubr.bf16.mxu0 %v344
    %2819 = vmatmul.mubr.bf16.gmra.mxu0 %v343
    %v2820 = vpop.f32.mrf.mxu0
    %v2821 = vadd.f32 %v2748, %v2820
    %v2822 = vpop.f32.mrf.mxu0
    %v2823 = vadd.f32 %v2750, %v2822
    %v2824 = vpop.f32.mrf.mxu0
    %v2825 = vadd.f32 %v2752, %v2824
    %v2826 = vpop.f32.mrf.mxu0
    %v2827 = vadd.f32 %v2754, %v2826
    %2828 = vmatprep.mubr.bf16.mxu0 %v368
    %2829 = vmatmul.mubr.bf16.gmra.mxu0 %v367
    %v2830 = vpop.f32.mrf.mxu0
    %v2831 = vadd.f32 %v2758, %v2830
    %v2832 = vpop.f32.mrf.mxu0
    %v2833 = vadd.f32 %v2760, %v2832
    %v2834 = vpop.f32.mrf.mxu0
    %v2835 = vadd.f32 %v2762, %v2834
    %v2836 = vpop.f32.mrf.mxu0
    %v2837 = vadd.f32 %v2764, %v2836
    %2838 = vdwg.mxu0
    %2839 = vmatprep.subr.bf16.mxu0 %v2004
    %2840 = vmatpush1.bf16.msra.mxu0 %v2003
    %2841 = vmatprep.subr.bf16.mxu0 %v2002
    %2842 = vmatpush1.bf16.msra.mxu0 %v2001
    %2843 = vmatprep.subr.bf16.mxu0 %v2000
    %2844 = vmatpush1.bf16.msra.mxu0 %v1999
    %2845 = vmatprep.subr.bf16.mxu0 %v1998
    %2846 = vmatpush1.bf16.msra.mxu0 %v1997
    %2847 = vmatprep.subr.bf16.mxu0 %v1996
    %2848 = vmatpush1.bf16.msra.mxu0 %v1995
    %2849 = vmatprep.subr.bf16.mxu0 %v1994
    %2850 = vmatpush1.bf16.msra.mxu0 %v1993
    %2851 = vmatprep.subr.bf16.mxu0 %v1992
    %2852 = vmatpush1.bf16.msra.mxu0 %v1991
    %2853 = vmatprep.subr.bf16.mxu0 %v1990
    %2854 = vmatpush1.bf16.msra.mxu0 %v1989
    %2855 = vmatprep.subr.bf16.mxu0 %v2020
    %2856 = vmatpush2.bf16.msra.mxu0 %v2019
    %2857 = vmatprep.subr.bf16.mxu0 %v2018
    %2858 = vmatpush2.bf16.msra.mxu0 %v2017
    %2859 = vmatprep.subr.bf16.mxu0 %v2016
    %2860 = vmatpush2.bf16.msra.mxu0 %v2015
    %2861 = vmatprep.subr.bf16.mxu0 %v2014
    %2862 = vmatpush2.bf16.msra.mxu0 %v2013
    %2863 = vmatprep.subr.bf16.mxu0 %v2012
    %2864 = vmatpush2.bf16.msra.mxu0 %v2011
    %2865 = vmatprep.subr.bf16.mxu0 %v2010
    %2866 = vmatpush2.bf16.msra.mxu0 %v2009
    %2867 = vmatprep.subr.bf16.mxu0 %v2008
    %2868 = vmatpush2.bf16.msra.mxu0 %v2007
    %2869 = vmatprep.subr.bf16.mxu0 %v2006
    %2870 = vmatpush2.bf16.msra.mxu0 %v2005
    %2871 = vmatprep.mubr.bf16.mxu0 %v298
    %2872 = vmatmul.mubr.bf16.gmra.mxu0 %v297
    %v2873 = vpop.f32.mrf.mxu0
    %v2874 = vadd.f32 %v2801, %v2873
    %v2875 = vpop.f32.mrf.mxu0
    %v2876 = vadd.f32 %v2803, %v2875
    %v2877 = vpop.f32.mrf.mxu0
    %v2878 = vadd.f32 %v2805, %v2877
    %v2879 = vpop.f32.mrf.mxu0
    %v2880 = vadd.f32 %v2807, %v2879
    %2881 = vmatprep.mubr.bf16.mxu0 %v322
    %2882 = vmatmul.mubr.bf16.gmra.mxu0 %v321
    %v2883 = vpop.f32.mrf.mxu0
    %v2884 = vadd.f32 %v2811, %v2883
    %v2885 = vpop.f32.mrf.mxu0
    %v2886 = vadd.f32 %v2813, %v2885
    %v2887 = vpop.f32.mrf.mxu0
    %v2888 = vadd.f32 %v2815, %v2887
    %v2889 = vpop.f32.mrf.mxu0
    %v2890 = vadd.f32 %v2817, %v2889
    %2891 = vmatprep.mubr.bf16.mxu0 %v346
    %2892 = vmatmul.mubr.bf16.gmra.mxu0 %v345
    %v2893 = vpop.f32.mrf.mxu0
    %v2894 = vadd.f32 %v2821, %v2893
    %v2895 = vpop.f32.mrf.mxu0
    %v2896 = vadd.f32 %v2823, %v2895
    %v2897 = vpop.f32.mrf.mxu0
    %v2898 = vadd.f32 %v2825, %v2897
    %v2899 = vpop.f32.mrf.mxu0
    %v2900 = vadd.f32 %v2827, %v2899
    %2901 = vmatprep.mubr.bf16.mxu0 %v370
    %2902 = vmatmul.mubr.bf16.gmra.mxu0 %v369
    %v2903 = vpop.f32.mrf.mxu0
    %v2904 = vadd.f32 %v2831, %v2903
    %v2905 = vpop.f32.mrf.mxu0
    %v2906 = vadd.f32 %v2833, %v2905
    %v2907 = vpop.f32.mrf.mxu0
    %v2908 = vadd.f32 %v2835, %v2907
    %v2909 = vpop.f32.mrf.mxu0
    %v2910 = vadd.f32 %v2837, %v2909
    %2911 = vdwg.mxu0
    %2912 = vmatprep.subr.bf16.mxu0 %v2036
    %2913 = vmatpush1.bf16.msra.mxu0 %v2035
    %2914 = vmatprep.subr.bf16.mxu0 %v2034
    %2915 = vmatpush1.bf16.msra.mxu0 %v2033
    %2916 = vmatprep.subr.bf16.mxu0 %v2032
    %2917 = vmatpush1.bf16.msra.mxu0 %v2031
    %2918 = vmatprep.subr.bf16.mxu0 %v2030
    %2919 = vmatpush1.bf16.msra.mxu0 %v2029
    %2920 = vmatprep.subr.bf16.mxu0 %v2028
    %2921 = vmatpush1.bf16.msra.mxu0 %v2027
    %2922 = vmatprep.subr.bf16.mxu0 %v2026
    %2923 = vmatpush1.bf16.msra.mxu0 %v2025
    %2924 = vmatprep.subr.bf16.mxu0 %v2024
    %2925 = vmatpush1.bf16.msra.mxu0 %v2023
    %2926 = vmatprep.subr.bf16.mxu0 %v2022
    %2927 = vmatpush1.bf16.msra.mxu0 %v2021
    %2928 = vmatprep.subr.bf16.mxu0 %v2052
    %2929 = vmatpush2.bf16.msra.mxu0 %v2051
    %2930 = vmatprep.subr.bf16.mxu0 %v2050
    %2931 = vmatpush2.bf16.msra.mxu0 %v2049
    %2932 = vmatprep.subr.bf16.mxu0 %v2048
    %2933 = vmatpush2.bf16.msra.mxu0 %v2047
    %2934 = vmatprep.subr.bf16.mxu0 %v2046
    %2935 = vmatpush2.bf16.msra.mxu0 %v2045
    %2936 = vmatprep.subr.bf16.mxu0 %v2044
    %2937 = vmatpush2.bf16.msra.mxu0 %v2043
    %2938 = vmatprep.subr.bf16.mxu0 %v2042
    %2939 = vmatpush2.bf16.msra.mxu0 %v2041
    %2940 = vmatprep.subr.bf16.mxu0 %v2040
    %2941 = vmatpush2.bf16.msra.mxu0 %v2039
    %2942 = vmatprep.subr.bf16.mxu0 %v2038
    %2943 = vmatpush2.bf16.msra.mxu0 %v2037
    %2944 = vmatprep.mubr.bf16.mxu0 %v300
    %2945 = vmatmul.mubr.bf16.gmra.mxu0 %v299
    %v2946 = vpop.f32.mrf.mxu0
    %v2947 = vadd.f32 %v2874, %v2946
    %v2948 = vpop.f32.mrf.mxu0
    %v2949 = vadd.f32 %v2876, %v2948
    %v2950 = vpop.f32.mrf.mxu0
    %v2951 = vadd.f32 %v2878, %v2950
    %v2952 = vpop.f32.mrf.mxu0
    %v2953 = vadd.f32 %v2880, %v2952
    %2954 = vmatprep.mubr.bf16.mxu0 %v324
    %2955 = vmatmul.mubr.bf16.gmra.mxu0 %v323
    %v2956 = vpop.f32.mrf.mxu0
    %v2957 = vadd.f32 %v2884, %v2956
    %v2958 = vpop.f32.mrf.mxu0
    %v2959 = vadd.f32 %v2886, %v2958
    %v2960 = vpop.f32.mrf.mxu0
    %v2961 = vadd.f32 %v2888, %v2960
    %v2962 = vpop.f32.mrf.mxu0
    %v2963 = vadd.f32 %v2890, %v2962
    %2964 = vmatprep.mubr.bf16.mxu0 %v348
    %2965 = vmatmul.mubr.bf16.gmra.mxu0 %v347
    %v2966 = vpop.f32.mrf.mxu0
    %v2967 = vadd.f32 %v2894, %v2966
    %v2968 = vpop.f32.mrf.mxu0
    %v2969 = vadd.f32 %v2896, %v2968
    %v2970 = vpop.f32.mrf.mxu0
    %v2971 = vadd.f32 %v2898, %v2970
    %v2972 = vpop.f32.mrf.mxu0
    %v2973 = vadd.f32 %v2900, %v2972
    %2974 = vmatprep.mubr.bf16.mxu0 %v372
    %2975 = vmatmul.mubr.bf16.gmra.mxu0 %v371
    %v2976 = vpop.f32.mrf.mxu0
    %v2977 = vadd.f32 %v2904, %v2976
    %v2978 = vpop.f32.mrf.mxu0
    %v2979 = vadd.f32 %v2906, %v2978
    %v2980 = vpop.f32.mrf.mxu0
    %v2981 = vadd.f32 %v2908, %v2980
    %v2982 = vpop.f32.mrf.mxu0
    %v2983 = vadd.f32 %v2910, %v2982
    %2984 = vdwg.mxu0
    %2985 = vmatprep.subr.bf16.mxu0 %v2068
    %2986 = vmatpush1.bf16.msra.mxu0 %v2067
    %2987 = vmatprep.subr.bf16.mxu0 %v2066
    %2988 = vmatpush1.bf16.msra.mxu0 %v2065
    %2989 = vmatprep.subr.bf16.mxu0 %v2064
    %2990 = vmatpush1.bf16.msra.mxu0 %v2063
    %2991 = vmatprep.subr.bf16.mxu0 %v2062
    %2992 = vmatpush1.bf16.msra.mxu0 %v2061
    %2993 = vmatprep.subr.bf16.mxu0 %v2060
    %2994 = vmatpush1.bf16.msra.mxu0 %v2059
    %2995 = vmatprep.subr.bf16.mxu0 %v2058
    %2996 = vmatpush1.bf16.msra.mxu0 %v2057
    %2997 = vmatprep.subr.bf16.mxu0 %v2056
    %2998 = vmatpush1.bf16.msra.mxu0 %v2055
    %2999 = vmatprep.subr.bf16.mxu0 %v2054
    %3000 = vmatpush1.bf16.msra.mxu0 %v2053
    %3001 = vmatprep.subr.bf16.mxu0 %v2084
    %3002 = vmatpush2.bf16.msra.mxu0 %v2083
    %3003 = vmatprep.subr.bf16.mxu0 %v2082
    %3004 = vmatpush2.bf16.msra.mxu0 %v2081
    %3005 = vmatprep.subr.bf16.mxu0 %v2080
    %3006 = vmatpush2.bf16.msra.mxu0 %v2079
    %3007 = vmatprep.subr.bf16.mxu0 %v2078
    %3008 = vmatpush2.bf16.msra.mxu0 %v2077
    %3009 = vmatprep.subr.bf16.mxu0 %v2076
    %3010 = vmatpush2.bf16.msra.mxu0 %v2075
    %3011 = vmatprep.subr.bf16.mxu0 %v2074
    %3012 = vmatpush2.bf16.msra.mxu0 %v2073
    %3013 = vmatprep.subr.bf16.mxu0 %v2072
    %3014 = vmatpush2.bf16.msra.mxu0 %v2071
    %3015 = vmatprep.subr.bf16.mxu0 %v2070
    %3016 = vmatpush2.bf16.msra.mxu0 %v2069
    %3017 = vmatprep.mubr.bf16.mxu0 %v302
    %3018 = vmatmul.mubr.bf16.gmra.mxu0 %v301
    %v3019 = vpop.f32.mrf.mxu0
    %v3020 = vadd.f32 %v2947, %v3019
    %v3021 = vpop.f32.mrf.mxu0
    %v3022 = vadd.f32 %v2949, %v3021
    %v3023 = vpop.f32.mrf.mxu0
    %v3024 = vadd.f32 %v2951, %v3023
    %v3025 = vpop.f32.mrf.mxu0
    %v3026 = vadd.f32 %v2953, %v3025
    %3027 = vmatprep.mubr.bf16.mxu0 %v326
    %3028 = vmatmul.mubr.bf16.gmra.mxu0 %v325
    %v3029 = vpop.f32.mrf.mxu0
    %v3030 = vadd.f32 %v2957, %v3029
    %v3031 = vpop.f32.mrf.mxu0
    %v3032 = vadd.f32 %v2959, %v3031
    %v3033 = vpop.f32.mrf.mxu0
    %v3034 = vadd.f32 %v2961, %v3033
    %v3035 = vpop.f32.mrf.mxu0
    %v3036 = vadd.f32 %v2963, %v3035
    %3037 = vmatprep.mubr.bf16.mxu0 %v350
    %3038 = vmatmul.mubr.bf16.gmra.mxu0 %v349
    %v3039 = vpop.f32.mrf.mxu0
    %v3040 = vadd.f32 %v2967, %v3039
    %v3041 = vpop.f32.mrf.mxu0
    %v3042 = vadd.f32 %v2969, %v3041
    %v3043 = vpop.f32.mrf.mxu0
    %v3044 = vadd.f32 %v2971, %v3043
    %v3045 = vpop.f32.mrf.mxu0
    %v3046 = vadd.f32 %v2973, %v3045
    %3047 = vmatprep.mubr.bf16.mxu0 %v374
    %3048 = vmatmul.mubr.bf16.gmra.mxu0 %v373
    %v3049 = vpop.f32.mrf.mxu0
    %v3050 = vadd.f32 %v2977, %v3049
    %v3051 = vpop.f32.mrf.mxu0
    %v3052 = vadd.f32 %v2979, %v3051
    %v3053 = vpop.f32.mrf.mxu0
    %v3054 = vadd.f32 %v2981, %v3053
    %v3055 = vpop.f32.mrf.mxu0
    %v3056 = vadd.f32 %v2983, %v3055
    %3057 = vdwg.mxu0
    %3058 = vmatprep.subr.bf16.mxu0 %v2100
    %3059 = vmatpush1.bf16.msra.mxu0 %v2099
    %3060 = vmatprep.subr.bf16.mxu0 %v2098
    %3061 = vmatpush1.bf16.msra.mxu0 %v2097
    %3062 = vmatprep.subr.bf16.mxu0 %v2096
    %3063 = vmatpush1.bf16.msra.mxu0 %v2095
    %3064 = vmatprep.subr.bf16.mxu0 %v2094
    %3065 = vmatpush1.bf16.msra.mxu0 %v2093
    %3066 = vmatprep.subr.bf16.mxu0 %v2092
    %3067 = vmatpush1.bf16.msra.mxu0 %v2091
    %3068 = vmatprep.subr.bf16.mxu0 %v2090
    %3069 = vmatpush1.bf16.msra.mxu0 %v2089
    %3070 = vmatprep.subr.bf16.mxu0 %v2088
    %3071 = vmatpush1.bf16.msra.mxu0 %v2087
    %3072 = vmatprep.subr.bf16.mxu0 %v2086
    %3073 = vmatpush1.bf16.msra.mxu0 %v2085
    %3074 = vmatprep.subr.bf16.mxu0 %v2116
    %3075 = vmatpush2.bf16.msra.mxu0 %v2115
    %3076 = vmatprep.subr.bf16.mxu0 %v2114
    %3077 = vmatpush2.bf16.msra.mxu0 %v2113
    %3078 = vmatprep.subr.bf16.mxu0 %v2112
    %3079 = vmatpush2.bf16.msra.mxu0 %v2111
    %3080 = vmatprep.subr.bf16.mxu0 %v2110
    %3081 = vmatpush2.bf16.msra.mxu0 %v2109
    %3082 = vmatprep.subr.bf16.mxu0 %v2108
    %3083 = vmatpush2.bf16.msra.mxu0 %v2107
    %3084 = vmatprep.subr.bf16.mxu0 %v2106
    %3085 = vmatpush2.bf16.msra.mxu0 %v2105
    %3086 = vmatprep.subr.bf16.mxu0 %v2104
    %3087 = vmatpush2.bf16.msra.mxu0 %v2103
    %3088 = vmatprep.subr.bf16.mxu0 %v2102
    %3089 = vmatpush2.bf16.msra.mxu0 %v2101
    %3090 = vmatprep.mubr.bf16.mxu0 %v304
    %3091 = vmatmul.mubr.bf16.gmra.mxu0 %v303
    %v3092 = vpop.f32.mrf.mxu0
    %v3093 = vadd.f32 %v3020, %v3092
    %v3094 = vpop.f32.mrf.mxu0
    %v3095 = vadd.f32 %v3022, %v3094
    %v3096 = vpop.f32.mrf.mxu0
    %v3097 = vadd.f32 %v3024, %v3096
    %v3098 = vpop.f32.mrf.mxu0
    %v3099 = vadd.f32 %v3026, %v3098
    %3100 = vmatprep.mubr.bf16.mxu0 %v328
    %3101 = vmatmul.mubr.bf16.gmra.mxu0 %v327
    %v3102 = vpop.f32.mrf.mxu0
    %v3103 = vadd.f32 %v3030, %v3102
    %v3104 = vpop.f32.mrf.mxu0
    %v3105 = vadd.f32 %v3032, %v3104
    %v3106 = vpop.f32.mrf.mxu0
    %v3107 = vadd.f32 %v3034, %v3106
    %v3108 = vpop.f32.mrf.mxu0
    %v3109 = vadd.f32 %v3036, %v3108
    %3110 = vmatprep.mubr.bf16.mxu0 %v352
    %3111 = vmatmul.mubr.bf16.gmra.mxu0 %v351
    %v3112 = vpop.f32.mrf.mxu0
    %v3113 = vadd.f32 %v3040, %v3112
    %v3114 = vpop.f32.mrf.mxu0
    %v3115 = vadd.f32 %v3042, %v3114
    %v3116 = vpop.f32.mrf.mxu0
    %v3117 = vadd.f32 %v3044, %v3116
    %v3118 = vpop.f32.mrf.mxu0
    %v3119 = vadd.f32 %v3046, %v3118
    %3120 = vmatprep.mubr.bf16.mxu0 %v376
    %3121 = vmatmul.mubr.bf16.gmra.mxu0 %v375
    %v3122 = vpop.f32.mrf.mxu0
    %v3123 = vadd.f32 %v3050, %v3122
    %v3124 = vpop.f32.mrf.mxu0
    %v3125 = vadd.f32 %v3052, %v3124
    %v3126 = vpop.f32.mrf.mxu0
    %v3127 = vadd.f32 %v3054, %v3126
    %v3128 = vpop.f32.mrf.mxu0
    %v3129 = vadd.f32 %v3056, %v3128
    %3130 = vdwg.mxu0
    %3131 = vmatprep.subr.bf16.mxu0 %v2132
    %3132 = vmatpush1.bf16.msra.mxu0 %v2131
    %3133 = vmatprep.subr.bf16.mxu0 %v2130
    %3134 = vmatpush1.bf16.msra.mxu0 %v2129
    %3135 = vmatprep.subr.bf16.mxu0 %v2128
    %3136 = vmatpush1.bf16.msra.mxu0 %v2127
    %3137 = vmatprep.subr.bf16.mxu0 %v2126
    %3138 = vmatpush1.bf16.msra.mxu0 %v2125
    %3139 = vmatprep.subr.bf16.mxu0 %v2124
    %3140 = vmatpush1.bf16.msra.mxu0 %v2123
    %3141 = vmatprep.subr.bf16.mxu0 %v2122
    %3142 = vmatpush1.bf16.msra.mxu0 %v2121
    %3143 = vmatprep.subr.bf16.mxu0 %v2120
    %3144 = vmatpush1.bf16.msra.mxu0 %v2119
    %3145 = vmatprep.subr.bf16.mxu0 %v2118
    %3146 = vmatpush1.bf16.msra.mxu0 %v2117
    %3147 = vmatprep.subr.bf16.mxu0 %v2148
    %3148 = vmatpush2.bf16.msra.mxu0 %v2147
    %3149 = vmatprep.subr.bf16.mxu0 %v2146
    %3150 = vmatpush2.bf16.msra.mxu0 %v2145
    %3151 = vmatprep.subr.bf16.mxu0 %v2144
    %3152 = vmatpush2.bf16.msra.mxu0 %v2143
    %3153 = vmatprep.subr.bf16.mxu0 %v2142
    %3154 = vmatpush2.bf16.msra.mxu0 %v2141
    %3155 = vmatprep.subr.bf16.mxu0 %v2140
    %3156 = vmatpush2.bf16.msra.mxu0 %v2139
    %3157 = vmatprep.subr.bf16.mxu0 %v2138
    %3158 = vmatpush2.bf16.msra.mxu0 %v2137
    %3159 = vmatprep.subr.bf16.mxu0 %v2136
    %3160 = vmatpush2.bf16.msra.mxu0 %v2135
    %3161 = vmatprep.subr.bf16.mxu0 %v2134
    %3162 = vmatpush2.bf16.msra.mxu0 %v2133
    %3163 = vmatprep.mubr.bf16.mxu0 %v306
    %3164 = vmatmul.mubr.bf16.gmra.mxu0 %v305
    %v3165 = vpop.f32.mrf.mxu0
    %v3166 = vadd.f32 %v3093, %v3165
    %v3167 = vpop.f32.mrf.mxu0
    %v3168 = vadd.f32 %v3095, %v3167
    %v3169 = vpop.f32.mrf.mxu0
    %v3170 = vadd.f32 %v3097, %v3169
    %v3171 = vpop.f32.mrf.mxu0
    %v3172 = vadd.f32 %v3099, %v3171
    %3173 = vmatprep.mubr.bf16.mxu0 %v330
    %3174 = vmatmul.mubr.bf16.gmra.mxu0 %v329
    %v3175 = vpop.f32.mrf.mxu0
    %v3176 = vadd.f32 %v3103, %v3175
    %v3177 = vpop.f32.mrf.mxu0
    %v3178 = vadd.f32 %v3105, %v3177
    %v3179 = vpop.f32.mrf.mxu0
    %v3180 = vadd.f32 %v3107, %v3179
    %v3181 = vpop.f32.mrf.mxu0
    %v3182 = vadd.f32 %v3109, %v3181
    %3183 = vmatprep.mubr.bf16.mxu0 %v354
    %3184 = vmatmul.mubr.bf16.gmra.mxu0 %v353
    %v3185 = vpop.f32.mrf.mxu0
    %v3186 = vadd.f32 %v3113, %v3185
    %v3187 = vpop.f32.mrf.mxu0
    %v3188 = vadd.f32 %v3115, %v3187
    %v3189 = vpop.f32.mrf.mxu0
    %v3190 = vadd.f32 %v3117, %v3189
    %v3191 = vpop.f32.mrf.mxu0
    %v3192 = vadd.f32 %v3119, %v3191
    %3193 = vmatprep.mubr.bf16.mxu0 %v378
    %3194 = vmatmul.mubr.bf16.gmra.mxu0 %v377
    %v3195 = vpop.f32.mrf.mxu0
    %v3196 = vadd.f32 %v3123, %v3195
    %v3197 = vpop.f32.mrf.mxu0
    %v3198 = vadd.f32 %v3125, %v3197
    %v3199 = vpop.f32.mrf.mxu0
    %v3200 = vadd.f32 %v3127, %v3199
    %v3201 = vpop.f32.mrf.mxu0
    %v3202 = vadd.f32 %v3129, %v3201
    %3203 = vdwg.mxu0
    %3204 = vmatprep.subr.bf16.mxu0 %v2164
    %3205 = vmatpush1.bf16.msra.mxu0 %v2163
    %3206 = vmatprep.subr.bf16.mxu0 %v2162
    %3207 = vmatpush1.bf16.msra.mxu0 %v2161
    %3208 = vmatprep.subr.bf16.mxu0 %v2160
    %3209 = vmatpush1.bf16.msra.mxu0 %v2159
    %3210 = vmatprep.subr.bf16.mxu0 %v2158
    %3211 = vmatpush1.bf16.msra.mxu0 %v2157
    %3212 = vmatprep.subr.bf16.mxu0 %v2156
    %3213 = vmatpush1.bf16.msra.mxu0 %v2155
    %3214 = vmatprep.subr.bf16.mxu0 %v2154
    %3215 = vmatpush1.bf16.msra.mxu0 %v2153
    %3216 = vmatprep.subr.bf16.mxu0 %v2152
    %3217 = vmatpush1.bf16.msra.mxu0 %v2151
    %3218 = vmatprep.subr.bf16.mxu0 %v2150
    %3219 = vmatpush1.bf16.msra.mxu0 %v2149
    %3220 = vmatprep.subr.bf16.mxu0 %v2180
    %3221 = vmatpush2.bf16.msra.mxu0 %v2179
    %3222 = vmatprep.subr.bf16.mxu0 %v2178
    %3223 = vmatpush2.bf16.msra.mxu0 %v2177
    %3224 = vmatprep.subr.bf16.mxu0 %v2176
    %3225 = vmatpush2.bf16.msra.mxu0 %v2175
    %3226 = vmatprep.subr.bf16.mxu0 %v2174
    %3227 = vmatpush2.bf16.msra.mxu0 %v2173
    %3228 = vmatprep.subr.bf16.mxu0 %v2172
    %3229 = vmatpush2.bf16.msra.mxu0 %v2171
    %3230 = vmatprep.subr.bf16.mxu0 %v2170
    %3231 = vmatpush2.bf16.msra.mxu0 %v2169
    %3232 = vmatprep.subr.bf16.mxu0 %v2168
    %3233 = vmatpush2.bf16.msra.mxu0 %v2167
    %3234 = vmatprep.subr.bf16.mxu0 %v2166
    %3235 = vmatpush2.bf16.msra.mxu0 %v2165
    %3236 = vmatprep.mubr.bf16.mxu0 %v308
    %3237 = vmatmul.mubr.bf16.gmra.mxu0 %v307
    %v3238 = vpop.f32.mrf.mxu0
    %v3239 = vadd.f32 %v3166, %v3238
    %v3240 = vpop.f32.mrf.mxu0
    %v3241 = vadd.f32 %v3168, %v3240
    %v3242 = vpop.f32.mrf.mxu0
    %v3243 = vadd.f32 %v3170, %v3242
    %v3244 = vpop.f32.mrf.mxu0
    %v3245 = vadd.f32 %v3172, %v3244
    %3246 = vmatprep.mubr.bf16.mxu0 %v332
    %3247 = vmatmul.mubr.bf16.gmra.mxu0 %v331
    %v3248 = vpop.f32.mrf.mxu0
    %v3249 = vadd.f32 %v3176, %v3248
    %v3250 = vpop.f32.mrf.mxu0
    %v3251 = vadd.f32 %v3178, %v3250
    %v3252 = vpop.f32.mrf.mxu0
    %v3253 = vadd.f32 %v3180, %v3252
    %v3254 = vpop.f32.mrf.mxu0
    %v3255 = vadd.f32 %v3182, %v3254
    %3256 = vmatprep.mubr.bf16.mxu0 %v356
    %3257 = vmatmul.mubr.bf16.gmra.mxu0 %v355
    %v3258 = vpop.f32.mrf.mxu0
    %v3259 = vadd.f32 %v3186, %v3258
    %v3260 = vpop.f32.mrf.mxu0
    %v3261 = vadd.f32 %v3188, %v3260
    %v3262 = vpop.f32.mrf.mxu0
    %v3263 = vadd.f32 %v3190, %v3262
    %v3264 = vpop.f32.mrf.mxu0
    %v3265 = vadd.f32 %v3192, %v3264
    %3266 = vmatprep.mubr.bf16.mxu0 %v380
    %3267 = vmatmul.mubr.bf16.gmra.mxu0 %v379
    %v3268 = vpop.f32.mrf.mxu0
    %v3269 = vadd.f32 %v3196, %v3268
    %v3270 = vpop.f32.mrf.mxu0
    %v3271 = vadd.f32 %v3198, %v3270
    %v3272 = vpop.f32.mrf.mxu0
    %v3273 = vadd.f32 %v3200, %v3272
    %v3274 = vpop.f32.mrf.mxu0
    %v3275 = vadd.f32 %v3202, %v3274
    %3276 = vdwg.mxu0
    %3277 = vmatprep.subr.bf16.mxu0 %v2196
    %3278 = vmatpush1.bf16.msra.mxu0 %v2195
    %3279 = vmatprep.subr.bf16.mxu0 %v2194
    %3280 = vmatpush1.bf16.msra.mxu0 %v2193
    %3281 = vmatprep.subr.bf16.mxu0 %v2192
    %3282 = vmatpush1.bf16.msra.mxu0 %v2191
    %3283 = vmatprep.subr.bf16.mxu0 %v2190
    %3284 = vmatpush1.bf16.msra.mxu0 %v2189
    %3285 = vmatprep.subr.bf16.mxu0 %v2188
    %3286 = vmatpush1.bf16.msra.mxu0 %v2187
    %3287 = vmatprep.subr.bf16.mxu0 %v2186
    %3288 = vmatpush1.bf16.msra.mxu0 %v2185
    %3289 = vmatprep.subr.bf16.mxu0 %v2184
    %3290 = vmatpush1.bf16.msra.mxu0 %v2183
    %3291 = vmatprep.subr.bf16.mxu0 %v2182
    %3292 = vmatpush1.bf16.msra.mxu0 %v2181
    %3293 = vmatprep.subr.bf16.mxu0 %v2212
    %3294 = vmatpush2.bf16.msra.mxu0 %v2211
    %3295 = vmatprep.subr.bf16.mxu0 %v2210
    %3296 = vmatpush2.bf16.msra.mxu0 %v2209
    %3297 = vmatprep.subr.bf16.mxu0 %v2208
    %3298 = vmatpush2.bf16.msra.mxu0 %v2207
    %3299 = vmatprep.subr.bf16.mxu0 %v2206
    %3300 = vmatpush2.bf16.msra.mxu0 %v2205
    %3301 = vmatprep.subr.bf16.mxu0 %v2204
    %3302 = vmatpush2.bf16.msra.mxu0 %v2203
    %3303 = vmatprep.subr.bf16.mxu0 %v2202
    %3304 = vmatpush2.bf16.msra.mxu0 %v2201
    %3305 = vmatprep.subr.bf16.mxu0 %v2200
    %3306 = vmatpush2.bf16.msra.mxu0 %v2199
    %3307 = vmatprep.subr.bf16.mxu0 %v2198
    %3308 = vmatpush2.bf16.msra.mxu0 %v2197
    %3309 = vmatprep.mubr.bf16.mxu0 %v310
    %3310 = vmatmul.mubr.bf16.gmra.mxu0 %v309
    %v3311 = vpop.f32.mrf.mxu0
    %v3312 = vadd.f32 %v3239, %v3311
    %v3313 = vpop.f32.mrf.mxu0
    %v3314 = vadd.f32 %v3241, %v3313
    %v3315 = vpop.f32.mrf.mxu0
    %v3316 = vadd.f32 %v3243, %v3315
    %v3317 = vpop.f32.mrf.mxu0
    %v3318 = vadd.f32 %v3245, %v3317
    %3319 = vmatprep.mubr.bf16.mxu0 %v334
    %3320 = vmatmul.mubr.bf16.gmra.mxu0 %v333
    %v3321 = vpop.f32.mrf.mxu0
    %v3322 = vadd.f32 %v3249, %v3321
    %v3323 = vpop.f32.mrf.mxu0
    %v3324 = vadd.f32 %v3251, %v3323
    %v3325 = vpop.f32.mrf.mxu0
    %v3326 = vadd.f32 %v3253, %v3325
    %v3327 = vpop.f32.mrf.mxu0
    %v3328 = vadd.f32 %v3255, %v3327
    %3329 = vmatprep.mubr.bf16.mxu0 %v358
    %3330 = vmatmul.mubr.bf16.gmra.mxu0 %v357
    %v3331 = vpop.f32.mrf.mxu0
    %v3332 = vadd.f32 %v3259, %v3331
    %v3333 = vpop.f32.mrf.mxu0
    %v3334 = vadd.f32 %v3261, %v3333
    %v3335 = vpop.f32.mrf.mxu0
    %v3336 = vadd.f32 %v3263, %v3335
    %v3337 = vpop.f32.mrf.mxu0
    %v3338 = vadd.f32 %v3265, %v3337
    %3339 = vmatprep.mubr.bf16.mxu0 %v382
    %3340 = vmatmul.mubr.bf16.gmra.mxu0 %v381
    %v3341 = vpop.f32.mrf.mxu0
    %v3342 = vadd.f32 %v3269, %v3341
    %v3343 = vpop.f32.mrf.mxu0
    %v3344 = vadd.f32 %v3271, %v3343
    %v3345 = vpop.f32.mrf.mxu0
    %v3346 = vadd.f32 %v3273, %v3345
    %v3347 = vpop.f32.mrf.mxu0
    %v3348 = vadd.f32 %v3275, %v3347
    %3349 = vdwg.mxu0
    %3350 = vmatprep.subr.bf16.mxu0 %v2228
    %3351 = vmatpush1.bf16.msra.mxu0 %v2227
    %3352 = vmatprep.subr.bf16.mxu0 %v2226
    %3353 = vmatpush1.bf16.msra.mxu0 %v2225
    %3354 = vmatprep.subr.bf16.mxu0 %v2224
    %3355 = vmatpush1.bf16.msra.mxu0 %v2223
    %3356 = vmatprep.subr.bf16.mxu0 %v2222
    %3357 = vmatpush1.bf16.msra.mxu0 %v2221
    %3358 = vmatprep.subr.bf16.mxu0 %v2220
    %3359 = vmatpush1.bf16.msra.mxu0 %v2219
    %3360 = vmatprep.subr.bf16.mxu0 %v2218
    %3361 = vmatpush1.bf16.msra.mxu0 %v2217
    %3362 = vmatprep.subr.bf16.mxu0 %v2216
    %3363 = vmatpush1.bf16.msra.mxu0 %v2215
    %3364 = vmatprep.subr.bf16.mxu0 %v2214
    %3365 = vmatpush1.bf16.msra.mxu0 %v2213
    %3366 = vmatprep.subr.bf16.mxu0 %v2244
    %3367 = vmatpush2.bf16.msra.mxu0 %v2243
    %3368 = vmatprep.subr.bf16.mxu0 %v2242
    %3369 = vmatpush2.bf16.msra.mxu0 %v2241
    %3370 = vmatprep.subr.bf16.mxu0 %v2240
    %3371 = vmatpush2.bf16.msra.mxu0 %v2239
    %3372 = vmatprep.subr.bf16.mxu0 %v2238
    %3373 = vmatpush2.bf16.msra.mxu0 %v2237
    %3374 = vmatprep.subr.bf16.mxu0 %v2236
    %3375 = vmatpush2.bf16.msra.mxu0 %v2235
    %3376 = vmatprep.subr.bf16.mxu0 %v2234
    %3377 = vmatpush2.bf16.msra.mxu0 %v2233
    %3378 = vmatprep.subr.bf16.mxu0 %v2232
    %3379 = vmatpush2.bf16.msra.mxu0 %v2231
    %3380 = vmatprep.subr.bf16.mxu0 %v2230
    %3381 = vmatpush2.bf16.msra.mxu0 %v2229
    %3382 = vmatprep.mubr.bf16.mxu0 %v312
    %3383 = vmatmul.mubr.bf16.gmra.mxu0 %v311
    %v3384 = vpop.f32.mrf.mxu0
    %v3385 = vadd.f32 %v3312, %v3384
    %v3386 = vpop.f32.mrf.mxu0
    %v3387 = vadd.f32 %v3314, %v3386
    %v3388 = vpop.f32.mrf.mxu0
    %v3389 = vadd.f32 %v3316, %v3388
    %v3390 = vpop.f32.mrf.mxu0
    %v3391 = vadd.f32 %v3318, %v3390
    %3392 = vmatprep.mubr.bf16.mxu0 %v336
    %3393 = vmatmul.mubr.bf16.gmra.mxu0 %v335
    %v3394 = vpop.f32.mrf.mxu0
    %v3395 = vadd.f32 %v3322, %v3394
    %v3396 = vpop.f32.mrf.mxu0
    %v3397 = vadd.f32 %v3324, %v3396
    %v3398 = vpop.f32.mrf.mxu0
    %v3399 = vadd.f32 %v3326, %v3398
    %v3400 = vpop.f32.mrf.mxu0
    %v3401 = vadd.f32 %v3328, %v3400
    %3402 = vmatprep.mubr.bf16.mxu0 %v360
    %3403 = vmatmul.mubr.bf16.gmra.mxu0 %v359
    %v3404 = vpop.f32.mrf.mxu0
    %v3405 = vadd.f32 %v3332, %v3404
    %v3406 = vpop.f32.mrf.mxu0
    %v3407 = vadd.f32 %v3334, %v3406
    %v3408 = vpop.f32.mrf.mxu0
    %v3409 = vadd.f32 %v3336, %v3408
    %v3410 = vpop.f32.mrf.mxu0
    %v3411 = vadd.f32 %v3338, %v3410
    %3412 = vmatprep.mubr.bf16.mxu0 %v384
    %3413 = vmatmul.mubr.bf16.gmra.mxu0 %v383
    %v3414 = vpop.f32.mrf.mxu0
    %v3415 = vadd.f32 %v3342, %v3414
    %v3416 = vpop.f32.mrf.mxu0
    %v3417 = vadd.f32 %v3344, %v3416
    %v3418 = vpop.f32.mrf.mxu0
    %v3419 = vadd.f32 %v3346, %v3418
    %v3420 = vpop.f32.mrf.mxu0
    %v3421 = vadd.f32 %v3348, %v3420
    %3422 = vdwg.mxu0
    %3423 = vmatprep.subr.bf16.mxu0 %v2260
    %3424 = vmatpush1.bf16.msra.mxu0 %v2259
    %3425 = vmatprep.subr.bf16.mxu0 %v2258
    %3426 = vmatpush1.bf16.msra.mxu0 %v2257
    %3427 = vmatprep.subr.bf16.mxu0 %v2256
    %3428 = vmatpush1.bf16.msra.mxu0 %v2255
    %3429 = vmatprep.subr.bf16.mxu0 %v2254
    %3430 = vmatpush1.bf16.msra.mxu0 %v2253
    %3431 = vmatprep.subr.bf16.mxu0 %v2252
    %3432 = vmatpush1.bf16.msra.mxu0 %v2251
    %3433 = vmatprep.subr.bf16.mxu0 %v2250
    %3434 = vmatpush1.bf16.msra.mxu0 %v2249
    %3435 = vmatprep.subr.bf16.mxu0 %v2248
    %3436 = vmatpush1.bf16.msra.mxu0 %v2247
    %3437 = vmatprep.subr.bf16.mxu0 %v2246
    %3438 = vmatpush1.bf16.msra.mxu0 %v2245
    %3439 = vmatprep.subr.bf16.mxu0 %v2276
    %3440 = vmatpush2.bf16.msra.mxu0 %v2275
    %3441 = vmatprep.subr.bf16.mxu0 %v2274
    %3442 = vmatpush2.bf16.msra.mxu0 %v2273
    %3443 = vmatprep.subr.bf16.mxu0 %v2272
    %3444 = vmatpush2.bf16.msra.mxu0 %v2271
    %3445 = vmatprep.subr.bf16.mxu0 %v2270
    %3446 = vmatpush2.bf16.msra.mxu0 %v2269
    %3447 = vmatprep.subr.bf16.mxu0 %v2268
    %3448 = vmatpush2.bf16.msra.mxu0 %v2267
    %3449 = vmatprep.subr.bf16.mxu0 %v2266
    %3450 = vmatpush2.bf16.msra.mxu0 %v2265
    %3451 = vmatprep.subr.bf16.mxu0 %v2264
    %3452 = vmatpush2.bf16.msra.mxu0 %v2263
    %3453 = vmatprep.subr.bf16.mxu0 %v2262
    %3454 = vmatpush2.bf16.msra.mxu0 %v2261
    %3455 = vmatprep.mubr.bf16.mxu0 %v314
    %3456 = vmatmul.mubr.bf16.gmra.mxu0 %v313
    %v3457 = vpop.f32.mrf.mxu0
    %v3458 = vadd.f32 %v3385, %v3457
    %v3459 = vpop.f32.mrf.mxu0
    %v3460 = vadd.f32 %v3387, %v3459
    %v3461 = vpop.f32.mrf.mxu0
    %v3462 = vadd.f32 %v3389, %v3461
    %v3463 = vpop.f32.mrf.mxu0
    %v3464 = vadd.f32 %v3391, %v3463
    %3465 = vmatprep.mubr.bf16.mxu0 %v338
    %3466 = vmatmul.mubr.bf16.gmra.mxu0 %v337
    %v3467 = vpop.f32.mrf.mxu0
    %v3468 = vadd.f32 %v3395, %v3467
    %v3469 = vpop.f32.mrf.mxu0
    %v3470 = vadd.f32 %v3397, %v3469
    %v3471 = vpop.f32.mrf.mxu0
    %v3472 = vadd.f32 %v3399, %v3471
    %v3473 = vpop.f32.mrf.mxu0
    %v3474 = vadd.f32 %v3401, %v3473
    %3475 = vmatprep.mubr.bf16.mxu0 %v362
    %3476 = vmatmul.mubr.bf16.gmra.mxu0 %v361
    %v3477 = vpop.f32.mrf.mxu0
    %v3478 = vadd.f32 %v3405, %v3477
    %v3479 = vpop.f32.mrf.mxu0
    %v3480 = vadd.f32 %v3407, %v3479
    %v3481 = vpop.f32.mrf.mxu0
    %v3482 = vadd.f32 %v3409, %v3481
    %v3483 = vpop.f32.mrf.mxu0
    %v3484 = vadd.f32 %v3411, %v3483
    %3485 = vmatprep.mubr.bf16.mxu0 %v386
    %3486 = vmatmul.mubr.bf16.gmra.mxu0 %v385
    %v3487 = vpop.f32.mrf.mxu0
    %v3488 = vadd.f32 %v3415, %v3487
    %v3489 = vpop.f32.mrf.mxu0
    %v3490 = vadd.f32 %v3417, %v3489
    %v3491 = vpop.f32.mrf.mxu0
    %v3492 = vadd.f32 %v3419, %v3491
    %v3493 = vpop.f32.mrf.mxu0
    %v3494 = vadd.f32 %v3421, %v3493
    %3495 = vdwg.mxu0
    %3496 = vmatprep.subr.bf16.mxu0 %v2292
    %3497 = vmatpush1.bf16.msra.mxu0 %v2291
    %3498 = vmatprep.subr.bf16.mxu0 %v2290
    %3499 = vmatpush1.bf16.msra.mxu0 %v2289
    %3500 = vmatprep.subr.bf16.mxu0 %v2288
    %3501 = vmatpush1.bf16.msra.mxu0 %v2287
    %3502 = vmatprep.subr.bf16.mxu0 %v2286
    %3503 = vmatpush1.bf16.msra.mxu0 %v2285
    %3504 = vmatprep.subr.bf16.mxu0 %v2284
    %3505 = vmatpush1.bf16.msra.mxu0 %v2283
    %3506 = vmatprep.subr.bf16.mxu0 %v2282
    %3507 = vmatpush1.bf16.msra.mxu0 %v2281
    %3508 = vmatprep.subr.bf16.mxu0 %v2280
    %3509 = vmatpush1.bf16.msra.mxu0 %v2279
    %3510 = vmatprep.subr.bf16.mxu0 %v2278
    %3511 = vmatpush1.bf16.msra.mxu0 %v2277
    %3512 = vmatprep.subr.bf16.mxu0 %v2308
    %3513 = vmatpush2.bf16.msra.mxu0 %v2307
    %3514 = vmatprep.subr.bf16.mxu0 %v2306
    %3515 = vmatpush2.bf16.msra.mxu0 %v2305
    %3516 = vmatprep.subr.bf16.mxu0 %v2304
    %3517 = vmatpush2.bf16.msra.mxu0 %v2303
    %3518 = vmatprep.subr.bf16.mxu0 %v2302
    %3519 = vmatpush2.bf16.msra.mxu0 %v2301
    %3520 = vmatprep.subr.bf16.mxu0 %v2300
    %3521 = vmatpush2.bf16.msra.mxu0 %v2299
    %3522 = vmatprep.subr.bf16.mxu0 %v2298
    %3523 = vmatpush2.bf16.msra.mxu0 %v2297
    %3524 = vmatprep.subr.bf16.mxu0 %v2296
    %3525 = vmatpush2.bf16.msra.mxu0 %v2295
    %3526 = vmatprep.subr.bf16.mxu0 %v2294
    %3527 = vmatpush2.bf16.msra.mxu0 %v2293
    %3528 = vmatprep.mubr.bf16.mxu0 %v316
    %3529 = vmatmul.mubr.bf16.gmra.mxu0 %v315
    %v3530 = vpop.f32.mrf.mxu0
    %v3531 = vadd.f32 %v3458, %v3530
    %v3532 = vpop.f32.mrf.mxu0
    %v3533 = vadd.f32 %v3460, %v3532
    %v3534 = vpop.f32.mrf.mxu0
    %v3535 = vadd.f32 %v3462, %v3534
    %v3536 = vpop.f32.mrf.mxu0
    %v3537 = vadd.f32 %v3464, %v3536
    %3538 = vmatprep.mubr.bf16.mxu0 %v340
    %3539 = vmatmul.mubr.bf16.gmra.mxu0 %v339
    %v3540 = vpop.f32.mrf.mxu0
    %v3541 = vadd.f32 %v3468, %v3540
    %v3542 = vpop.f32.mrf.mxu0
    %v3543 = vadd.f32 %v3470, %v3542
    %v3544 = vpop.f32.mrf.mxu0
    %v3545 = vadd.f32 %v3472, %v3544
    %v3546 = vpop.f32.mrf.mxu0
    %v3547 = vadd.f32 %v3474, %v3546
    %3548 = vmatprep.mubr.bf16.mxu0 %v364
    %3549 = vmatmul.mubr.bf16.gmra.mxu0 %v363
    %v3550 = vpop.f32.mrf.mxu0
    %v3551 = vadd.f32 %v3478, %v3550
    %v3552 = vpop.f32.mrf.mxu0
    %v3553 = vadd.f32 %v3480, %v3552
    %v3554 = vpop.f32.mrf.mxu0
    %v3555 = vadd.f32 %v3482, %v3554
    %v3556 = vpop.f32.mrf.mxu0
    %v3557 = vadd.f32 %v3484, %v3556
    %3558 = vmatprep.mubr.bf16.mxu0 %v388
    %3559 = vmatmul.mubr.bf16.gmra.mxu0 %v387
    %v3560 = vpop.f32.mrf.mxu0
    %v3561 = vadd.f32 %v3488, %v3560
    %v3562 = vpop.f32.mrf.mxu0
    %v3563 = vadd.f32 %v3490, %v3562
    %v3564 = vpop.f32.mrf.mxu0
    %v3565 = vadd.f32 %v3492, %v3564
    %v3566 = vpop.f32.mrf.mxu0
    %v3567 = vadd.f32 %v3494, %v3566
    %3568 = vdwg.mxu0
    %v3569 = vld [vmem:[#allocation7] sm:$0x3]
    %v3571 = vlaneseq
    %v3572 = vshrl.u32 %v3571, 7
    %v3573 = vsub.s32 0, %v3572
    %v3574 = vrot.slane %v3569, %v3573
    %v3575 = vlaneseq
    %v3576 = vshrl.u32 %v3575, 7
    %v3577 = vsub.s32 1, %v3576
    %v3578 = vrot.slane %v3569, %v3577
    %v3581 = vmul.f32 %v3531, %v3574
    %v3582 = vmul.f32 %v3533, %v3578
    %v3583 = vmul.f32 %v3535, %v3574
    %v3584 = vmul.f32 %v3537, %v3578
    %v3585 = vmul.f32 %v3541, %v3574
    %v3586 = vmul.f32 %v3543, %v3578
    %v3587 = vmul.f32 %v3545, %v3574
    %v3588 = vmul.f32 %v3547, %v3578
    %v3589 = vmul.f32 %v3551, %v3574
    %v3590 = vmul.f32 %v3553, %v3578
    %v3591 = vmul.f32 %v3555, %v3574
    %v3592 = vmul.f32 %v3557, %v3578
    %v3593 = vmul.f32 %v3561, %v3574
    %v3594 = vmul.f32 %v3563, %v3578
    %v3595 = vmul.f32 %v3565, %v3574
    %v3596 = vmul.f32 %v3567, %v3578
    %v3597 = vld [vmem:[#allocation8] sm:$0x3]
    %v3599 = vlaneseq
    %v3600 = vshrl.u32 %v3599, 7
    %v3601 = vsub.s32 0, %v3600
    %v3602 = vrot.slane %v3597, %v3601
    %v3603 = vlaneseq
    %v3604 = vshrl.u32 %v3603, 7
    %v3605 = vsub.s32 1, %v3604
    %v3606 = vrot.slane %v3597, %v3605
    %v3609 = vadd.f32 %v3581, %v3602
    %v3610 = vadd.f32 %v3582, %v3606
    %v3611 = vadd.f32 %v3583, %v3602
    %v3612 = vadd.f32 %v3584, %v3606
    %v3613 = vadd.f32 %v3585, %v3602
    %v3614 = vadd.f32 %v3586, %v3606
    %v3615 = vadd.f32 %v3587, %v3602
    %v3616 = vadd.f32 %v3588, %v3606
    %v3617 = vadd.f32 %v3589, %v3602
    %v3618 = vadd.f32 %v3590, %v3606
    %v3619 = vadd.f32 %v3591, %v3602
    %v3620 = vadd.f32 %v3592, %v3606
    %v3621 = vadd.f32 %v3593, %v3602
    %v3622 = vadd.f32 %v3594, %v3606
    %v3623 = vadd.f32 %v3595, %v3602
    %v3624 = vadd.f32 %v3596, %v3606
    %v3625 = vmax.f32 %v3609, 0.0
    %v3626 = vmax.f32 %v3610, 0.0
    %v3627 = vmax.f32 %v3611, 0.0
    %v3628 = vmax.f32 %v3612, 0.0
    %v3629 = vmax.f32 %v3613, 0.0
    %v3630 = vmax.f32 %v3614, 0.0
    %v3631 = vmax.f32 %v3615, 0.0
    %v3632 = vmax.f32 %v3616, 0.0
    %v3633 = vmax.f32 %v3617, 0.0
    %v3634 = vmax.f32 %v3618, 0.0
    %v3635 = vmax.f32 %v3619, 0.0
    %v3636 = vmax.f32 %v3620, 0.0
    %v3637 = vmax.f32 %v3621, 0.0
    %v3638 = vmax.f32 %v3622, 0.0
    %v3639 = vmax.f32 %v3623, 0.0
    %v3640 = vmax.f32 %v3624, 0.0
    %v3641 = vpack.c.bf16 %v3627, %v3625
    %v3642 = vpack.c.bf16 %v3628, %v3626
    %v3643 = vpack.c.bf16 %v3631, %v3629
    %v3644 = vpack.c.bf16 %v3632, %v3630
    %v3645 = vpack.c.bf16 %v3635, %v3633
    %v3646 = vpack.c.bf16 %v3636, %v3634
    %v3647 = vpack.c.bf16 %v3639, %v3637
    %v3648 = vpack.c.bf16 %v3640, %v3638
    %v3649 = vld [vmem:[#allocation10] sm:$0xf]
    %v3650 = vld [vmem:[#allocation10 + $0x4] sm:$0xf]
    %v3651 = vld [vmem:[#allocation10 + $0x8] sm:$0xf]
    %v3652 = vld [vmem:[#allocation10 + $0xc] sm:$0xf]
    %v3653 = vld [vmem:[#allocation10 + $0x10] sm:$0xf]
    %v3654 = vld [vmem:[#allocation10 + $0x14] sm:$0xf]
    %v3655 = vld [vmem:[#allocation10 + $0x18] sm:$0xf]
    %v3656 = vld [vmem:[#allocation10 + $0x1c] sm:$0xf]
    %v3657 = vld [vmem:[#allocation10 + $0x20] sm:$0xf]
    %v3658 = vld [vmem:[#allocation10 + $0x24] sm:$0xf]
    %v3659 = vld [vmem:[#allocation10 + $0x28] sm:$0xf]
    %v3660 = vld [vmem:[#allocation10 + $0x2c] sm:$0xf]
    %v3661 = vld [vmem:[#allocation10 + $0x30] sm:$0xf]
    %v3662 = vld [vmem:[#allocation10 + $0x34] sm:$0xf]
    %v3663 = vld [vmem:[#allocation10 + $0x38] sm:$0xf]
    %v3664 = vld [vmem:[#allocation10 + $0x3c] sm:$0xf]
    %v3665 = vld [vmem:[#allocation10 + $0x40] sm:$0xf]
    %v3666 = vld [vmem:[#allocation10 + $0x44] sm:$0xf]
    %v3667 = vld [vmem:[#allocation10 + $0x48] sm:$0xf]
    %v3668 = vld [vmem:[#allocation10 + $0x4c] sm:$0xf]
    %v3669 = vld [vmem:[#allocation10 + $0x50] sm:$0xf]
    %v3670 = vld [vmem:[#allocation10 + $0x54] sm:$0xf]
    %v3671 = vld [vmem:[#allocation10 + $0x58] sm:$0xf]
    %v3672 = vld [vmem:[#allocation10 + $0x5c] sm:$0xf]
    %v3673 = vld [vmem:[#allocation10 + $0x60] sm:$0xf]
    %v3674 = vld [vmem:[#allocation10 + $0x64] sm:$0xf]
    %v3675 = vld [vmem:[#allocation10 + $0x68] sm:$0xf]
    %v3676 = vld [vmem:[#allocation10 + $0x6c] sm:$0xf]
    %v3677 = vld [vmem:[#allocation10 + $0x70] sm:$0xf]
    %v3678 = vld [vmem:[#allocation10 + $0x74] sm:$0xf]
    %v3679 = vld [vmem:[#allocation10 + $0x78] sm:$0xf]
    %v3680 = vld [vmem:[#allocation10 + $0x7c] sm:$0xf]
    %v3681 = vld [vmem:[#allocation11] sm:$0x1]
    %v3683 = vlaneseq
    %v3684 = vshrl.u32 %v3683, 7
    %v3685 = vsub.s32 0, %v3684
    %v3686 = vrot.slane %v3681, %v3685
    %v3720 = vunpack.c.l.b16 %v3649
    %v3721 = vunpack.c.l.b16 %v3650
    %v3722 = vunpack.c.l.b16 %v3651
    %v3723 = vunpack.c.l.b16 %v3652
    %v3724 = vunpack.c.l.b16 %v3653
    %v3725 = vunpack.c.l.b16 %v3654
    %v3726 = vunpack.c.l.b16 %v3655
    %v3727 = vunpack.c.l.b16 %v3656
    %v3728 = vunpack.c.l.b16 %v3657
    %v3729 = vunpack.c.l.b16 %v3658
    %v3730 = vunpack.c.l.b16 %v3659
    %v3731 = vunpack.c.l.b16 %v3660
    %v3732 = vunpack.c.l.b16 %v3661
    %v3733 = vunpack.c.l.b16 %v3662
    %v3734 = vunpack.c.l.b16 %v3663
    %v3735 = vunpack.c.l.b16 %v3664
    %v3736 = vunpack.c.l.b16 %v3665
    %v3737 = vunpack.c.l.b16 %v3666
    %v3738 = vunpack.c.l.b16 %v3667
    %v3739 = vunpack.c.l.b16 %v3668
    %v3740 = vunpack.c.l.b16 %v3669
    %v3741 = vunpack.c.l.b16 %v3670
    %v3742 = vunpack.c.l.b16 %v3671
    %v3743 = vunpack.c.l.b16 %v3672
    %v3744 = vunpack.c.l.b16 %v3673
    %v3745 = vunpack.c.l.b16 %v3674
    %v3746 = vunpack.c.l.b16 %v3675
    %v3747 = vunpack.c.l.b16 %v3676
    %v3748 = vunpack.c.l.b16 %v3677
    %v3749 = vunpack.c.l.b16 %v3678
    %v3750 = vunpack.c.l.b16 %v3679
    %v3751 = vunpack.c.l.b16 %v3680
    %v3752 = vpack.c.b16 %v3721, %v3720
    %v3753 = vpack.c.b16 %v3723, %v3722
    %v3754 = vpack.c.b16 %v3725, %v3724
    %v3755 = vpack.c.b16 %v3727, %v3726
    %v3756 = vpack.c.b16 %v3729, %v3728
    %v3757 = vpack.c.b16 %v3731, %v3730
    %v3758 = vpack.c.b16 %v3733, %v3732
    %v3759 = vpack.c.b16 %v3735, %v3734
    %v3760 = vpack.c.b16 %v3737, %v3736
    %v3761 = vpack.c.b16 %v3739, %v3738
    %v3762 = vpack.c.b16 %v3741, %v3740
    %v3763 = vpack.c.b16 %v3743, %v3742
    %v3764 = vpack.c.b16 %v3745, %v3744
    %v3765 = vpack.c.b16 %v3747, %v3746
    %v3766 = vpack.c.b16 %v3749, %v3748
    %v3767 = vpack.c.b16 %v3751, %v3750
    %3784 = vmatprep.subr.bf16.mxu0 0
    %3785 = vmatpush1.bf16.msra.mxu0 %v3759
    %3786 = vmatprep.subr.bf16.mxu0 0
    %3787 = vmatpush1.bf16.msra.mxu0 %v3758
    %3788 = vmatprep.subr.bf16.mxu0 0
    %3789 = vmatpush1.bf16.msra.mxu0 %v3757
    %3790 = vmatprep.subr.bf16.mxu0 0
    %3791 = vmatpush1.bf16.msra.mxu0 %v3756
    %3792 = vmatprep.subr.bf16.mxu0 0
    %3793 = vmatpush1.bf16.msra.mxu0 %v3755
    %3794 = vmatprep.subr.bf16.mxu0 0
    %3795 = vmatpush1.bf16.msra.mxu0 %v3754
    %3796 = vmatprep.subr.bf16.mxu0 0
    %3797 = vmatpush1.bf16.msra.mxu0 %v3753
    %3798 = vmatprep.subr.bf16.mxu0 0
    %3799 = vmatpush1.bf16.msra.mxu0 %v3752
    %3800 = vmatprep.subr.bf16.mxu0 0
    %3801 = vmatpush2.bf16.msra.mxu0 %v3767
    %3802 = vmatprep.subr.bf16.mxu0 0
    %3803 = vmatpush2.bf16.msra.mxu0 %v3766
    %3804 = vmatprep.subr.bf16.mxu0 0
    %3805 = vmatpush2.bf16.msra.mxu0 %v3765
    %3806 = vmatprep.subr.bf16.mxu0 0
    %3807 = vmatpush2.bf16.msra.mxu0 %v3764
    %3808 = vmatprep.subr.bf16.mxu0 0
    %3809 = vmatpush2.bf16.msra.mxu0 %v3763
    %3810 = vmatprep.subr.bf16.mxu0 0
    %3811 = vmatpush2.bf16.msra.mxu0 %v3762
    %3812 = vmatprep.subr.bf16.mxu0 0
    %3813 = vmatpush2.bf16.msra.mxu0 %v3761
    %3814 = vmatprep.subr.bf16.mxu0 0
    %3815 = vmatpush2.bf16.msra.mxu0 %v3760
    %3816 = vmatprep.mubr.bf16.mxu0 %v3642
    %3817 = vmatmul.mubr.bf16.gmra.mxu0 %v3641
    %v3818 = vpop.f32.mrf.mxu0
    %v3819 = vadd.f32 %v3686, %v3818
    %v3820 = vpop.f32.mrf.mxu0
    %v3821 = vpop.f32.mrf.mxu0
    %v3822 = vadd.f32 %v3686, %v3821
    %v3823 = vpop.f32.mrf.mxu0
    %3824 = vmatprep.mubr.bf16.mxu0 %v3644
    %3825 = vmatmul.mubr.bf16.gmra.mxu0 %v3643
    %v3826 = vpop.f32.mrf.mxu0
    %v3827 = vadd.f32 %v3686, %v3826
    %v3828 = vpop.f32.mrf.mxu0
    %v3829 = vpop.f32.mrf.mxu0
    %v3830 = vadd.f32 %v3686, %v3829
    %v3831 = vpop.f32.mrf.mxu0
    %3832 = vmatprep.mubr.bf16.mxu0 %v3646
    %3833 = vmatmul.mubr.bf16.gmra.mxu0 %v3645
    %v3834 = vpop.f32.mrf.mxu0
    %v3835 = vadd.f32 %v3686, %v3834
    %v3836 = vpop.f32.mrf.mxu0
    %v3837 = vpop.f32.mrf.mxu0
    %v3838 = vadd.f32 %v3686, %v3837
    %v3839 = vpop.f32.mrf.mxu0
    %3840 = vmatprep.mubr.bf16.mxu0 %v3648
    %3841 = vmatmul.mubr.bf16.gmra.mxu0 %v3647
    %v3842 = vpop.f32.mrf.mxu0
    %v3843 = vadd.f32 %v3686, %v3842
    %v3844 = vpop.f32.mrf.mxu0
    %v3845 = vpop.f32.mrf.mxu0
    %v3846 = vadd.f32 %v3686, %v3845
    %v3847 = vpop.f32.mrf.mxu0
    %3848 = vdwg.mxu0
    %3849 = vst [vmem:[#allocation13] sm:$0xff] %v3819
    %3850 = vst [vmem:[#allocation13 + $0x8] sm:$0xff] %v3822
    %3851 = vst [vmem:[#allocation13 + $0x10] sm:$0xff] %v3827
    %3852 = vst [vmem:[#allocation13 + $0x18] sm:$0xff] %v3830
    %3853 = vst [vmem:[#allocation13 + $0x20] sm:$0xff] %v3835
    %3854 = vst [vmem:[#allocation13 + $0x28] sm:$0xff] %v3838
    %3855 = vst [vmem:[#allocation13 + $0x30] sm:$0xff] %v3843
    %3856 = vst [vmem:[#allocation13 + $0x38] sm:$0xff] %v3846
    // Predicated region
    $region50: #{tpu_custom_call.1} parent=1 // pred_check
      _
    $region51: #{tpu_custom_call.1} parent=1 // pred_check_branch
      %3858 = sbr.rel (0) target = $region53
    $region52: #{tpu_custom_call.1} parent=1 // pred_region
      %s3860 = ssub.s32 1024, 1024
      %3861 = vsyncadd [#allocation4], %s3860
      %s3862 = sshll.u32 [#allocation13], 4
      %s3863 = int_to_ptr.vmem [resolvable:$true] %s3862
      %3868 = dma.vmem_to_hbm [thread:$0]  %s3863, 1024, %s6, [#allocation4], 128, 128, 8
    $region53: #{tpu_custom_call.1} parent=1 // pred_fallthru
      _
    // Predicated region
    $region54: #{tpu_custom_call.1} parent=1 // pred_check
      _
    $region55: #{tpu_custom_call.1} parent=1 // pred_check_branch
      %3870 = sbr.rel (0) target = $region57
    $region56: #{tpu_custom_call.1} parent=1 // pred_region
      %3871 = dma.done [#allocation4], 1024
    $region57: #{tpu_custom_call.1} parent=1 // pred_fallthru
      _
    %3872 = vsyncpa [#allocation3], 1
    %3873 = vsyncpa [#allocation6], 1
    %3874 = vsyncpa [#allocation9], 1
    %3875 = vsyncpa [#allocation12], 1
    %3876 = vsyncpa [#allocation4], 1

</llo_original>
